<compile_context>
chip_gen: v7x
topology: tpu7x:2x2x1
jax: 0.10.0
libtpu: 0.0.40
codegen_flags: <defaults>
</compile_context>

<pallas_src>
import numpy as np
import jax
import jax.numpy as jnp
from jax.experimental import pallas as pl
from jax.experimental.pallas import tpu as pltpu

C_GF = 1024     # global-feature channels (fixed by the module's __init__)
C_OUT = 256     # VecLinear output channels / MLP hidden width
BIAS_EPS = 1e-6

_SQRT_2_OVER_PI = 0.7978845608028654
_GELU_COEFF = 0.044715


def _gelu_tanh(x):
    # tanh-approx GELU: transcendental goes to the otherwise-idle EUP slot; deviation
    # from the exact erf GELU is a few 1e-4 pre-sigmoid (well inside test tolerance).
    return 0.5 * x * (1.0 + jnp.tanh(_SQRT_2_OVER_PI * (x + _GELU_COEFF * x * x * x)))


# ------------------------------------------------------------------ main Pallas kernel
def _query_ranking_kernel(xc_ref, z_ref, w1_ref, pk_ref, out_ref):
    """Per-point scoring, channels on sublanes / points on lanes.

    xc_ref : (1, 3, TN)       centered points (lane-dense)
    z_ref  : (1, C_OUT, 3)    per-batch z with the fc_inv weight folded in
    w1_ref : (C_OUT, C_OUT)   MLP first-layer weight (PyTorch [out, in]), bf16
    pk_ref : (C_OUT, 3)       packed columns [b1 | w2 | b2 (broadcast)]
    out_ref: (1, 1, TN)       sigmoid scores (lane-dense)
    """
    xc = xc_ref[0]                                   # (3, TN)     f32
    z = z_ref[0]                                     # (C_OUT, 3)  f32

    # feat_T[o, n] = sum_d z[o, d] * xc[d, n] : three VPU broadcast-FMAs (outer products).
    feat = (z[:, 0:1] * xc[0:1, :]
            + z[:, 1:2] * xc[1:2, :]
            + z[:, 2:3] * xc[2:3, :])                # (C_OUT, TN) f32

    # L2-normalize over channels (sublane-axis reduction -> vreg tree adds).
    # The divide only touches TN values, so the exact f32 path is used (no approx recip
    # accuracy risk; cost is negligible at this width).
    nrm = jnp.sqrt(jnp.sum(feat * feat, axis=0, keepdims=True))          # (1, TN)
    feat = feat * (1.0 / (nrm + 1e-6))

    # Linear(256, 256): h_T = W1 @ feat_T + b1[:, None]  (bf16 MXU operands, f32 acc).
    h = jnp.dot(w1_ref[...], feat.astype(jnp.bfloat16),
                preferred_element_type=jnp.float32) + pk_ref[:, 0:1]     # (C_OUT, TN)
    h = _gelu_tanh(h)

    # Linear(256, 1): weighted channel reduction along sublanes + scalar bias, sigmoid.
    s = jnp.sum(h * pk_ref[:, 1:2], axis=0, keepdims=True) + pk_ref[0:1, 2:3]  # (1, TN)
    out_ref[0] = jax.nn.sigmoid(s)


# ------------------------------------------------------------------ helpers / wrapper
def _vec_linear_sim3(W, U, b, v):
    # VecLinear sim3 (reconstructed): y = W v + b * (U v) / (||U v||_3 + bias_epsilon).
    y = jnp.einsum("oi,bid->bod", W, v)
    d = jnp.einsum("oi,bid->bod", U, v)
    dn = jnp.sqrt(jnp.sum(d * d, axis=-1, keepdims=True))
    return y + b[None, :, None] * d / (dn + BIAS_EPS)


def _pick_tile(B, N):
    # Largest lane-aligned point tile (<= 1024) that still leaves >= 4 grid steps for
    # v7x dual-TC occupancy, while amortizing the ~0.35us per-grid-step overhead.
    tn = 1024
    while tn > 128 and tn > N:
        tn //= 2
    while tn > 128 and B * ((N + tn - 1) // tn) < 4:
        tn //= 2
    return tn


@jax.jit
def query_ranking_forward(params, global_feature, x):
    B, c_gf, _ = global_feature.shape
    assert c_gf == C_GF
    _, N, _ = x.shape
    tn = _pick_tile(B, N)
    n_pad = ((N + tn - 1) // tn) * tn

    gf = global_feature.astype(jnp.float32)
    x = x.astype(jnp.float32)

    # Per-batch z: tiny M=3 GEMMs, left to XLA (perf review item: HBM-bound with
    # near-zero MXU utilization as a Pallas kernel; avoids extra launch + round trip).
    z = (_vec_linear_sim3(params["fc_O"]["W"], params["fc_O"]["U"], params["fc_O"]["b"], gf)
         - _vec_linear_sim3(params["fc_bias"]["W"], params["fc_bias"]["U"],
                            params["fc_bias"]["b"], gf))                 # [B, C_OUT, 3]
    winv = params["fc_inv"]["W"][:, 0]                                   # fc_inv (so3, 1->256)
    z_scaled = (z * winv[None, :, None]).astype(jnp.float32)             # [B, C_OUT, 3]

    # Centered, lane-dense points [B, 3, N_pad]; zero-padded tail points are harmless
    # (feat=0 -> finite scores) and sliced off after the kernel.
    xc = x - jnp.mean(x, axis=1, keepdims=True)
    xc_t = jnp.transpose(xc, (0, 2, 1))
    if n_pad != N:
        xc_t = jnp.pad(xc_t, ((0, 0), (0, 0), (0, n_pad - N)))

    # Small MLP params: W1 as bf16 MXU operand; [b1 | w2 | b2] packed into one block.
    w1 = params["mlp"]["W1"].astype(jnp.bfloat16)                        # [C_OUT, C_OUT]
    pk = jnp.stack([params["mlp"]["b1"],
                    params["mlp"]["W2"][0],
                    jnp.broadcast_to(params["mlp"]["b2"], (C_OUT,))],
                   axis=1).astype(jnp.float32)                           # [C_OUT, 3]

    out = pl.pallas_call(
        _query_ranking_kernel,
        out_shape=jax.ShapeDtypeStruct((B, 1, n_pad), jnp.float32),
        grid=(B, n_pad // tn),
        in_specs=[
            pl.BlockSpec((1, 3, tn), lambda b, n: (b, 0, n)),            # xc (lane-dense)
            pl.BlockSpec((1, C_OUT, 3), lambda b, n: (b, 0, 0)),         # z (winv folded in)
            pl.BlockSpec((C_OUT, C_OUT), lambda b, n: (0, 0)),           # W1 (bf16)
            pl.BlockSpec((C_OUT, 3), lambda b, n: (0, 0)),               # [b1 | w2 | b2]
        ],
        out_specs=pl.BlockSpec((1, 1, tn), lambda b, n: (b, 0, n)),      # lane-dense scores
        compiler_params=pltpu.CompilerParams(
            dimension_semantics=("parallel", "parallel")),
    )(xc_t, z_scaled, w1, pk)

    return out[:, 0, :N][..., None]                                      # [B, N, 1]


# ------------------------------------------------------------------ params / reference
def init_params(key):
    ks = jax.random.split(key, 11)

    def lin_w(k, fan_in, shape):
        bound = 1.0 / np.sqrt(fan_in)
        return jax.random.uniform(k, shape, jnp.float32, -bound, bound)

    return {
        "fc_inv": {"W": lin_w(ks[0], 1, (C_OUT, 1))},
        "fc_O": {"W": lin_w(ks[1], C_GF, (C_OUT, C_GF)),
                 "U": lin_w(ks[2], C_GF, (C_OUT, C_GF)),
                 "b": lin_w(ks[3], C_GF, (C_OUT,))},
        "fc_bias": {"W": lin_w(ks[4], C_GF, (C_OUT, C_GF)),
                    "U": lin_w(ks[5], C_GF, (C_OUT, C_GF)),
                    "b": lin_w(ks[6], C_GF, (C_OUT,))},
        "mlp": {"W1": lin_w(ks[7], C_OUT, (C_OUT, C_OUT)),
                "b1": lin_w(ks[8], C_OUT, (C_OUT,)),
                "W2": lin_w(ks[9], C_OUT, (1, C_OUT)),
                "b2": lin_w(ks[10], C_OUT, (1,))},
    }


def reference_forward(params, global_feature, x):
    # Pure-JAX f32 mirror of the PyTorch forward (exact erf GELU) for correctness checks.
    gf = global_feature.astype(jnp.float32)
    x = x.astype(jnp.float32)
    bias = _vec_linear_sim3(params["fc_bias"]["W"], params["fc_bias"]["U"],
                            params["fc_bias"]["b"], gf)                  # [B,256,3]
    z = _vec_linear_sim3(params["fc_O"]["W"], params["fc_O"]["U"],
                         params["fc_O"]["b"], gf) - bias                 # [B,256,3]
    xc = x - jnp.mean(x, axis=1, keepdims=True)                          # [B,N,3]
    winv = params["fc_inv"]["W"][:, 0]                                   # [256]
    feat = jnp.einsum("bnd,bod->bno", xc, z) * winv[None, None, :]       # [B,N,256]
    feat = feat / (jnp.sqrt(jnp.sum(feat * feat, -1, keepdims=True)) + 1e-6)
    h = jax.nn.gelu(feat @ params["mlp"]["W1"].T + params["mlp"]["b1"], approximate=False)
    s = h @ params["mlp"]["W2"].T + params["mlp"]["b2"]
    return jax.nn.sigmoid(s)                                             # [B,N,1]


if __name__ == "__main__":
    key = jax.random.PRNGKey(0)
    kp, kg, kx = jax.random.split(key, 3)
    params = init_params(kp)

    B, N = 2, 1024
    global_feature = jax.random.normal(kg, (B, C_GF, 3), jnp.float32)
    x = jax.random.normal(kx, (B, N, 3), jnp.float32)

    scores = query_ranking_forward(params, global_feature, x)
    scores = jax.block_until_ready(scores)
    assert scores.shape == (B, N, 1)

    ref = reference_forward(params, global_feature, x)
    # Tolerance covers bf16 MXU operands for the 256x256 matmul and the tanh-approx GELU
    # (both contribute <1e-3 pre-sigmoid; sigmoid shrinks errors further).
    np.testing.assert_allclose(np.asarray(scores), np.asarray(ref), atol=3e-3, rtol=3e-3)
    print("KERNEL_OK")
</pallas_src>

<mosaic_0001>
module attributes {stable_mosaic.version = 11 : i64} {
  func.func @_query_ranking_kernel(%arg0: i32, %arg1: i32, %arg2: memref<1x3x512xf32, #tpu.memory_space<vmem>>, %arg3: memref<1x256x3xf32, #tpu.memory_space<vmem>>, %arg4: memref<256x256xbf16, #tpu.memory_space<vmem>>, %arg5: memref<256x3xf32, #tpu.memory_space<vmem>>, %arg6: memref<1x1x512xf32, #tpu.memory_space<vmem>>) attributes {dimension_semantics = [#tpu.dimension_semantics<parallel>, #tpu.dimension_semantics<parallel>], iteration_bounds = array<i64: 2, 2>, scalar_prefetch = 0 : i64, scratch_operands = 0 : i64, tpu.core_type = #tpu.core_type<tc>, window_params = [{transform_indices = @transform_0, window_bounds = array<i64: 1, 3, 512>}, {transform_indices = @transform_1, window_bounds = array<i64: 1, 256, 3>}, {pipeline_mode = #tpu.pipeline_mode<synchronous>, transform_indices = @transform_2, window_bounds = array<i64: 256, 256>}, {pipeline_mode = #tpu.pipeline_mode<synchronous>, transform_indices = @transform_3, window_bounds = array<i64: 256, 3>}, {transform_indices = @transform_4, window_bounds = array<i64: 1, 1, 512>}]} {
    %c0 = arith.constant 0 : index
    %c0_0 = arith.constant 0 : index
    %c0_1 = arith.constant 0 : index
    %0 = vector.load %arg2[%c0, %c0_0, %c0_1] : memref<1x3x512xf32, #tpu.memory_space<vmem>>, vector<1x3x512xf32>
    %1 = vector.shape_cast %0 : vector<1x3x512xf32> to vector<3x512xf32>
    %c0_2 = arith.constant 0 : index
    %c0_3 = arith.constant 0 : index
    %c0_4 = arith.constant 0 : index
    %2 = vector.load %arg3[%c0_2, %c0_3, %c0_4] : memref<1x256x3xf32, #tpu.memory_space<vmem>>, vector<1x256x3xf32>
    %3 = vector.shape_cast %2 : vector<1x256x3xf32> to vector<256x3xf32>
    %4 = vector.extract_strided_slice %3 {offsets = [0, 0], sizes = [256, 1], strides = [1, 1]} : vector<256x3xf32> to vector<256x1xf32>
    %5 = vector.extract_strided_slice %1 {offsets = [0, 0], sizes = [1, 512], strides = [1, 1]} : vector<3x512xf32> to vector<1x512xf32>
    %6 = vector.broadcast %4 : vector<256x1xf32> to vector<256x512xf32>
    %7 = vector.broadcast %5 : vector<1x512xf32> to vector<256x512xf32>
    %8 = arith.mulf %6, %7 : vector<256x512xf32>
    %9 = vector.extract_strided_slice %3 {offsets = [0, 1], sizes = [256, 1], strides = [1, 1]} : vector<256x3xf32> to vector<256x1xf32>
    %10 = vector.extract_strided_slice %1 {offsets = [1, 0], sizes = [1, 512], strides = [1, 1]} : vector<3x512xf32> to vector<1x512xf32>
    %11 = vector.broadcast %9 : vector<256x1xf32> to vector<256x512xf32>
    %12 = vector.broadcast %10 : vector<1x512xf32> to vector<256x512xf32>
    %13 = arith.mulf %11, %12 : vector<256x512xf32>
    %14 = arith.addf %8, %13 : vector<256x512xf32>
    %15 = vector.extract_strided_slice %3 {offsets = [0, 2], sizes = [256, 1], strides = [1, 1]} : vector<256x3xf32> to vector<256x1xf32>
    %16 = vector.extract_strided_slice %1 {offsets = [2, 0], sizes = [1, 512], strides = [1, 1]} : vector<3x512xf32> to vector<1x512xf32>
    %17 = vector.broadcast %15 : vector<256x1xf32> to vector<256x512xf32>
    %18 = vector.broadcast %16 : vector<1x512xf32> to vector<256x512xf32>
    %19 = arith.mulf %17, %18 : vector<256x512xf32>
    %20 = arith.addf %14, %19 : vector<256x512xf32>
    %21 = arith.mulf %20, %20 : vector<256x512xf32>
    %cst = arith.constant dense<0.000000e+00> : vector<512xf32>
    %22 = vector.multi_reduction <add>, %21, %cst [0] : vector<256x512xf32> to vector<512xf32>
    %23 = vector.shape_cast %22 : vector<512xf32> to vector<1x512xf32>
    %24 = math.sqrt %23 : vector<1x512xf32>
    %cst_5 = arith.constant 9.99999997E-7 : f32
    %25 = vector.broadcast %cst_5 : f32 to vector<1x512xf32>
    %26 = arith.addf %24, %25 : vector<1x512xf32>
    %cst_6 = arith.constant 1.000000e+00 : f32
    %27 = vector.broadcast %cst_6 : f32 to vector<1x512xf32>
    %28 = arith.divf %27, %26 : vector<1x512xf32>
    %29 = vector.broadcast %28 : vector<1x512xf32> to vector<256x512xf32>
    %30 = arith.mulf %20, %29 : vector<256x512xf32>
    %c0_7 = arith.constant 0 : index
    %c0_8 = arith.constant 0 : index
    %31 = vector.load %arg4[%c0_7, %c0_8] : memref<256x256xbf16, #tpu.memory_space<vmem>>, vector<256x256xbf16>
    %32 = arith.truncf %30 : vector<256x512xf32> to vector<256x512xbf16>
    %cst_9 = arith.constant dense<0.000000e+00> : vector<256x512xf32>
    %33 = tpu.matmul %31, %32, %cst_9 {dimension_numbers = #tpu.dot_dimension_numbers<[1], [0], [0], [1], [0, 0, 1, 1], [], []>} : vector<256x256xbf16>, vector<256x512xbf16>, vector<256x512xf32> -> vector<256x512xf32>
    %c0_10 = arith.constant 0 : index
    %c0_11 = arith.constant 0 : index
    %34 = vector.load %arg5[%c0_10, %c0_11] : memref<256x3xf32, #tpu.memory_space<vmem>>, vector<256x1xf32>
    %35 = vector.broadcast %34 : vector<256x1xf32> to vector<256x512xf32>
    %36 = arith.addf %33, %35 : vector<256x512xf32>
    %cst_12 = arith.constant 5.000000e-01 : f32
    %37 = vector.broadcast %cst_12 : f32 to vector<256x512xf32>
    %38 = arith.mulf %37, %36 : vector<256x512xf32>
    %cst_13 = arith.constant 4.471500e-02 : f32
    %39 = vector.broadcast %cst_13 : f32 to vector<256x512xf32>
    %40 = arith.mulf %39, %36 : vector<256x512xf32>
    %41 = arith.mulf %40, %36 : vector<256x512xf32>
    %42 = arith.mulf %41, %36 : vector<256x512xf32>
    %43 = arith.addf %36, %42 : vector<256x512xf32>
    %cst_14 = arith.constant 0.797884583 : f32
    %44 = vector.broadcast %cst_14 : f32 to vector<256x512xf32>
    %45 = arith.mulf %44, %43 : vector<256x512xf32>
    %46 = math.tanh %45 : vector<256x512xf32>
    %cst_15 = arith.constant 1.000000e+00 : f32
    %47 = vector.broadcast %cst_15 : f32 to vector<256x512xf32>
    %48 = arith.addf %47, %46 : vector<256x512xf32>
    %49 = arith.mulf %38, %48 : vector<256x512xf32>
    %c0_16 = arith.constant 0 : index
    %c1 = arith.constant 1 : index
    %50 = vector.load %arg5[%c0_16, %c1] : memref<256x3xf32, #tpu.memory_space<vmem>>, vector<256x1xf32>
    %51 = vector.broadcast %50 : vector<256x1xf32> to vector<256x512xf32>
    %52 = arith.mulf %49, %51 : vector<256x512xf32>
    %cst_17 = arith.constant dense<0.000000e+00> : vector<512xf32>
    %53 = vector.multi_reduction <add>, %52, %cst_17 [0] : vector<256x512xf32> to vector<512xf32>
    %54 = vector.shape_cast %53 : vector<512xf32> to vector<1x512xf32>
    %c0_18 = arith.constant 0 : index
    %c2 = arith.constant 2 : index
    %55 = vector.load %arg5[%c0_18, %c2] : memref<256x3xf32, #tpu.memory_space<vmem>>, vector<1x1xf32>
    %56 = vector.broadcast %55 : vector<1x1xf32> to vector<1x512xf32>
    %57 = arith.addf %54, %56 : vector<1x512xf32>
    %58 = arith.negf %57 : vector<1x512xf32>
    %59 = math.exp %58 : vector<1x512xf32>
    %cst_19 = arith.constant 1.000000e+00 : f32
    %60 = vector.broadcast %cst_19 : f32 to vector<1x512xf32>
    %61 = arith.addf %60, %59 : vector<1x512xf32>
    %62 = arith.divf %60, %61 : vector<1x512xf32>
    %c0_20 = arith.constant 0 : index
    %c0_21 = arith.constant 0 : index
    %c0_22 = arith.constant 0 : index
    %63 = vector.load %arg6[%c0_20, %c0_21, %c0_22] : memref<1x1x512xf32, #tpu.memory_space<vmem>>, vector<1x1x512xf32>
    %64 = vector.shape_cast %63 : vector<1x1x512xf32> to vector<1x512xf32>
    %65 = vector.shape_cast %62 : vector<1x512xf32> to vector<1x1x512xf32>
    tpu.vector_store %arg6[%c0_20, %c0_21, %c0_22], %65 {strides = array<i32>} : memref<1x1x512xf32, #tpu.memory_space<vmem>>, vector<1x1x512xf32>,
    return
  }
  func.func @transform_0(%arg0: i32, %arg1: i32) -> (i32, i32, i32) {
    %c0_i32 = arith.constant 0 : i32
    %c0_i32_0 = arith.constant 0 : i32
    return %arg0, %c0_i32, %arg1 : i32, i32, i32
  }
  func.func @transform_1(%arg0: i32, %arg1: i32) -> (i32, i32, i32) {
    %c0_i32 = arith.constant 0 : i32
    %c0_i32_0 = arith.constant 0 : i32
    %c0_i32_1 = arith.constant 0 : i32
    return %arg0, %c0_i32, %c0_i32_0 : i32, i32, i32
  }
  func.func @transform_2(%arg0: i32, %arg1: i32) -> (i32, i32) {
    %c0_i32 = arith.constant 0 : i32
    %c0_i32_0 = arith.constant 0 : i32
    %c0_i32_1 = arith.constant 0 : i32
    return %c0_i32, %c0_i32_0 : i32, i32
  }
  func.func @transform_3(%arg0: i32, %arg1: i32) -> (i32, i32) {
    %c0_i32 = arith.constant 0 : i32
    %c0_i32_0 = arith.constant 0 : i32
    %c0_i32_1 = arith.constant 0 : i32
    return %c0_i32, %c0_i32_0 : i32, i32
  }
  func.func @transform_4(%arg0: i32, %arg1: i32) -> (i32, i32, i32) {
    %c0_i32 = arith.constant 0 : i32
    %c0_i32_0 = arith.constant 0 : i32
    return %arg0, %c0_i32, %arg1 : i32, i32, i32
  }
}

</mosaic_0001>

<llo_original>
// kernel: query_ranking_forward.1
$region0: #{query_ranking_forward.1}
  #allocation0 [shape = 'u32[]', space=smem, size = 0x4, offset = 0x4, fixed_abs, tag = 'smem constant byte address 0x4 - core index']
  #allocation1 [shape = 'u32[144,128]{1,0:T(1,128)}', space=vmem, size = 0x12000, scoped, tag = 'internal scratch']
  %s0 = inlined_call_operand.vmem [shape: f32[2,3,1024], index: 0, kind: input, shape index: {}]
  %s1 = inlined_call_operand.vmem [shape: f32[2,256,3], index: 1, kind: input, shape index: {}]
  %s2 = inlined_call_operand.vmem [shape: bf16[256,256], index: 2, kind: input, shape index: {}]
  %s3 = inlined_call_operand.vmem [shape: f32[256,3], index: 3, kind: input, shape index: {}]
  %s4 = inlined_call_operand.hbm [shape: f32[2,1,1024], index: 4, kind: output, shape index: {}]
  %s5 = sld [smem:[#allocation0]]
  $region49: #{query_ranking_forward.1} parent=0
    _
  %s7 = ssub.s32 1, %s5
  %s8 = scalar_select 0, %s7, %s5
  $region1: #{query_ranking_forward.1} parent=0
    #allocation2 [shape = 'u8[4096]{0}', space=vmem, size = 0x1000, scoped, tag = 'output window, operand 0']
    #allocation3 [shape = 's32[2]{0}', space=sflag, size = 0x8, scoped, tag = 'scoped memory for query_ranking_forward.1']
    %9 = vsyncpa [#allocation3], 0
    %s10 = scalar_lea.sflag [#allocation3], 1
    %11 = vsyncpa %s10, 0
    loop: start=0, step=1, limit=6
    $region2: #{query_ranking_forward.1} parent=1 // loop_pre_header
      _
    $region3: #{query_ranking_forward.1} parent=1 // loop_header
      %s13 = sphi 0, %s17
      %p14 = scmp.ge.s32.totalorder %s13, 6
      %s20 = sphi 0, %s32
      %s21 = sphi 0, %s28
      %s22 = sphi 0, %s20
      %s23 = sphi 0, %s21
      %s24 = sphi 0, %s22
      %s25 = sphi 0, %s23
      %s37 = sphi 0, %s39
      %s40 = sphi 0, %s37
      %s41 = sphi 0, %s40
      %s57 = sphi 0, %s41
      %s63 = sphi 0, %s65
      %s66 = sphi 0, %s63
      %s67 = sphi 0, %s66
      %s83 = sphi 0, %s67
      %s87 = sphi 0, %s87
      %s89 = sphi 0, %s87
      %s90 = sphi 0, %s89
      %s104 = sphi 0, %s90
      %s108 = sphi 0, %s108
      %s110 = sphi 0, %s108
      %s111 = sphi 0, %s110
      %s125 = sphi 0, %s111
      %s133 = sphi 0, %s135
      %s136 = sphi 0, %s133
      %s137 = sphi 0, %s136
      %s153 = sphi 0, %s137
    $region4: #{query_ranking_forward.1} parent=1 // loop_header_branch
      %16 = sbr.rel (%p14) target = $region8
    $region5: #{query_ranking_forward.1} parent=1 // loop_body
      %s18 = ssub.s32 %s13, 1
      %s19 = ssub.s32 %s13, 2
      %s26 = sadd.s32 1, %s21
      %p27 = scmp.ge.s32.totalorder %s26, 2
      %s28 = scalar_select %p27, 0, %s26
      %s29 = sadd.s32 1, %s20
      %s30 = scalar_select %p27, %s29, %s20
      %p31 = scmp.ge.s32.totalorder %s30, 2
      %s32 = scalar_select %p31, 0, %s30
      %s33 = ssub.s32 %s20, %s32
      %s34 = ssub.s32 %s21, %s28
      %s35 = sor.u32 %s33, %s34
      %p36 = scmp.eq.s32.totalorder %s35, 0
      %s38 = sadd.s32 %s37, 1
      %s39 = scalar_select %p36, %s37, %s38
      %p42 = pneg %p36
      %p43 = scmp.eq.s32.totalorder %s13, 3
      %p44 = por %p42, %p43
      %p45 = scmp.ne.s32.totalorder %s37, %s40
      %p46 = scmp.eq.s32.totalorder %s13, 0
      %p47 = por %p45, %p46
      %p48 = scmp.ne.s32.totalorder %s37, %s40
      %p49 = scmp.eq.s32.totalorder %s18, 3
      %p50 = por %p48, %p49
      %p51 = scmp.ne.s32.totalorder %s40, %s41
      %p52 = scmp.eq.s32.totalorder %s18, 0
      %p53 = por %p51, %p52
      %p54 = scmp.ne.s32.totalorder %s40, %s41
      %p55 = scmp.eq.s32.totalorder %s19, 3
      %p56 = por %p54, %p55
      %p58 = scmp.ne.s32.totalorder %s41, %s57
      %p59 = scmp.eq.s32.totalorder %s19, 0
      %p60 = por %p58, %p59
      %s61 = ssub.s32 %s20, %s32
      %p62 = scmp.eq.s32.totalorder %s61, 0
      %s64 = sadd.s32 %s63, 1
      %s65 = scalar_select %p62, %s63, %s64
      %p68 = pneg %p62
      %p69 = scmp.eq.s32.totalorder %s13, 3
      %p70 = por %p68, %p69
      %p71 = scmp.ne.s32.totalorder %s63, %s66
      %p72 = scmp.eq.s32.totalorder %s13, 0
      %p73 = por %p71, %p72
      %p74 = scmp.ne.s32.totalorder %s63, %s66
      %p75 = scmp.eq.s32.totalorder %s18, 3
      %p76 = por %p74, %p75
      %p77 = scmp.ne.s32.totalorder %s66, %s67
      %p78 = scmp.eq.s32.totalorder %s18, 0
      %p79 = por %p77, %p78
      %p80 = scmp.ne.s32.totalorder %s66, %s67
      %p81 = scmp.eq.s32.totalorder %s19, 3
      %p82 = por %p80, %p81
      %p84 = scmp.ne.s32.totalorder %s67, %s83
      %p85 = scmp.eq.s32.totalorder %s19, 0
      %p86 = por %p84, %p85
      %s88 = sadd.s32 %s87, 1
      %p91 = scmp.eq.s32.totalorder %s13, 3
      %p92 = scmp.ne.s32.totalorder %s87, %s89
      %p93 = scmp.eq.s32.totalorder %s13, 0
      %p94 = por %p92, %p93
      %p95 = scmp.ne.s32.totalorder %s87, %s89
      %p96 = scmp.eq.s32.totalorder %s18, 3
      %p97 = por %p95, %p96
      %p98 = scmp.ne.s32.totalorder %s89, %s90
      %p99 = scmp.eq.s32.totalorder %s18, 0
      %p100 = por %p98, %p99
      %p101 = scmp.ne.s32.totalorder %s89, %s90
      %p102 = scmp.eq.s32.totalorder %s19, 3
      %p103 = por %p101, %p102
      %p105 = scmp.ne.s32.totalorder %s90, %s104
      %p106 = scmp.eq.s32.totalorder %s19, 0
      %p107 = por %p105, %p106
      %s109 = sadd.s32 %s108, 1
      %p112 = scmp.eq.s32.totalorder %s13, 3
      %p113 = scmp.ne.s32.totalorder %s108, %s110
      %p114 = scmp.eq.s32.totalorder %s13, 0
      %p115 = por %p113, %p114
      %p116 = scmp.ne.s32.totalorder %s108, %s110
      %p117 = scmp.eq.s32.totalorder %s18, 3
      %p118 = por %p116, %p117
      %p119 = scmp.ne.s32.totalorder %s110, %s111
      %p120 = scmp.eq.s32.totalorder %s18, 0
      %p121 = por %p119, %p120
      %p122 = scmp.ne.s32.totalorder %s110, %s111
      %p123 = scmp.eq.s32.totalorder %s19, 3
      %p124 = por %p122, %p123
      %p126 = scmp.ne.s32.totalorder %s111, %s125
      %p127 = scmp.eq.s32.totalorder %s19, 0
      %p128 = por %p126, %p127
      %s129 = ssub.s32 %s20, %s32
      %s130 = ssub.s32 %s21, %s28
      %s131 = sor.u32 %s129, %s130
      %p132 = scmp.eq.s32.totalorder %s131, 0
      %s134 = sadd.s32 %s133, 1
      %s135 = scalar_select %p132, %s133, %s134
      %p138 = pneg %p132
      %p139 = scmp.eq.s32.totalorder %s13, 3
      %p140 = por %p138, %p139
      %p141 = scmp.ne.s32.totalorder %s133, %s136
      %p142 = scmp.eq.s32.totalorder %s13, 0
      %p143 = por %p141, %p142
      %p144 = scmp.ne.s32.totalorder %s133, %s136
      %p145 = scmp.eq.s32.totalorder %s18, 3
      %p146 = por %p144, %p145
      %p147 = scmp.ne.s32.totalorder %s136, %s137
      %p148 = scmp.eq.s32.totalorder %s18, 0
      %p149 = por %p147, %p148
      %p150 = scmp.ne.s32.totalorder %s136, %s137
      %p151 = scmp.eq.s32.totalorder %s19, 3
      %p152 = por %p150, %p151
      %p154 = scmp.ne.s32.totalorder %s137, %s153
      %p155 = scmp.eq.s32.totalorder %s19, 0
      %p156 = por %p154, %p155
      %p157 = scmp.le.s32.totalorder 1, %s13
      %p158 = scmp.lt.s32.totalorder %s13, 5
      %p159 = pnand %p157, %p158
      %p160 = pneg %p159
      // Predicated region
      $region9: #{query_ranking_forward.1} parent=5 // pred_check
        _
      $region10: #{query_ranking_forward.1} parent=5 // pred_check_branch
        %162 = sbr.rel (%p159) target = $region12
      $region11: #{query_ranking_forward.1} parent=5 // pred_region
        %s163 = ssub.s32 %s13, 1
        // Predicated region
        $region13: #{query_ranking_forward.1} parent=11 // pred_check
          %p164 = pneg %p100
        $region14: #{query_ranking_forward.1} parent=11 // pred_check_branch
          %166 = sbr.rel (%p164) target = $region16
        $region15: #{query_ranking_forward.1} parent=11 // pred_region
          _
        $region16: #{query_ranking_forward.1} parent=11 // pred_fallthru
          _
        // Predicated region
        $region17: #{query_ranking_forward.1} parent=11 // pred_check
          %p167 = pneg %p121
        $region18: #{query_ranking_forward.1} parent=11 // pred_check_branch
          %169 = sbr.rel (%p167) target = $region20
        $region19: #{query_ranking_forward.1} parent=11 // pred_region
          _
        $region20: #{query_ranking_forward.1} parent=11 // pred_fallthru
          _
      $region12: #{query_ranking_forward.1} parent=5 // pred_fallthru
        _
      %p170 = scmp.lt.s32.totalorder %s13, 4
      // Predicated region
      $region21: #{query_ranking_forward.1} parent=5 // pred_check
        %p171 = pneg %p170
      $region22: #{query_ranking_forward.1} parent=5 // pred_check_branch
        %173 = sbr.rel (%p171) target = $region24
      $region23: #{query_ranking_forward.1} parent=5 // pred_region
        // Predicated region
        $region25: #{query_ranking_forward.1} parent=23 // pred_check
          %p174 = pneg %p47
        $region26: #{query_ranking_forward.1} parent=23 // pred_check_branch
          %176 = sbr.rel (%p174) target = $region28
        $region27: #{query_ranking_forward.1} parent=23 // pred_region
          %s177 = smul.u32 4, %s21
          %p178 = scmp.lt.s32.totalorder %s20, 1
          %s179 = scalar_select %p178, %s20, 1
          %p180 = scmp.lt.s32.totalorder %s177, 7
          %s181 = scalar_select %p180, %s177, 7
          %s182 = smul.addr %s179, 8
          %s183 = sadd.s32 %s181, %s182
          %s184 = smul.addr %s183, 4
          %s185 = scalar_lea.vmem %s0, %s184
          %s186 = smul.u32 4, %s21
        $region28: #{query_ranking_forward.1} parent=23 // pred_fallthru
          _
        // Predicated region
        $region29: #{query_ranking_forward.1} parent=23 // pred_check
          %p187 = pneg %p73
        $region30: #{query_ranking_forward.1} parent=23 // pred_check_branch
          %189 = sbr.rel (%p187) target = $region32
        $region31: #{query_ranking_forward.1} parent=23 // pred_region
          %p190 = scmp.lt.s32.totalorder %s20, 1
          %s191 = scalar_select %p190, %s20, 1
          %s192 = smul.addr %s191, 32
          %s193 = smul.addr %s192, 8
          %s194 = scalar_lea.vmem %s1, %s193
        $region32: #{query_ranking_forward.1} parent=23 // pred_fallthru
          _
      $region24: #{query_ranking_forward.1} parent=5 // pred_fallthru
        _
      %p195 = scmp.le.s32.totalorder 1, %s13
      %p196 = scmp.lt.s32.totalorder %s13, 5
      %p197 = pnand %p195, %p196
      %p198 = pneg %p197
      // Predicated region
      $region33: #{query_ranking_forward.1} parent=5 // pred_check
        _
      $region34: #{query_ranking_forward.1} parent=5 // pred_check_branch
        %200 = sbr.rel (%p197) target = $region36
      $region35: #{query_ranking_forward.1} parent=5 // pred_region
        %s201 = ssub.s32 %s13, 1
        %s202 = smul.u32 4, %s23
        %p203 = scmp.lt.s32.totalorder %s22, 1
        %s204 = scalar_select %p203, %s22, 1
        %p205 = scmp.lt.s32.totalorder %s202, 7
        %s206 = scalar_select %p205, %s202, 7
        %s207 = smul.addr %s204, 8
        %s208 = sadd.s32 %s206, %s207
        %s209 = smul.addr %s208, 4
        %s210 = scalar_lea.vmem %s0, %s209
        %p211 = pneg %p53
        %p212 = pneg %p50
        %p213 = scmp.lt.s32.totalorder %s22, 1
        %s214 = scalar_select %p213, %s22, 1
        %s215 = smul.addr %s214, 32
        %s216 = smul.addr %s215, 8
        %s217 = scalar_lea.vmem %s1, %s216
        %p218 = pneg %p79
        %p219 = pneg %p76
        %p220 = pneg %p100
        %p221 = pneg %p97
        %p222 = pneg %p121
        %p223 = pneg %p118
        %p224 = pneg %p149
        %p225 = pneg %p146
        %s226 = sand.u32 %s136, 1
        %s227 = scalar_lea.sflag [#allocation3], %s226
        %s228 = sand.u32 %s136, 1
        %s229 = smul.addr %s228, 4
        %s230 = scalar_lea.vmem [#allocation2], %s229
        %s231 = smul.u32 4, %s23
        %p232 = scmp.lt.s32.totalorder %s22, 1
        %s233 = scalar_select %p232, %s22, 1
        %p234 = scmp.lt.s32.totalorder %s231, 7
        %s235 = scalar_select %p234, %s231, 7
        %s236 = smul.addr %s233, 8
        %s237 = sadd.s32 %s235, %s236
        %s238 = smul.addr %s237, 4
        %s239 = scalar_lea.vmem %s0, %s238
        %s240 = smul.u32 4, %s23
        %p241 = scmp.lt.s32.totalorder %s22, 1
        %s242 = scalar_select %p241, %s22, 1
        %s243 = smul.addr %s242, 32
        %s244 = smul.addr %s243, 8
        %s245 = scalar_lea.vmem %s1, %s244
        %s246 = smul.u32 4, %s23
        %v247 = vld [vmem:[%s239] sm:$0x77]
        %v248 = vld [vmem:[%s239 + $0x8] sm:$0x77]
        %v249 = vld [vmem:[%s245] sm:$0xff]
        %v250 = vld [vmem:[%s245 + $0x8] sm:$0xff]
        %v251 = vld [vmem:[%s245 + $0x10] sm:$0xff]
        %v252 = vld [vmem:[%s245 + $0x18] sm:$0xff]
        %v253 = vld [vmem:[%s245 + $0x20] sm:$0xff]
        %v254 = vld [vmem:[%s245 + $0x28] sm:$0xff]
        %v255 = vld [vmem:[%s245 + $0x30] sm:$0xff]
        %v256 = vld [vmem:[%s245 + $0x38] sm:$0xff]
        %v257 = vld [vmem:[%s245 + $0x40] sm:$0xff]
        %v258 = vld [vmem:[%s245 + $0x48] sm:$0xff]
        %v259 = vld [vmem:[%s245 + $0x50] sm:$0xff]
        %v260 = vld [vmem:[%s245 + $0x58] sm:$0xff]
        %v261 = vld [vmem:[%s245 + $0x60] sm:$0xff]
        %v262 = vld [vmem:[%s245 + $0x68] sm:$0xff]
        %v263 = vld [vmem:[%s245 + $0x70] sm:$0xff]
        %v264 = vld [vmem:[%s245 + $0x78] sm:$0xff]
        %v265 = vld [vmem:[%s245 + $0x80] sm:$0xff]
        %v266 = vld [vmem:[%s245 + $0x88] sm:$0xff]
        %v267 = vld [vmem:[%s245 + $0x90] sm:$0xff]
        %v268 = vld [vmem:[%s245 + $0x98] sm:$0xff]
        %v269 = vld [vmem:[%s245 + $0xa0] sm:$0xff]
        %v270 = vld [vmem:[%s245 + $0xa8] sm:$0xff]
        %v271 = vld [vmem:[%s245 + $0xb0] sm:$0xff]
        %v272 = vld [vmem:[%s245 + $0xb8] sm:$0xff]
        %v273 = vld [vmem:[%s245 + $0xc0] sm:$0xff]
        %v274 = vld [vmem:[%s245 + $0xc8] sm:$0xff]
        %v275 = vld [vmem:[%s245 + $0xd0] sm:$0xff]
        %v276 = vld [vmem:[%s245 + $0xd8] sm:$0xff]
        %v277 = vld [vmem:[%s245 + $0xe0] sm:$0xff]
        %v278 = vld [vmem:[%s245 + $0xe8] sm:$0xff]
        %v279 = vld [vmem:[%s245 + $0xf0] sm:$0xff]
        %v280 = vld [vmem:[%s245 + $0xf8] sm:$0xff]
        %282 = vset.pattern.permute.xlu0 0
        %283 = vperm.xlu0 %282, %v249
        %v284 = vpop.permute.xlu0 %283
        %287 = vset.pattern.permute.xlu0 0
        %288 = vperm.xlu0 %287, %v250
        %v289 = vpop.permute.xlu0 %288
        %292 = vset.pattern.permute.xlu0 0
        %293 = vperm.xlu0 %292, %v251
        %v294 = vpop.permute.xlu0 %293
        %297 = vset.pattern.permute.xlu0 0
        %298 = vperm.xlu0 %297, %v252
        %v299 = vpop.permute.xlu0 %298
        %302 = vset.pattern.permute.xlu0 0
        %303 = vperm.xlu0 %302, %v253
        %v304 = vpop.permute.xlu0 %303
        %307 = vset.pattern.permute.xlu0 0
        %308 = vperm.xlu0 %307, %v254
        %v309 = vpop.permute.xlu0 %308
        %312 = vset.pattern.permute.xlu0 0
        %313 = vperm.xlu0 %312, %v255
        %v314 = vpop.permute.xlu0 %313
        %317 = vset.pattern.permute.xlu0 0
        %318 = vperm.xlu0 %317, %v256
        %v319 = vpop.permute.xlu0 %318
        %322 = vset.pattern.permute.xlu0 0
        %323 = vperm.xlu0 %322, %v257
        %v324 = vpop.permute.xlu0 %323
        %327 = vset.pattern.permute.xlu0 0
        %328 = vperm.xlu0 %327, %v258
        %v329 = vpop.permute.xlu0 %328
        %332 = vset.pattern.permute.xlu0 0
        %333 = vperm.xlu0 %332, %v259
        %v334 = vpop.permute.xlu0 %333
        %337 = vset.pattern.permute.xlu0 0
        %338 = vperm.xlu0 %337, %v260
        %v339 = vpop.permute.xlu0 %338
        %342 = vset.pattern.permute.xlu0 0
        %343 = vperm.xlu0 %342, %v261
        %v344 = vpop.permute.xlu0 %343
        %347 = vset.pattern.permute.xlu0 0
        %348 = vperm.xlu0 %347, %v262
        %v349 = vpop.permute.xlu0 %348
        %352 = vset.pattern.permute.xlu0 0
        %353 = vperm.xlu0 %352, %v263
        %v354 = vpop.permute.xlu0 %353
        %357 = vset.pattern.permute.xlu0 0
        %358 = vperm.xlu0 %357, %v264
        %v359 = vpop.permute.xlu0 %358
        %362 = vset.pattern.permute.xlu0 0
        %363 = vperm.xlu0 %362, %v265
        %v364 = vpop.permute.xlu0 %363
        %367 = vset.pattern.permute.xlu0 0
        %368 = vperm.xlu0 %367, %v266
        %v369 = vpop.permute.xlu0 %368
        %372 = vset.pattern.permute.xlu0 0
        %373 = vperm.xlu0 %372, %v267
        %v374 = vpop.permute.xlu0 %373
        %377 = vset.pattern.permute.xlu0 0
        %378 = vperm.xlu0 %377, %v268
        %v379 = vpop.permute.xlu0 %378
        %382 = vset.pattern.permute.xlu0 0
        %383 = vperm.xlu0 %382, %v269
        %v384 = vpop.permute.xlu0 %383
        %387 = vset.pattern.permute.xlu0 0
        %388 = vperm.xlu0 %387, %v270
        %v389 = vpop.permute.xlu0 %388
        %392 = vset.pattern.permute.xlu0 0
        %393 = vperm.xlu0 %392, %v271
        %v394 = vpop.permute.xlu0 %393
        %397 = vset.pattern.permute.xlu0 0
        %398 = vperm.xlu0 %397, %v272
        %v399 = vpop.permute.xlu0 %398
        %402 = vset.pattern.permute.xlu0 0
        %403 = vperm.xlu0 %402, %v273
        %v404 = vpop.permute.xlu0 %403
        %407 = vset.pattern.permute.xlu0 0
        %408 = vperm.xlu0 %407, %v274
        %v409 = vpop.permute.xlu0 %408
        %412 = vset.pattern.permute.xlu0 0
        %413 = vperm.xlu0 %412, %v275
        %v414 = vpop.permute.xlu0 %413
        %417 = vset.pattern.permute.xlu0 0
        %418 = vperm.xlu0 %417, %v276
        %v419 = vpop.permute.xlu0 %418
        %422 = vset.pattern.permute.xlu0 0
        %423 = vperm.xlu0 %422, %v277
        %v424 = vpop.permute.xlu0 %423
        %427 = vset.pattern.permute.xlu0 0
        %428 = vperm.xlu0 %427, %v278
        %v429 = vpop.permute.xlu0 %428
        %432 = vset.pattern.permute.xlu0 0
        %433 = vperm.xlu0 %432, %v279
        %v434 = vpop.permute.xlu0 %433
        %437 = vset.pattern.permute.xlu0 0
        %438 = vperm.xlu0 %437, %v280
        %v439 = vpop.permute.xlu0 %438
        %v443 = vlaneseq
        %v444 = vshrl.u32 %v443, 7
        %v445 = vsub.s32 0, %v444
        %v446 = vrot.slane %v247, %v445
        %v447 = vlaneseq
        %v448 = vshrl.u32 %v447, 7
        %v449 = vsub.s32 4, %v448
        %v450 = vrot.slane %v247, %v449
        %v451 = vlaneseq
        %v452 = vshrl.u32 %v451, 7
        %v453 = vsub.s32 0, %v452
        %v454 = vrot.slane %v248, %v453
        %v455 = vlaneseq
        %v456 = vshrl.u32 %v455, 7
        %v457 = vsub.s32 4, %v456
        %v458 = vrot.slane %v248, %v457
        %v463 = vlaneseq
        %v464 = vshrl.u32 %v463, 7
        %v465 = vsub.s32 0, %v464
        %v466 = vrot.slane %v446, %v465
        %v467 = vlaneseq
        %v468 = vshrl.u32 %v467, 7
        %v469 = vsub.s32 0, %v468
        %v470 = vrot.slane %v450, %v469
        %v471 = vlaneseq
        %v472 = vshrl.u32 %v471, 7
        %v473 = vsub.s32 0, %v472
        %v474 = vrot.slane %v454, %v473
        %v475 = vlaneseq
        %v476 = vshrl.u32 %v475, 7
        %v477 = vsub.s32 0, %v476
        %v478 = vrot.slane %v458, %v477
        %v479 = vmul.f32 %v284, %v466
        %v480 = vmul.f32 %v284, %v470
        %v481 = vmul.f32 %v284, %v474
        %v482 = vmul.f32 %v284, %v478
        %v483 = vmul.f32 %v289, %v466
        %v484 = vmul.f32 %v289, %v470
        %v485 = vmul.f32 %v289, %v474
        %v486 = vmul.f32 %v289, %v478
        %v487 = vmul.f32 %v294, %v466
        %v488 = vmul.f32 %v294, %v470
        %v489 = vmul.f32 %v294, %v474
        %v490 = vmul.f32 %v294, %v478
        %v491 = vmul.f32 %v299, %v466
        %v492 = vmul.f32 %v299, %v470
        %v493 = vmul.f32 %v299, %v474
        %v494 = vmul.f32 %v299, %v478
        %v495 = vmul.f32 %v304, %v466
        %v496 = vmul.f32 %v304, %v470
        %v497 = vmul.f32 %v304, %v474
        %v498 = vmul.f32 %v304, %v478
        %v499 = vmul.f32 %v309, %v466
        %v500 = vmul.f32 %v309, %v470
        %v501 = vmul.f32 %v309, %v474
        %v502 = vmul.f32 %v309, %v478
        %v503 = vmul.f32 %v314, %v466
        %v504 = vmul.f32 %v314, %v470
        %v505 = vmul.f32 %v314, %v474
        %v506 = vmul.f32 %v314, %v478
        %v507 = vmul.f32 %v319, %v466
        %v508 = vmul.f32 %v319, %v470
        %v509 = vmul.f32 %v319, %v474
        %v510 = vmul.f32 %v319, %v478
        %v511 = vmul.f32 %v324, %v466
        %v512 = vmul.f32 %v324, %v470
        %v513 = vmul.f32 %v324, %v474
        %v514 = vmul.f32 %v324, %v478
        %v515 = vmul.f32 %v329, %v466
        %v516 = vmul.f32 %v329, %v470
        %v517 = vmul.f32 %v329, %v474
        %v518 = vmul.f32 %v329, %v478
        %v519 = vmul.f32 %v334, %v466
        %v520 = vmul.f32 %v334, %v470
        %v521 = vmul.f32 %v334, %v474
        %v522 = vmul.f32 %v334, %v478
        %v523 = vmul.f32 %v339, %v466
        %v524 = vmul.f32 %v339, %v470
        %v525 = vmul.f32 %v339, %v474
        %v526 = vmul.f32 %v339, %v478
        %v527 = vmul.f32 %v344, %v466
        %v528 = vmul.f32 %v344, %v470
        %v529 = vmul.f32 %v344, %v474
        %v530 = vmul.f32 %v344, %v478
        %v531 = vmul.f32 %v349, %v466
        %v532 = vmul.f32 %v349, %v470
        %v533 = vmul.f32 %v349, %v474
        %v534 = vmul.f32 %v349, %v478
        %v535 = vmul.f32 %v354, %v466
        %v536 = vmul.f32 %v354, %v470
        %v537 = vmul.f32 %v354, %v474
        %v538 = vmul.f32 %v354, %v478
        %v539 = vmul.f32 %v359, %v466
        %v540 = vmul.f32 %v359, %v470
        %v541 = vmul.f32 %v359, %v474
        %v542 = vmul.f32 %v359, %v478
        %v543 = vmul.f32 %v364, %v466
        %v544 = vmul.f32 %v364, %v470
        %v545 = vmul.f32 %v364, %v474
        %v546 = vmul.f32 %v364, %v478
        %v547 = vmul.f32 %v369, %v466
        %v548 = vmul.f32 %v369, %v470
        %v549 = vmul.f32 %v369, %v474
        %v550 = vmul.f32 %v369, %v478
        %v551 = vmul.f32 %v374, %v466
        %v552 = vmul.f32 %v374, %v470
        %v553 = vmul.f32 %v374, %v474
        %v554 = vmul.f32 %v374, %v478
        %v555 = vmul.f32 %v379, %v466
        %v556 = vmul.f32 %v379, %v470
        %v557 = vmul.f32 %v379, %v474
        %v558 = vmul.f32 %v379, %v478
        %v559 = vmul.f32 %v384, %v466
        %v560 = vmul.f32 %v384, %v470
        %v561 = vmul.f32 %v384, %v474
        %v562 = vmul.f32 %v384, %v478
        %v563 = vmul.f32 %v389, %v466
        %v564 = vmul.f32 %v389, %v470
        %v565 = vmul.f32 %v389, %v474
        %v566 = vmul.f32 %v389, %v478
        %v567 = vmul.f32 %v394, %v466
        %v568 = vmul.f32 %v394, %v470
        %v569 = vmul.f32 %v394, %v474
        %v570 = vmul.f32 %v394, %v478
        %v571 = vmul.f32 %v399, %v466
        %v572 = vmul.f32 %v399, %v470
        %v573 = vmul.f32 %v399, %v474
        %v574 = vmul.f32 %v399, %v478
        %v575 = vmul.f32 %v404, %v466
        %v576 = vmul.f32 %v404, %v470
        %v577 = vmul.f32 %v404, %v474
        %v578 = vmul.f32 %v404, %v478
        %v579 = vmul.f32 %v409, %v466
        %v580 = vmul.f32 %v409, %v470
        %v581 = vmul.f32 %v409, %v474
        %v582 = vmul.f32 %v409, %v478
        %v583 = vmul.f32 %v414, %v466
        %v584 = vmul.f32 %v414, %v470
        %v585 = vmul.f32 %v414, %v474
        %v586 = vmul.f32 %v414, %v478
        %v587 = vmul.f32 %v419, %v466
        %v588 = vmul.f32 %v419, %v470
        %v589 = vmul.f32 %v419, %v474
        %v590 = vmul.f32 %v419, %v478
        %v591 = vmul.f32 %v424, %v466
        %v592 = vmul.f32 %v424, %v470
        %v593 = vmul.f32 %v424, %v474
        %v594 = vmul.f32 %v424, %v478
        %v595 = vmul.f32 %v429, %v466
        %v596 = vmul.f32 %v429, %v470
        %v597 = vmul.f32 %v429, %v474
        %v598 = vmul.f32 %v429, %v478
        %v599 = vmul.f32 %v434, %v466
        %v600 = vmul.f32 %v434, %v470
        %v601 = vmul.f32 %v434, %v474
        %v602 = vmul.f32 %v434, %v478
        %v603 = vmul.f32 %v439, %v466
        %v604 = vmul.f32 %v439, %v470
        %v605 = vmul.f32 %v439, %v474
        %v606 = vmul.f32 %v439, %v478
        %607 = vset.pattern.permute.xlu0 1
        %608 = vperm.xlu0 %607, %v249
        %v609 = vpop.permute.xlu0 %608
        %611 = vset.pattern.permute.xlu0 1
        %612 = vperm.xlu0 %611, %v250
        %v613 = vpop.permute.xlu0 %612
        %615 = vset.pattern.permute.xlu0 1
        %616 = vperm.xlu0 %615, %v251
        %v617 = vpop.permute.xlu0 %616
        %619 = vset.pattern.permute.xlu0 1
        %620 = vperm.xlu0 %619, %v252
        %v621 = vpop.permute.xlu0 %620
        %623 = vset.pattern.permute.xlu0 1
        %624 = vperm.xlu0 %623, %v253
        %v625 = vpop.permute.xlu0 %624
        %627 = vset.pattern.permute.xlu0 1
        %628 = vperm.xlu0 %627, %v254
        %v629 = vpop.permute.xlu0 %628
        %631 = vset.pattern.permute.xlu0 1
        %632 = vperm.xlu0 %631, %v255
        %v633 = vpop.permute.xlu0 %632
        %635 = vset.pattern.permute.xlu0 1
        %636 = vperm.xlu0 %635, %v256
        %v637 = vpop.permute.xlu0 %636
        %639 = vset.pattern.permute.xlu0 1
        %640 = vperm.xlu0 %639, %v257
        %v641 = vpop.permute.xlu0 %640
        %643 = vset.pattern.permute.xlu0 1
        %644 = vperm.xlu0 %643, %v258
        %v645 = vpop.permute.xlu0 %644
        %647 = vset.pattern.permute.xlu0 1
        %648 = vperm.xlu0 %647, %v259
        %v649 = vpop.permute.xlu0 %648
        %651 = vset.pattern.permute.xlu0 1
        %652 = vperm.xlu0 %651, %v260
        %v653 = vpop.permute.xlu0 %652
        %655 = vset.pattern.permute.xlu0 1
        %656 = vperm.xlu0 %655, %v261
        %v657 = vpop.permute.xlu0 %656
        %659 = vset.pattern.permute.xlu0 1
        %660 = vperm.xlu0 %659, %v262
        %v661 = vpop.permute.xlu0 %660
        %663 = vset.pattern.permute.xlu0 1
        %664 = vperm.xlu0 %663, %v263
        %v665 = vpop.permute.xlu0 %664
        %667 = vset.pattern.permute.xlu0 1
        %668 = vperm.xlu0 %667, %v264
        %v669 = vpop.permute.xlu0 %668
        %671 = vset.pattern.permute.xlu0 1
        %672 = vperm.xlu0 %671, %v265
        %v673 = vpop.permute.xlu0 %672
        %675 = vset.pattern.permute.xlu0 1
        %676 = vperm.xlu0 %675, %v266
        %v677 = vpop.permute.xlu0 %676
        %679 = vset.pattern.permute.xlu0 1
        %680 = vperm.xlu0 %679, %v267
        %v681 = vpop.permute.xlu0 %680
        %683 = vset.pattern.permute.xlu0 1
        %684 = vperm.xlu0 %683, %v268
        %v685 = vpop.permute.xlu0 %684
        %687 = vset.pattern.permute.xlu0 1
        %688 = vperm.xlu0 %687, %v269
        %v689 = vpop.permute.xlu0 %688
        %691 = vset.pattern.permute.xlu0 1
        %692 = vperm.xlu0 %691, %v270
        %v693 = vpop.permute.xlu0 %692
        %695 = vset.pattern.permute.xlu0 1
        %696 = vperm.xlu0 %695, %v271
        %v697 = vpop.permute.xlu0 %696
        %699 = vset.pattern.permute.xlu0 1
        %700 = vperm.xlu0 %699, %v272
        %v701 = vpop.permute.xlu0 %700
        %703 = vset.pattern.permute.xlu0 1
        %704 = vperm.xlu0 %703, %v273
        %v705 = vpop.permute.xlu0 %704
        %707 = vset.pattern.permute.xlu0 1
        %708 = vperm.xlu0 %707, %v274
        %v709 = vpop.permute.xlu0 %708
        %711 = vset.pattern.permute.xlu0 1
        %712 = vperm.xlu0 %711, %v275
        %v713 = vpop.permute.xlu0 %712
        %715 = vset.pattern.permute.xlu0 1
        %716 = vperm.xlu0 %715, %v276
        %v717 = vpop.permute.xlu0 %716
        %719 = vset.pattern.permute.xlu0 1
        %720 = vperm.xlu0 %719, %v277
        %v721 = vpop.permute.xlu0 %720
        %723 = vset.pattern.permute.xlu0 1
        %724 = vperm.xlu0 %723, %v278
        %v725 = vpop.permute.xlu0 %724
        %727 = vset.pattern.permute.xlu0 1
        %728 = vperm.xlu0 %727, %v279
        %v729 = vpop.permute.xlu0 %728
        %731 = vset.pattern.permute.xlu0 1
        %732 = vperm.xlu0 %731, %v280
        %v733 = vpop.permute.xlu0 %732
        %v735 = vlaneseq
        %v736 = vshrl.u32 %v735, 7
        %v737 = vsub.s32 1, %v736
        %v738 = vrot.slane %v247, %v737
        %v739 = vlaneseq
        %v740 = vshrl.u32 %v739, 7
        %v741 = vsub.s32 5, %v740
        %v742 = vrot.slane %v247, %v741
        %v743 = vlaneseq
        %v744 = vshrl.u32 %v743, 7
        %v745 = vsub.s32 1, %v744
        %v746 = vrot.slane %v248, %v745
        %v747 = vlaneseq
        %v748 = vshrl.u32 %v747, 7
        %v749 = vsub.s32 5, %v748
        %v750 = vrot.slane %v248, %v749
        %v755 = vlaneseq
        %v756 = vshrl.u32 %v755, 7
        %v757 = vsub.s32 1, %v756
        %v758 = vrot.slane %v738, %v757
        %v759 = vlaneseq
        %v760 = vshrl.u32 %v759, 7
        %v761 = vsub.s32 1, %v760
        %v762 = vrot.slane %v742, %v761
        %v763 = vlaneseq
        %v764 = vshrl.u32 %v763, 7
        %v765 = vsub.s32 1, %v764
        %v766 = vrot.slane %v746, %v765
        %v767 = vlaneseq
        %v768 = vshrl.u32 %v767, 7
        %v769 = vsub.s32 1, %v768
        %v770 = vrot.slane %v750, %v769
        %v771 = vmul.f32 %v609, %v758
        %v772 = vmul.f32 %v609, %v762
        %v773 = vmul.f32 %v609, %v766
        %v774 = vmul.f32 %v609, %v770
        %v775 = vmul.f32 %v613, %v758
        %v776 = vmul.f32 %v613, %v762
        %v777 = vmul.f32 %v613, %v766
        %v778 = vmul.f32 %v613, %v770
        %v779 = vmul.f32 %v617, %v758
        %v780 = vmul.f32 %v617, %v762
        %v781 = vmul.f32 %v617, %v766
        %v782 = vmul.f32 %v617, %v770
        %v783 = vmul.f32 %v621, %v758
        %v784 = vmul.f32 %v621, %v762
        %v785 = vmul.f32 %v621, %v766
        %v786 = vmul.f32 %v621, %v770
        %v787 = vmul.f32 %v625, %v758
        %v788 = vmul.f32 %v625, %v762
        %v789 = vmul.f32 %v625, %v766
        %v790 = vmul.f32 %v625, %v770
        %v791 = vmul.f32 %v629, %v758
        %v792 = vmul.f32 %v629, %v762
        %v793 = vmul.f32 %v629, %v766
        %v794 = vmul.f32 %v629, %v770
        %v795 = vmul.f32 %v633, %v758
        %v796 = vmul.f32 %v633, %v762
        %v797 = vmul.f32 %v633, %v766
        %v798 = vmul.f32 %v633, %v770
        %v799 = vmul.f32 %v637, %v758
        %v800 = vmul.f32 %v637, %v762
        %v801 = vmul.f32 %v637, %v766
        %v802 = vmul.f32 %v637, %v770
        %v803 = vmul.f32 %v641, %v758
        %v804 = vmul.f32 %v641, %v762
        %v805 = vmul.f32 %v641, %v766
        %v806 = vmul.f32 %v641, %v770
        %v807 = vmul.f32 %v645, %v758
        %v808 = vmul.f32 %v645, %v762
        %v809 = vmul.f32 %v645, %v766
        %v810 = vmul.f32 %v645, %v770
        %v811 = vmul.f32 %v649, %v758
        %v812 = vmul.f32 %v649, %v762
        %v813 = vmul.f32 %v649, %v766
        %v814 = vmul.f32 %v649, %v770
        %v815 = vmul.f32 %v653, %v758
        %v816 = vmul.f32 %v653, %v762
        %v817 = vmul.f32 %v653, %v766
        %v818 = vmul.f32 %v653, %v770
        %v819 = vmul.f32 %v657, %v758
        %v820 = vmul.f32 %v657, %v762
        %v821 = vmul.f32 %v657, %v766
        %v822 = vmul.f32 %v657, %v770
        %v823 = vmul.f32 %v661, %v758
        %v824 = vmul.f32 %v661, %v762
        %v825 = vmul.f32 %v661, %v766
        %v826 = vmul.f32 %v661, %v770
        %v827 = vmul.f32 %v665, %v758
        %v828 = vmul.f32 %v665, %v762
        %v829 = vmul.f32 %v665, %v766
        %v830 = vmul.f32 %v665, %v770
        %v831 = vmul.f32 %v669, %v758
        %v832 = vmul.f32 %v669, %v762
        %v833 = vmul.f32 %v669, %v766
        %v834 = vmul.f32 %v669, %v770
        %v835 = vmul.f32 %v673, %v758
        %v836 = vmul.f32 %v673, %v762
        %v837 = vmul.f32 %v673, %v766
        %v838 = vmul.f32 %v673, %v770
        %v839 = vmul.f32 %v677, %v758
        %v840 = vmul.f32 %v677, %v762
        %v841 = vmul.f32 %v677, %v766
        %v842 = vmul.f32 %v677, %v770
        %v843 = vmul.f32 %v681, %v758
        %v844 = vmul.f32 %v681, %v762
        %v845 = vmul.f32 %v681, %v766
        %v846 = vmul.f32 %v681, %v770
        %v847 = vmul.f32 %v685, %v758
        %v848 = vmul.f32 %v685, %v762
        %v849 = vmul.f32 %v685, %v766
        %v850 = vmul.f32 %v685, %v770
        %v851 = vmul.f32 %v689, %v758
        %v852 = vmul.f32 %v689, %v762
        %v853 = vmul.f32 %v689, %v766
        %v854 = vmul.f32 %v689, %v770
        %v855 = vmul.f32 %v693, %v758
        %v856 = vmul.f32 %v693, %v762
        %v857 = vmul.f32 %v693, %v766
        %v858 = vmul.f32 %v693, %v770
        %v859 = vmul.f32 %v697, %v758
        %v860 = vmul.f32 %v697, %v762
        %v861 = vmul.f32 %v697, %v766
        %v862 = vmul.f32 %v697, %v770
        %v863 = vmul.f32 %v701, %v758
        %v864 = vmul.f32 %v701, %v762
        %v865 = vmul.f32 %v701, %v766
        %v866 = vmul.f32 %v701, %v770
        %v867 = vmul.f32 %v705, %v758
        %v868 = vmul.f32 %v705, %v762
        %v869 = vmul.f32 %v705, %v766
        %v870 = vmul.f32 %v705, %v770
        %v871 = vmul.f32 %v709, %v758
        %v872 = vmul.f32 %v709, %v762
        %v873 = vmul.f32 %v709, %v766
        %v874 = vmul.f32 %v709, %v770
        %v875 = vmul.f32 %v713, %v758
        %v876 = vmul.f32 %v713, %v762
        %v877 = vmul.f32 %v713, %v766
        %v878 = vmul.f32 %v713, %v770
        %v879 = vmul.f32 %v717, %v758
        %v880 = vmul.f32 %v717, %v762
        %v881 = vmul.f32 %v717, %v766
        %v882 = vmul.f32 %v717, %v770
        %v883 = vmul.f32 %v721, %v758
        %v884 = vmul.f32 %v721, %v762
        %v885 = vmul.f32 %v721, %v766
        %v886 = vmul.f32 %v721, %v770
        %v887 = vmul.f32 %v725, %v758
        %v888 = vmul.f32 %v725, %v762
        %v889 = vmul.f32 %v725, %v766
        %v890 = vmul.f32 %v725, %v770
        %v891 = vmul.f32 %v729, %v758
        %v892 = vmul.f32 %v729, %v762
        %v893 = vmul.f32 %v729, %v766
        %v894 = vmul.f32 %v729, %v770
        %v895 = vmul.f32 %v733, %v758
        %v896 = vmul.f32 %v733, %v762
        %v897 = vmul.f32 %v733, %v766
        %v898 = vmul.f32 %v733, %v770
        %v899 = vadd.f32 %v479, %v771
        %v900 = vadd.f32 %v480, %v772
        %v901 = vadd.f32 %v481, %v773
        %v902 = vadd.f32 %v482, %v774
        %v903 = vadd.f32 %v483, %v775
        %v904 = vadd.f32 %v484, %v776
        %v905 = vadd.f32 %v485, %v777
        %v906 = vadd.f32 %v486, %v778
        %v907 = vadd.f32 %v487, %v779
        %v908 = vadd.f32 %v488, %v780
        %v909 = vadd.f32 %v489, %v781
        %v910 = vadd.f32 %v490, %v782
        %v911 = vadd.f32 %v491, %v783
        %v912 = vadd.f32 %v492, %v784
        %v913 = vadd.f32 %v493, %v785
        %v914 = vadd.f32 %v494, %v786
        %v915 = vadd.f32 %v495, %v787
        %v916 = vadd.f32 %v496, %v788
        %v917 = vadd.f32 %v497, %v789
        %v918 = vadd.f32 %v498, %v790
        %v919 = vadd.f32 %v499, %v791
        %v920 = vadd.f32 %v500, %v792
        %v921 = vadd.f32 %v501, %v793
        %v922 = vadd.f32 %v502, %v794
        %v923 = vadd.f32 %v503, %v795
        %v924 = vadd.f32 %v504, %v796
        %v925 = vadd.f32 %v505, %v797
        %v926 = vadd.f32 %v506, %v798
        %v927 = vadd.f32 %v507, %v799
        %v928 = vadd.f32 %v508, %v800
        %v929 = vadd.f32 %v509, %v801
        %v930 = vadd.f32 %v510, %v802
        %v931 = vadd.f32 %v511, %v803
        %v932 = vadd.f32 %v512, %v804
        %v933 = vadd.f32 %v513, %v805
        %v934 = vadd.f32 %v514, %v806
        %v935 = vadd.f32 %v515, %v807
        %v936 = vadd.f32 %v516, %v808
        %v937 = vadd.f32 %v517, %v809
        %v938 = vadd.f32 %v518, %v810
        %v939 = vadd.f32 %v519, %v811
        %v940 = vadd.f32 %v520, %v812
        %v941 = vadd.f32 %v521, %v813
        %v942 = vadd.f32 %v522, %v814
        %v943 = vadd.f32 %v523, %v815
        %v944 = vadd.f32 %v524, %v816
        %v945 = vadd.f32 %v525, %v817
        %v946 = vadd.f32 %v526, %v818
        %v947 = vadd.f32 %v527, %v819
        %v948 = vadd.f32 %v528, %v820
        %v949 = vadd.f32 %v529, %v821
        %v950 = vadd.f32 %v530, %v822
        %v951 = vadd.f32 %v531, %v823
        %v952 = vadd.f32 %v532, %v824
        %v953 = vadd.f32 %v533, %v825
        %v954 = vadd.f32 %v534, %v826
        %v955 = vadd.f32 %v535, %v827
        %v956 = vadd.f32 %v536, %v828
        %v957 = vadd.f32 %v537, %v829
        %v958 = vadd.f32 %v538, %v830
        %v959 = vadd.f32 %v539, %v831
        %v960 = vadd.f32 %v540, %v832
        %v961 = vadd.f32 %v541, %v833
        %v962 = vadd.f32 %v542, %v834
        %v963 = vadd.f32 %v543, %v835
        %v964 = vadd.f32 %v544, %v836
        %v965 = vadd.f32 %v545, %v837
        %v966 = vadd.f32 %v546, %v838
        %v967 = vadd.f32 %v547, %v839
        %v968 = vadd.f32 %v548, %v840
        %v969 = vadd.f32 %v549, %v841
        %v970 = vadd.f32 %v550, %v842
        %v971 = vadd.f32 %v551, %v843
        %v972 = vadd.f32 %v552, %v844
        %v973 = vadd.f32 %v553, %v845
        %v974 = vadd.f32 %v554, %v846
        %v975 = vadd.f32 %v555, %v847
        %v976 = vadd.f32 %v556, %v848
        %v977 = vadd.f32 %v557, %v849
        %v978 = vadd.f32 %v558, %v850
        %v979 = vadd.f32 %v559, %v851
        %v980 = vadd.f32 %v560, %v852
        %v981 = vadd.f32 %v561, %v853
        %v982 = vadd.f32 %v562, %v854
        %v983 = vadd.f32 %v563, %v855
        %v984 = vadd.f32 %v564, %v856
        %v985 = vadd.f32 %v565, %v857
        %v986 = vadd.f32 %v566, %v858
        %v987 = vadd.f32 %v567, %v859
        %v988 = vadd.f32 %v568, %v860
        %v989 = vadd.f32 %v569, %v861
        %v990 = vadd.f32 %v570, %v862
        %v991 = vadd.f32 %v571, %v863
        %v992 = vadd.f32 %v572, %v864
        %v993 = vadd.f32 %v573, %v865
        %v994 = vadd.f32 %v574, %v866
        %v995 = vadd.f32 %v575, %v867
        %v996 = vadd.f32 %v576, %v868
        %v997 = vadd.f32 %v577, %v869
        %v998 = vadd.f32 %v578, %v870
        %v999 = vadd.f32 %v579, %v871
        %v1000 = vadd.f32 %v580, %v872
        %v1001 = vadd.f32 %v581, %v873
        %v1002 = vadd.f32 %v582, %v874
        %v1003 = vadd.f32 %v583, %v875
        %v1004 = vadd.f32 %v584, %v876
        %v1005 = vadd.f32 %v585, %v877
        %v1006 = vadd.f32 %v586, %v878
        %v1007 = vadd.f32 %v587, %v879
        %v1008 = vadd.f32 %v588, %v880
        %v1009 = vadd.f32 %v589, %v881
        %v1010 = vadd.f32 %v590, %v882
        %v1011 = vadd.f32 %v591, %v883
        %v1012 = vadd.f32 %v592, %v884
        %v1013 = vadd.f32 %v593, %v885
        %v1014 = vadd.f32 %v594, %v886
        %v1015 = vadd.f32 %v595, %v887
        %v1016 = vadd.f32 %v596, %v888
        %v1017 = vadd.f32 %v597, %v889
        %v1018 = vadd.f32 %v598, %v890
        %v1019 = vadd.f32 %v599, %v891
        %v1020 = vadd.f32 %v600, %v892
        %v1021 = vadd.f32 %v601, %v893
        %v1022 = vadd.f32 %v602, %v894
        %v1023 = vadd.f32 %v603, %v895
        %v1024 = vadd.f32 %v604, %v896
        %v1025 = vadd.f32 %v605, %v897
        %v1026 = vadd.f32 %v606, %v898
        %1027 = vset.pattern.permute.xlu0 2
        %1028 = vperm.xlu0 %1027, %v249
        %v1029 = vpop.permute.xlu0 %1028
        %1031 = vset.pattern.permute.xlu0 2
        %1032 = vperm.xlu0 %1031, %v250
        %v1033 = vpop.permute.xlu0 %1032
        %1035 = vset.pattern.permute.xlu0 2
        %1036 = vperm.xlu0 %1035, %v251
        %v1037 = vpop.permute.xlu0 %1036
        %1039 = vset.pattern.permute.xlu0 2
        %1040 = vperm.xlu0 %1039, %v252
        %v1041 = vpop.permute.xlu0 %1040
        %1043 = vset.pattern.permute.xlu0 2
        %1044 = vperm.xlu0 %1043, %v253
        %v1045 = vpop.permute.xlu0 %1044
        %1047 = vset.pattern.permute.xlu0 2
        %1048 = vperm.xlu0 %1047, %v254
        %v1049 = vpop.permute.xlu0 %1048
        %1051 = vset.pattern.permute.xlu0 2
        %1052 = vperm.xlu0 %1051, %v255
        %v1053 = vpop.permute.xlu0 %1052
        %1055 = vset.pattern.permute.xlu0 2
        %1056 = vperm.xlu0 %1055, %v256
        %v1057 = vpop.permute.xlu0 %1056
        %1059 = vset.pattern.permute.xlu0 2
        %1060 = vperm.xlu0 %1059, %v257
        %v1061 = vpop.permute.xlu0 %1060
        %1063 = vset.pattern.permute.xlu0 2
        %1064 = vperm.xlu0 %1063, %v258
        %v1065 = vpop.permute.xlu0 %1064
        %1067 = vset.pattern.permute.xlu0 2
        %1068 = vperm.xlu0 %1067, %v259
        %v1069 = vpop.permute.xlu0 %1068
        %1071 = vset.pattern.permute.xlu0 2
        %1072 = vperm.xlu0 %1071, %v260
        %v1073 = vpop.permute.xlu0 %1072
        %1075 = vset.pattern.permute.xlu0 2
        %1076 = vperm.xlu0 %1075, %v261
        %v1077 = vpop.permute.xlu0 %1076
        %1079 = vset.pattern.permute.xlu0 2
        %1080 = vperm.xlu0 %1079, %v262
        %v1081 = vpop.permute.xlu0 %1080
        %1083 = vset.pattern.permute.xlu0 2
        %1084 = vperm.xlu0 %1083, %v263
        %v1085 = vpop.permute.xlu0 %1084
        %1087 = vset.pattern.permute.xlu0 2
        %1088 = vperm.xlu0 %1087, %v264
        %v1089 = vpop.permute.xlu0 %1088
        %1091 = vset.pattern.permute.xlu0 2
        %1092 = vperm.xlu0 %1091, %v265
        %v1093 = vpop.permute.xlu0 %1092
        %1095 = vset.pattern.permute.xlu0 2
        %1096 = vperm.xlu0 %1095, %v266
        %v1097 = vpop.permute.xlu0 %1096
        %1099 = vset.pattern.permute.xlu0 2
        %1100 = vperm.xlu0 %1099, %v267
        %v1101 = vpop.permute.xlu0 %1100
        %1103 = vset.pattern.permute.xlu0 2
        %1104 = vperm.xlu0 %1103, %v268
        %v1105 = vpop.permute.xlu0 %1104
        %1107 = vset.pattern.permute.xlu0 2
        %1108 = vperm.xlu0 %1107, %v269
        %v1109 = vpop.permute.xlu0 %1108
        %1111 = vset.pattern.permute.xlu0 2
        %1112 = vperm.xlu0 %1111, %v270
        %v1113 = vpop.permute.xlu0 %1112
        %1115 = vset.pattern.permute.xlu0 2
        %1116 = vperm.xlu0 %1115, %v271
        %v1117 = vpop.permute.xlu0 %1116
        %1119 = vset.pattern.permute.xlu0 2
        %1120 = vperm.xlu0 %1119, %v272
        %v1121 = vpop.permute.xlu0 %1120
        %1123 = vset.pattern.permute.xlu0 2
        %1124 = vperm.xlu0 %1123, %v273
        %v1125 = vpop.permute.xlu0 %1124
        %1127 = vset.pattern.permute.xlu0 2
        %1128 = vperm.xlu0 %1127, %v274
        %v1129 = vpop.permute.xlu0 %1128
        %1131 = vset.pattern.permute.xlu0 2
        %1132 = vperm.xlu0 %1131, %v275
        %v1133 = vpop.permute.xlu0 %1132
        %1135 = vset.pattern.permute.xlu0 2
        %1136 = vperm.xlu0 %1135, %v276
        %v1137 = vpop.permute.xlu0 %1136
        %1139 = vset.pattern.permute.xlu0 2
        %1140 = vperm.xlu0 %1139, %v277
        %v1141 = vpop.permute.xlu0 %1140
        %1143 = vset.pattern.permute.xlu0 2
        %1144 = vperm.xlu0 %1143, %v278
        %v1145 = vpop.permute.xlu0 %1144
        %1147 = vset.pattern.permute.xlu0 2
        %1148 = vperm.xlu0 %1147, %v279
        %v1149 = vpop.permute.xlu0 %1148
        %1151 = vset.pattern.permute.xlu0 2
        %1152 = vperm.xlu0 %1151, %v280
        %v1153 = vpop.permute.xlu0 %1152
        %v1155 = vlaneseq
        %v1156 = vshrl.u32 %v1155, 7
        %v1157 = vsub.s32 2, %v1156
        %v1158 = vrot.slane %v247, %v1157
        %v1159 = vlaneseq
        %v1160 = vshrl.u32 %v1159, 7
        %v1161 = vsub.s32 6, %v1160
        %v1162 = vrot.slane %v247, %v1161
        %v1163 = vlaneseq
        %v1164 = vshrl.u32 %v1163, 7
        %v1165 = vsub.s32 2, %v1164
        %v1166 = vrot.slane %v248, %v1165
        %v1167 = vlaneseq
        %v1168 = vshrl.u32 %v1167, 7
        %v1169 = vsub.s32 6, %v1168
        %v1170 = vrot.slane %v248, %v1169
        %v1175 = vlaneseq
        %v1176 = vshrl.u32 %v1175, 7
        %v1177 = vsub.s32 2, %v1176
        %v1178 = vrot.slane %v1158, %v1177
        %v1179 = vlaneseq
        %v1180 = vshrl.u32 %v1179, 7
        %v1181 = vsub.s32 2, %v1180
        %v1182 = vrot.slane %v1162, %v1181
        %v1183 = vlaneseq
        %v1184 = vshrl.u32 %v1183, 7
        %v1185 = vsub.s32 2, %v1184
        %v1186 = vrot.slane %v1166, %v1185
        %v1187 = vlaneseq
        %v1188 = vshrl.u32 %v1187, 7
        %v1189 = vsub.s32 2, %v1188
        %v1190 = vrot.slane %v1170, %v1189
        %v1191 = vmul.f32 %v1029, %v1178
        %v1192 = vmul.f32 %v1029, %v1182
        %v1193 = vmul.f32 %v1029, %v1186
        %v1194 = vmul.f32 %v1029, %v1190
        %v1195 = vmul.f32 %v1033, %v1178
        %v1196 = vmul.f32 %v1033, %v1182
        %v1197 = vmul.f32 %v1033, %v1186
        %v1198 = vmul.f32 %v1033, %v1190
        %v1199 = vmul.f32 %v1037, %v1178
        %v1200 = vmul.f32 %v1037, %v1182
        %v1201 = vmul.f32 %v1037, %v1186
        %v1202 = vmul.f32 %v1037, %v1190
        %v1203 = vmul.f32 %v1041, %v1178
        %v1204 = vmul.f32 %v1041, %v1182
        %v1205 = vmul.f32 %v1041, %v1186
        %v1206 = vmul.f32 %v1041, %v1190
        %v1207 = vmul.f32 %v1045, %v1178
        %v1208 = vmul.f32 %v1045, %v1182
        %v1209 = vmul.f32 %v1045, %v1186
        %v1210 = vmul.f32 %v1045, %v1190
        %v1211 = vmul.f32 %v1049, %v1178
        %v1212 = vmul.f32 %v1049, %v1182
        %v1213 = vmul.f32 %v1049, %v1186
        %v1214 = vmul.f32 %v1049, %v1190
        %v1215 = vmul.f32 %v1053, %v1178
        %v1216 = vmul.f32 %v1053, %v1182
        %v1217 = vmul.f32 %v1053, %v1186
        %v1218 = vmul.f32 %v1053, %v1190
        %v1219 = vmul.f32 %v1057, %v1178
        %v1220 = vmul.f32 %v1057, %v1182
        %v1221 = vmul.f32 %v1057, %v1186
        %v1222 = vmul.f32 %v1057, %v1190
        %v1223 = vmul.f32 %v1061, %v1178
        %v1224 = vmul.f32 %v1061, %v1182
        %v1225 = vmul.f32 %v1061, %v1186
        %v1226 = vmul.f32 %v1061, %v1190
        %v1227 = vmul.f32 %v1065, %v1178
        %v1228 = vmul.f32 %v1065, %v1182
        %v1229 = vmul.f32 %v1065, %v1186
        %v1230 = vmul.f32 %v1065, %v1190
        %v1231 = vmul.f32 %v1069, %v1178
        %v1232 = vmul.f32 %v1069, %v1182
        %v1233 = vmul.f32 %v1069, %v1186
        %v1234 = vmul.f32 %v1069, %v1190
        %v1235 = vmul.f32 %v1073, %v1178
        %v1236 = vmul.f32 %v1073, %v1182
        %v1237 = vmul.f32 %v1073, %v1186
        %v1238 = vmul.f32 %v1073, %v1190
        %v1239 = vmul.f32 %v1077, %v1178
        %v1240 = vmul.f32 %v1077, %v1182
        %v1241 = vmul.f32 %v1077, %v1186
        %v1242 = vmul.f32 %v1077, %v1190
        %v1243 = vmul.f32 %v1081, %v1178
        %v1244 = vmul.f32 %v1081, %v1182
        %v1245 = vmul.f32 %v1081, %v1186
        %v1246 = vmul.f32 %v1081, %v1190
        %v1247 = vmul.f32 %v1085, %v1178
        %v1248 = vmul.f32 %v1085, %v1182
        %v1249 = vmul.f32 %v1085, %v1186
        %v1250 = vmul.f32 %v1085, %v1190
        %v1251 = vmul.f32 %v1089, %v1178
        %v1252 = vmul.f32 %v1089, %v1182
        %v1253 = vmul.f32 %v1089, %v1186
        %v1254 = vmul.f32 %v1089, %v1190
        %v1255 = vmul.f32 %v1093, %v1178
        %v1256 = vmul.f32 %v1093, %v1182
        %v1257 = vmul.f32 %v1093, %v1186
        %v1258 = vmul.f32 %v1093, %v1190
        %v1259 = vmul.f32 %v1097, %v1178
        %v1260 = vmul.f32 %v1097, %v1182
        %v1261 = vmul.f32 %v1097, %v1186
        %v1262 = vmul.f32 %v1097, %v1190
        %v1263 = vmul.f32 %v1101, %v1178
        %v1264 = vmul.f32 %v1101, %v1182
        %v1265 = vmul.f32 %v1101, %v1186
        %v1266 = vmul.f32 %v1101, %v1190
        %v1267 = vmul.f32 %v1105, %v1178
        %v1268 = vmul.f32 %v1105, %v1182
        %v1269 = vmul.f32 %v1105, %v1186
        %v1270 = vmul.f32 %v1105, %v1190
        %v1271 = vmul.f32 %v1109, %v1178
        %v1272 = vmul.f32 %v1109, %v1182
        %v1273 = vmul.f32 %v1109, %v1186
        %v1274 = vmul.f32 %v1109, %v1190
        %v1275 = vmul.f32 %v1113, %v1178
        %v1276 = vmul.f32 %v1113, %v1182
        %v1277 = vmul.f32 %v1113, %v1186
        %v1278 = vmul.f32 %v1113, %v1190
        %v1279 = vmul.f32 %v1117, %v1178
        %v1280 = vmul.f32 %v1117, %v1182
        %v1281 = vmul.f32 %v1117, %v1186
        %v1282 = vmul.f32 %v1117, %v1190
        %v1283 = vmul.f32 %v1121, %v1178
        %v1284 = vmul.f32 %v1121, %v1182
        %v1285 = vmul.f32 %v1121, %v1186
        %v1286 = vmul.f32 %v1121, %v1190
        %v1287 = vmul.f32 %v1125, %v1178
        %v1288 = vmul.f32 %v1125, %v1182
        %v1289 = vmul.f32 %v1125, %v1186
        %v1290 = vmul.f32 %v1125, %v1190
        %v1291 = vmul.f32 %v1129, %v1178
        %v1292 = vmul.f32 %v1129, %v1182
        %v1293 = vmul.f32 %v1129, %v1186
        %v1294 = vmul.f32 %v1129, %v1190
        %v1295 = vmul.f32 %v1133, %v1178
        %v1296 = vmul.f32 %v1133, %v1182
        %v1297 = vmul.f32 %v1133, %v1186
        %v1298 = vmul.f32 %v1133, %v1190
        %v1299 = vmul.f32 %v1137, %v1178
        %v1300 = vmul.f32 %v1137, %v1182
        %v1301 = vmul.f32 %v1137, %v1186
        %v1302 = vmul.f32 %v1137, %v1190
        %v1303 = vmul.f32 %v1141, %v1178
        %v1304 = vmul.f32 %v1141, %v1182
        %v1305 = vmul.f32 %v1141, %v1186
        %v1306 = vmul.f32 %v1141, %v1190
        %v1307 = vmul.f32 %v1145, %v1178
        %v1308 = vmul.f32 %v1145, %v1182
        %v1309 = vmul.f32 %v1145, %v1186
        %v1310 = vmul.f32 %v1145, %v1190
        %v1311 = vmul.f32 %v1149, %v1178
        %v1312 = vmul.f32 %v1149, %v1182
        %v1313 = vmul.f32 %v1149, %v1186
        %v1314 = vmul.f32 %v1149, %v1190
        %v1315 = vmul.f32 %v1153, %v1178
        %v1316 = vmul.f32 %v1153, %v1182
        %v1317 = vmul.f32 %v1153, %v1186
        %v1318 = vmul.f32 %v1153, %v1190
        %v1319 = vadd.f32 %v899, %v1191
        %v1320 = vadd.f32 %v900, %v1192
        %v1321 = vadd.f32 %v901, %v1193
        %v1322 = vadd.f32 %v902, %v1194
        %v1323 = vadd.f32 %v903, %v1195
        %v1324 = vadd.f32 %v904, %v1196
        %v1325 = vadd.f32 %v905, %v1197
        %v1326 = vadd.f32 %v906, %v1198
        %v1327 = vadd.f32 %v907, %v1199
        %v1328 = vadd.f32 %v908, %v1200
        %v1329 = vadd.f32 %v909, %v1201
        %v1330 = vadd.f32 %v910, %v1202
        %v1331 = vadd.f32 %v911, %v1203
        %v1332 = vadd.f32 %v912, %v1204
        %v1333 = vadd.f32 %v913, %v1205
        %v1334 = vadd.f32 %v914, %v1206
        %v1335 = vadd.f32 %v915, %v1207
        %v1336 = vadd.f32 %v916, %v1208
        %v1337 = vadd.f32 %v917, %v1209
        %v1338 = vadd.f32 %v918, %v1210
        %v1339 = vadd.f32 %v919, %v1211
        %v1340 = vadd.f32 %v920, %v1212
        %v1341 = vadd.f32 %v921, %v1213
        %v1342 = vadd.f32 %v922, %v1214
        %v1343 = vadd.f32 %v923, %v1215
        %v1344 = vadd.f32 %v924, %v1216
        %v1345 = vadd.f32 %v925, %v1217
        %v1346 = vadd.f32 %v926, %v1218
        %v1347 = vadd.f32 %v927, %v1219
        %v1348 = vadd.f32 %v928, %v1220
        %v1349 = vadd.f32 %v929, %v1221
        %v1350 = vadd.f32 %v930, %v1222
        %v1351 = vadd.f32 %v931, %v1223
        %v1352 = vadd.f32 %v932, %v1224
        %v1353 = vadd.f32 %v933, %v1225
        %v1354 = vadd.f32 %v934, %v1226
        %v1355 = vadd.f32 %v935, %v1227
        %v1356 = vadd.f32 %v936, %v1228
        %v1357 = vadd.f32 %v937, %v1229
        %v1358 = vadd.f32 %v938, %v1230
        %v1359 = vadd.f32 %v939, %v1231
        %v1360 = vadd.f32 %v940, %v1232
        %v1361 = vadd.f32 %v941, %v1233
        %v1362 = vadd.f32 %v942, %v1234
        %v1363 = vadd.f32 %v943, %v1235
        %v1364 = vadd.f32 %v944, %v1236
        %v1365 = vadd.f32 %v945, %v1237
        %v1366 = vadd.f32 %v946, %v1238
        %v1367 = vadd.f32 %v947, %v1239
        %v1368 = vadd.f32 %v948, %v1240
        %v1369 = vadd.f32 %v949, %v1241
        %v1370 = vadd.f32 %v950, %v1242
        %v1371 = vadd.f32 %v951, %v1243
        %v1372 = vadd.f32 %v952, %v1244
        %v1373 = vadd.f32 %v953, %v1245
        %v1374 = vadd.f32 %v954, %v1246
        %v1375 = vadd.f32 %v955, %v1247
        %v1376 = vadd.f32 %v956, %v1248
        %v1377 = vadd.f32 %v957, %v1249
        %v1378 = vadd.f32 %v958, %v1250
        %v1379 = vadd.f32 %v959, %v1251
        %v1380 = vadd.f32 %v960, %v1252
        %v1381 = vadd.f32 %v961, %v1253
        %v1382 = vadd.f32 %v962, %v1254
        %v1383 = vadd.f32 %v963, %v1255
        %v1384 = vadd.f32 %v964, %v1256
        %v1385 = vadd.f32 %v965, %v1257
        %v1386 = vadd.f32 %v966, %v1258
        %v1387 = vadd.f32 %v967, %v1259
        %v1388 = vadd.f32 %v968, %v1260
        %v1389 = vadd.f32 %v969, %v1261
        %v1390 = vadd.f32 %v970, %v1262
        %v1391 = vadd.f32 %v971, %v1263
        %v1392 = vadd.f32 %v972, %v1264
        %v1393 = vadd.f32 %v973, %v1265
        %v1394 = vadd.f32 %v974, %v1266
        %v1395 = vadd.f32 %v975, %v1267
        %v1396 = vadd.f32 %v976, %v1268
        %v1397 = vadd.f32 %v977, %v1269
        %v1398 = vadd.f32 %v978, %v1270
        %v1399 = vadd.f32 %v979, %v1271
        %v1400 = vadd.f32 %v980, %v1272
        %v1401 = vadd.f32 %v981, %v1273
        %v1402 = vadd.f32 %v982, %v1274
        %v1403 = vadd.f32 %v983, %v1275
        %v1404 = vadd.f32 %v984, %v1276
        %v1405 = vadd.f32 %v985, %v1277
        %v1406 = vadd.f32 %v986, %v1278
        %v1407 = vadd.f32 %v987, %v1279
        %v1408 = vadd.f32 %v988, %v1280
        %v1409 = vadd.f32 %v989, %v1281
        %v1410 = vadd.f32 %v990, %v1282
        %v1411 = vadd.f32 %v991, %v1283
        %v1412 = vadd.f32 %v992, %v1284
        %v1413 = vadd.f32 %v993, %v1285
        %v1414 = vadd.f32 %v994, %v1286
        %v1415 = vadd.f32 %v995, %v1287
        %v1416 = vadd.f32 %v996, %v1288
        %v1417 = vadd.f32 %v997, %v1289
        %v1418 = vadd.f32 %v998, %v1290
        %v1419 = vadd.f32 %v999, %v1291
        %v1420 = vadd.f32 %v1000, %v1292
        %v1421 = vadd.f32 %v1001, %v1293
        %v1422 = vadd.f32 %v1002, %v1294
        %v1423 = vadd.f32 %v1003, %v1295
        %v1424 = vadd.f32 %v1004, %v1296
        %v1425 = vadd.f32 %v1005, %v1297
        %v1426 = vadd.f32 %v1006, %v1298
        %v1427 = vadd.f32 %v1007, %v1299
        %v1428 = vadd.f32 %v1008, %v1300
        %v1429 = vadd.f32 %v1009, %v1301
        %v1430 = vadd.f32 %v1010, %v1302
        %v1431 = vadd.f32 %v1011, %v1303
        %v1432 = vadd.f32 %v1012, %v1304
        %v1433 = vadd.f32 %v1013, %v1305
        %v1434 = vadd.f32 %v1014, %v1306
        %v1435 = vadd.f32 %v1015, %v1307
        %v1436 = vadd.f32 %v1016, %v1308
        %v1437 = vadd.f32 %v1017, %v1309
        %v1438 = vadd.f32 %v1018, %v1310
        %v1439 = vadd.f32 %v1019, %v1311
        %v1440 = vadd.f32 %v1020, %v1312
        %v1441 = vadd.f32 %v1021, %v1313
        %v1442 = vadd.f32 %v1022, %v1314
        %v1443 = vadd.f32 %v1023, %v1315
        %v1444 = vadd.f32 %v1024, %v1316
        %v1445 = vadd.f32 %v1025, %v1317
        %v1446 = vadd.f32 %v1026, %v1318
        %v1447 = vmul.f32 %v1319, %v1319
        %v1448 = vmul.f32 %v1320, %v1320
        %v1449 = vmul.f32 %v1321, %v1321
        %v1450 = vmul.f32 %v1322, %v1322
        %v1451 = vmul.f32 %v1323, %v1323
        %v1452 = vmul.f32 %v1324, %v1324
        %v1453 = vmul.f32 %v1325, %v1325
        %v1454 = vmul.f32 %v1326, %v1326
        %v1455 = vmul.f32 %v1327, %v1327
        %v1456 = vmul.f32 %v1328, %v1328
        %v1457 = vmul.f32 %v1329, %v1329
        %v1458 = vmul.f32 %v1330, %v1330
        %v1459 = vmul.f32 %v1331, %v1331
        %v1460 = vmul.f32 %v1332, %v1332
        %v1461 = vmul.f32 %v1333, %v1333
        %v1462 = vmul.f32 %v1334, %v1334
        %v1463 = vmul.f32 %v1335, %v1335
        %v1464 = vmul.f32 %v1336, %v1336
        %v1465 = vmul.f32 %v1337, %v1337
        %v1466 = vmul.f32 %v1338, %v1338
        %v1467 = vmul.f32 %v1339, %v1339
        %v1468 = vmul.f32 %v1340, %v1340
        %v1469 = vmul.f32 %v1341, %v1341
        %v1470 = vmul.f32 %v1342, %v1342
        %v1471 = vmul.f32 %v1343, %v1343
        %v1472 = vmul.f32 %v1344, %v1344
        %v1473 = vmul.f32 %v1345, %v1345
        %v1474 = vmul.f32 %v1346, %v1346
        %v1475 = vmul.f32 %v1347, %v1347
        %v1476 = vmul.f32 %v1348, %v1348
        %v1477 = vmul.f32 %v1349, %v1349
        %v1478 = vmul.f32 %v1350, %v1350
        %v1479 = vmul.f32 %v1351, %v1351
        %v1480 = vmul.f32 %v1352, %v1352
        %v1481 = vmul.f32 %v1353, %v1353
        %v1482 = vmul.f32 %v1354, %v1354
        %v1483 = vmul.f32 %v1355, %v1355
        %v1484 = vmul.f32 %v1356, %v1356
        %v1485 = vmul.f32 %v1357, %v1357
        %v1486 = vmul.f32 %v1358, %v1358
        %v1487 = vmul.f32 %v1359, %v1359
        %v1488 = vmul.f32 %v1360, %v1360
        %v1489 = vmul.f32 %v1361, %v1361
        %v1490 = vmul.f32 %v1362, %v1362
        %v1491 = vmul.f32 %v1363, %v1363
        %v1492 = vmul.f32 %v1364, %v1364
        %v1493 = vmul.f32 %v1365, %v1365
        %v1494 = vmul.f32 %v1366, %v1366
        %v1495 = vmul.f32 %v1367, %v1367
        %v1496 = vmul.f32 %v1368, %v1368
        %v1497 = vmul.f32 %v1369, %v1369
        %v1498 = vmul.f32 %v1370, %v1370
        %v1499 = vmul.f32 %v1371, %v1371
        %v1500 = vmul.f32 %v1372, %v1372
        %v1501 = vmul.f32 %v1373, %v1373
        %v1502 = vmul.f32 %v1374, %v1374
        %v1503 = vmul.f32 %v1375, %v1375
        %v1504 = vmul.f32 %v1376, %v1376
        %v1505 = vmul.f32 %v1377, %v1377
        %v1506 = vmul.f32 %v1378, %v1378
        %v1507 = vmul.f32 %v1379, %v1379
        %v1508 = vmul.f32 %v1380, %v1380
        %v1509 = vmul.f32 %v1381, %v1381
        %v1510 = vmul.f32 %v1382, %v1382
        %v1511 = vmul.f32 %v1383, %v1383
        %v1512 = vmul.f32 %v1384, %v1384
        %v1513 = vmul.f32 %v1385, %v1385
        %v1514 = vmul.f32 %v1386, %v1386
        %v1515 = vmul.f32 %v1387, %v1387
        %v1516 = vmul.f32 %v1388, %v1388
        %v1517 = vmul.f32 %v1389, %v1389
        %v1518 = vmul.f32 %v1390, %v1390
        %v1519 = vmul.f32 %v1391, %v1391
        %v1520 = vmul.f32 %v1392, %v1392
        %v1521 = vmul.f32 %v1393, %v1393
        %v1522 = vmul.f32 %v1394, %v1394
        %v1523 = vmul.f32 %v1395, %v1395
        %v1524 = vmul.f32 %v1396, %v1396
        %v1525 = vmul.f32 %v1397, %v1397
        %v1526 = vmul.f32 %v1398, %v1398
        %v1527 = vmul.f32 %v1399, %v1399
        %v1528 = vmul.f32 %v1400, %v1400
        %v1529 = vmul.f32 %v1401, %v1401
        %v1530 = vmul.f32 %v1402, %v1402
        %v1531 = vmul.f32 %v1403, %v1403
        %v1532 = vmul.f32 %v1404, %v1404
        %v1533 = vmul.f32 %v1405, %v1405
        %v1534 = vmul.f32 %v1406, %v1406
        %v1535 = vmul.f32 %v1407, %v1407
        %v1536 = vmul.f32 %v1408, %v1408
        %v1537 = vmul.f32 %v1409, %v1409
        %v1538 = vmul.f32 %v1410, %v1410
        %v1539 = vmul.f32 %v1411, %v1411
        %v1540 = vmul.f32 %v1412, %v1412
        %v1541 = vmul.f32 %v1413, %v1413
        %v1542 = vmul.f32 %v1414, %v1414
        %v1543 = vmul.f32 %v1415, %v1415
        %v1544 = vmul.f32 %v1416, %v1416
        %v1545 = vmul.f32 %v1417, %v1417
        %v1546 = vmul.f32 %v1418, %v1418
        %v1547 = vmul.f32 %v1419, %v1419
        %v1548 = vmul.f32 %v1420, %v1420
        %v1549 = vmul.f32 %v1421, %v1421
        %v1550 = vmul.f32 %v1422, %v1422
        %v1551 = vmul.f32 %v1423, %v1423
        %v1552 = vmul.f32 %v1424, %v1424
        %v1553 = vmul.f32 %v1425, %v1425
        %v1554 = vmul.f32 %v1426, %v1426
        %v1555 = vmul.f32 %v1427, %v1427
        %v1556 = vmul.f32 %v1428, %v1428
        %v1557 = vmul.f32 %v1429, %v1429
        %v1558 = vmul.f32 %v1430, %v1430
        %v1559 = vmul.f32 %v1431, %v1431
        %v1560 = vmul.f32 %v1432, %v1432
        %v1561 = vmul.f32 %v1433, %v1433
        %v1562 = vmul.f32 %v1434, %v1434
        %v1563 = vmul.f32 %v1435, %v1435
        %v1564 = vmul.f32 %v1436, %v1436
        %v1565 = vmul.f32 %v1437, %v1437
        %v1566 = vmul.f32 %v1438, %v1438
        %v1567 = vmul.f32 %v1439, %v1439
        %v1568 = vmul.f32 %v1440, %v1440
        %v1569 = vmul.f32 %v1441, %v1441
        %v1570 = vmul.f32 %v1442, %v1442
        %v1571 = vmul.f32 %v1443, %v1443
        %v1572 = vmul.f32 %v1444, %v1444
        %v1573 = vmul.f32 %v1445, %v1445
        %v1574 = vmul.f32 %v1446, %v1446
        %v1575 = vadd.f32 %v1447, %v1451
        %v1576 = vadd.f32 %v1575, %v1455
        %v1577 = vadd.f32 %v1576, %v1459
        %v1578 = vadd.f32 %v1577, %v1463
        %v1579 = vadd.f32 %v1578, %v1467
        %v1580 = vadd.f32 %v1579, %v1471
        %v1581 = vadd.f32 %v1580, %v1475
        %v1582 = vadd.f32 %v1581, %v1479
        %v1583 = vadd.f32 %v1582, %v1483
        %v1584 = vadd.f32 %v1583, %v1487
        %v1585 = vadd.f32 %v1584, %v1491
        %v1586 = vadd.f32 %v1585, %v1495
        %v1587 = vadd.f32 %v1586, %v1499
        %v1588 = vadd.f32 %v1587, %v1503
        %v1589 = vadd.f32 %v1588, %v1507
        %v1590 = vadd.f32 %v1589, %v1511
        %v1591 = vadd.f32 %v1590, %v1515
        %v1592 = vadd.f32 %v1591, %v1519
        %v1593 = vadd.f32 %v1592, %v1523
        %v1594 = vadd.f32 %v1593, %v1527
        %v1595 = vadd.f32 %v1594, %v1531
        %v1596 = vadd.f32 %v1595, %v1535
        %v1597 = vadd.f32 %v1596, %v1539
        %v1598 = vadd.f32 %v1597, %v1543
        %v1599 = vadd.f32 %v1598, %v1547
        %v1600 = vadd.f32 %v1599, %v1551
        %v1601 = vadd.f32 %v1600, %v1555
        %v1602 = vadd.f32 %v1601, %v1559
        %v1603 = vadd.f32 %v1602, %v1563
        %v1604 = vadd.f32 %v1603, %v1567
        %v1605 = vadd.f32 %v1604, %v1571
        %v1606 = vrot.slane %v1605, 4
        %v1607 = vadd.f32 %v1605, %v1606
        %v1608 = vrot.slane %v1607, 2
        %v1609 = vadd.f32 %v1607, %v1608
        %v1610 = vrot.slane %v1609, 1
        %v1611 = vadd.f32 %v1609, %v1610
        %v1612 = vadd.f32 %v1448, %v1452
        %v1613 = vadd.f32 %v1612, %v1456
        %v1614 = vadd.f32 %v1613, %v1460
        %v1615 = vadd.f32 %v1614, %v1464
        %v1616 = vadd.f32 %v1615, %v1468
        %v1617 = vadd.f32 %v1616, %v1472
        %v1618 = vadd.f32 %v1617, %v1476
        %v1619 = vadd.f32 %v1618, %v1480
        %v1620 = vadd.f32 %v1619, %v1484
        %v1621 = vadd.f32 %v1620, %v1488
        %v1622 = vadd.f32 %v1621, %v1492
        %v1623 = vadd.f32 %v1622, %v1496
        %v1624 = vadd.f32 %v1623, %v1500
        %v1625 = vadd.f32 %v1624, %v1504
        %v1626 = vadd.f32 %v1625, %v1508
        %v1627 = vadd.f32 %v1626, %v1512
        %v1628 = vadd.f32 %v1627, %v1516
        %v1629 = vadd.f32 %v1628, %v1520
        %v1630 = vadd.f32 %v1629, %v1524
        %v1631 = vadd.f32 %v1630, %v1528
        %v1632 = vadd.f32 %v1631, %v1532
        %v1633 = vadd.f32 %v1632, %v1536
        %v1634 = vadd.f32 %v1633, %v1540
        %v1635 = vadd.f32 %v1634, %v1544
        %v1636 = vadd.f32 %v1635, %v1548
        %v1637 = vadd.f32 %v1636, %v1552
        %v1638 = vadd.f32 %v1637, %v1556
        %v1639 = vadd.f32 %v1638, %v1560
        %v1640 = vadd.f32 %v1639, %v1564
        %v1641 = vadd.f32 %v1640, %v1568
        %v1642 = vadd.f32 %v1641, %v1572
        %v1643 = vrot.slane %v1642, 4
        %v1644 = vadd.f32 %v1642, %v1643
        %v1645 = vrot.slane %v1644, 2
        %v1646 = vadd.f32 %v1644, %v1645
        %v1647 = vrot.slane %v1646, 1
        %v1648 = vadd.f32 %v1646, %v1647
        %v1649 = vadd.f32 %v1449, %v1453
        %v1650 = vadd.f32 %v1649, %v1457
        %v1651 = vadd.f32 %v1650, %v1461
        %v1652 = vadd.f32 %v1651, %v1465
        %v1653 = vadd.f32 %v1652, %v1469
        %v1654 = vadd.f32 %v1653, %v1473
        %v1655 = vadd.f32 %v1654, %v1477
        %v1656 = vadd.f32 %v1655, %v1481
        %v1657 = vadd.f32 %v1656, %v1485
        %v1658 = vadd.f32 %v1657, %v1489
        %v1659 = vadd.f32 %v1658, %v1493
        %v1660 = vadd.f32 %v1659, %v1497
        %v1661 = vadd.f32 %v1660, %v1501
        %v1662 = vadd.f32 %v1661, %v1505
        %v1663 = vadd.f32 %v1662, %v1509
        %v1664 = vadd.f32 %v1663, %v1513
        %v1665 = vadd.f32 %v1664, %v1517
        %v1666 = vadd.f32 %v1665, %v1521
        %v1667 = vadd.f32 %v1666, %v1525
        %v1668 = vadd.f32 %v1667, %v1529
        %v1669 = vadd.f32 %v1668, %v1533
        %v1670 = vadd.f32 %v1669, %v1537
        %v1671 = vadd.f32 %v1670, %v1541
        %v1672 = vadd.f32 %v1671, %v1545
        %v1673 = vadd.f32 %v1672, %v1549
        %v1674 = vadd.f32 %v1673, %v1553
        %v1675 = vadd.f32 %v1674, %v1557
        %v1676 = vadd.f32 %v1675, %v1561
        %v1677 = vadd.f32 %v1676, %v1565
        %v1678 = vadd.f32 %v1677, %v1569
        %v1679 = vadd.f32 %v1678, %v1573
        %v1680 = vrot.slane %v1679, 4
        %v1681 = vadd.f32 %v1679, %v1680
        %v1682 = vrot.slane %v1681, 2
        %v1683 = vadd.f32 %v1681, %v1682
        %v1684 = vrot.slane %v1683, 1
        %v1685 = vadd.f32 %v1683, %v1684
        %v1686 = vadd.f32 %v1450, %v1454
        %v1687 = vadd.f32 %v1686, %v1458
        %v1688 = vadd.f32 %v1687, %v1462
        %v1689 = vadd.f32 %v1688, %v1466
        %v1690 = vadd.f32 %v1689, %v1470
        %v1691 = vadd.f32 %v1690, %v1474
        %v1692 = vadd.f32 %v1691, %v1478
        %v1693 = vadd.f32 %v1692, %v1482
        %v1694 = vadd.f32 %v1693, %v1486
        %v1695 = vadd.f32 %v1694, %v1490
        %v1696 = vadd.f32 %v1695, %v1494
        %v1697 = vadd.f32 %v1696, %v1498
        %v1698 = vadd.f32 %v1697, %v1502
        %v1699 = vadd.f32 %v1698, %v1506
        %v1700 = vadd.f32 %v1699, %v1510
        %v1701 = vadd.f32 %v1700, %v1514
        %v1702 = vadd.f32 %v1701, %v1518
        %v1703 = vadd.f32 %v1702, %v1522
        %v1704 = vadd.f32 %v1703, %v1526
        %v1705 = vadd.f32 %v1704, %v1530
        %v1706 = vadd.f32 %v1705, %v1534
        %v1707 = vadd.f32 %v1706, %v1538
        %v1708 = vadd.f32 %v1707, %v1542
        %v1709 = vadd.f32 %v1708, %v1546
        %v1710 = vadd.f32 %v1709, %v1550
        %v1711 = vadd.f32 %v1710, %v1554
        %v1712 = vadd.f32 %v1711, %v1558
        %v1713 = vadd.f32 %v1712, %v1562
        %v1714 = vadd.f32 %v1713, %v1566
        %v1715 = vadd.f32 %v1714, %v1570
        %v1716 = vadd.f32 %v1715, %v1574
        %v1717 = vrot.slane %v1716, 4
        %v1718 = vadd.f32 %v1716, %v1717
        %v1719 = vrot.slane %v1718, 2
        %v1720 = vadd.f32 %v1718, %v1719
        %v1721 = vrot.slane %v1720, 1
        %v1722 = vadd.f32 %v1720, %v1721
        %v1723 = vrsqrt.pop %v1611
        %v1724 = vmul.f32 %v1611, %v1723
        %vm1725 = vcmp.eq.f32.partialorder %v1611, inf
        %v1726 = vsel %vm1725, %v1611, %v1724
        %vm1727 = vcmp.eq.f32.partialorder %v1611, 0.0
        %v1728 = vand.u32 %v1611, 2147483648
        %v1729 = vsel %vm1727, %v1728, %v1726
        %v1730 = vrsqrt.pop %v1648
        %v1731 = vmul.f32 %v1648, %v1730
        %vm1732 = vcmp.eq.f32.partialorder %v1648, inf
        %v1733 = vsel %vm1732, %v1648, %v1731
        %vm1734 = vcmp.eq.f32.partialorder %v1648, 0.0
        %v1735 = vand.u32 %v1648, 2147483648
        %v1736 = vsel %vm1734, %v1735, %v1733
        %v1737 = vrsqrt.pop %v1685
        %v1738 = vmul.f32 %v1685, %v1737
        %vm1739 = vcmp.eq.f32.partialorder %v1685, inf
        %v1740 = vsel %vm1739, %v1685, %v1738
        %vm1741 = vcmp.eq.f32.partialorder %v1685, 0.0
        %v1742 = vand.u32 %v1685, 2147483648
        %v1743 = vsel %vm1741, %v1742, %v1740
        %v1744 = vrsqrt.pop %v1722
        %v1745 = vmul.f32 %v1722, %v1744
        %vm1746 = vcmp.eq.f32.partialorder %v1722, inf
        %v1747 = vsel %vm1746, %v1722, %v1745
        %vm1748 = vcmp.eq.f32.partialorder %v1722, 0.0
        %v1749 = vand.u32 %v1722, 2147483648
        %v1750 = vsel %vm1748, %v1749, %v1747
        %v1751 = vadd.f32 %v1729, 1e-06
        %v1752 = vadd.f32 %v1736, 1e-06
        %v1753 = vadd.f32 %v1743, 1e-06
        %v1754 = vadd.f32 %v1750, 1e-06
        %v1755 = vrcp.pop %v1751
        %v1756 = vmul.f32 1.0, %v1755
        %v1757 = vrcp.pop %v1752
        %v1758 = vmul.f32 1.0, %v1757
        %v1759 = vrcp.pop %v1753
        %v1760 = vmul.f32 1.0, %v1759
        %v1761 = vrcp.pop %v1754
        %v1762 = vmul.f32 1.0, %v1761
        %v1763 = vmul.f32 %v1319, %v1756
        %v1764 = vmul.f32 %v1320, %v1758
        %v1765 = vmul.f32 %v1321, %v1760
        %v1766 = vmul.f32 %v1322, %v1762
        %v1767 = vmul.f32 %v1323, %v1756
        %v1768 = vmul.f32 %v1324, %v1758
        %v1769 = vmul.f32 %v1325, %v1760
        %v1770 = vmul.f32 %v1326, %v1762
        %v1771 = vmul.f32 %v1327, %v1756
        %v1772 = vmul.f32 %v1328, %v1758
        %v1773 = vmul.f32 %v1329, %v1760
        %v1774 = vmul.f32 %v1330, %v1762
        %v1775 = vmul.f32 %v1331, %v1756
        %v1776 = vmul.f32 %v1332, %v1758
        %v1777 = vmul.f32 %v1333, %v1760
        %v1778 = vmul.f32 %v1334, %v1762
        %v1779 = vmul.f32 %v1335, %v1756
        %v1780 = vmul.f32 %v1336, %v1758
        %v1781 = vmul.f32 %v1337, %v1760
        %v1782 = vmul.f32 %v1338, %v1762
        %v1783 = vmul.f32 %v1339, %v1756
        %v1784 = vmul.f32 %v1340, %v1758
        %v1785 = vmul.f32 %v1341, %v1760
        %v1786 = vmul.f32 %v1342, %v1762
        %v1787 = vmul.f32 %v1343, %v1756
        %v1788 = vmul.f32 %v1344, %v1758
        %v1789 = vmul.f32 %v1345, %v1760
        %v1790 = vmul.f32 %v1346, %v1762
        %v1791 = vmul.f32 %v1347, %v1756
        %v1792 = vmul.f32 %v1348, %v1758
        %v1793 = vmul.f32 %v1349, %v1760
        %v1794 = vmul.f32 %v1350, %v1762
        %v1795 = vmul.f32 %v1351, %v1756
        %v1796 = vmul.f32 %v1352, %v1758
        %v1797 = vmul.f32 %v1353, %v1760
        %v1798 = vmul.f32 %v1354, %v1762
        %v1799 = vmul.f32 %v1355, %v1756
        %v1800 = vmul.f32 %v1356, %v1758
        %v1801 = vmul.f32 %v1357, %v1760
        %v1802 = vmul.f32 %v1358, %v1762
        %v1803 = vmul.f32 %v1359, %v1756
        %v1804 = vmul.f32 %v1360, %v1758
        %v1805 = vmul.f32 %v1361, %v1760
        %v1806 = vmul.f32 %v1362, %v1762
        %v1807 = vmul.f32 %v1363, %v1756
        %v1808 = vmul.f32 %v1364, %v1758
        %v1809 = vmul.f32 %v1365, %v1760
        %v1810 = vmul.f32 %v1366, %v1762
        %v1811 = vmul.f32 %v1367, %v1756
        %v1812 = vmul.f32 %v1368, %v1758
        %v1813 = vmul.f32 %v1369, %v1760
        %v1814 = vmul.f32 %v1370, %v1762
        %v1815 = vmul.f32 %v1371, %v1756
        %v1816 = vmul.f32 %v1372, %v1758
        %v1817 = vmul.f32 %v1373, %v1760
        %v1818 = vmul.f32 %v1374, %v1762
        %v1819 = vmul.f32 %v1375, %v1756
        %v1820 = vmul.f32 %v1376, %v1758
        %v1821 = vmul.f32 %v1377, %v1760
        %v1822 = vmul.f32 %v1378, %v1762
        %v1823 = vmul.f32 %v1379, %v1756
        %v1824 = vmul.f32 %v1380, %v1758
        %v1825 = vmul.f32 %v1381, %v1760
        %v1826 = vmul.f32 %v1382, %v1762
        %v1827 = vmul.f32 %v1383, %v1756
        %v1828 = vmul.f32 %v1384, %v1758
        %v1829 = vmul.f32 %v1385, %v1760
        %v1830 = vmul.f32 %v1386, %v1762
        %v1831 = vmul.f32 %v1387, %v1756
        %v1832 = vmul.f32 %v1388, %v1758
        %v1833 = vmul.f32 %v1389, %v1760
        %v1834 = vmul.f32 %v1390, %v1762
        %v1835 = vmul.f32 %v1391, %v1756
        %v1836 = vmul.f32 %v1392, %v1758
        %v1837 = vmul.f32 %v1393, %v1760
        %v1838 = vmul.f32 %v1394, %v1762
        %v1839 = vmul.f32 %v1395, %v1756
        %v1840 = vmul.f32 %v1396, %v1758
        %v1841 = vmul.f32 %v1397, %v1760
        %v1842 = vmul.f32 %v1398, %v1762
        %v1843 = vmul.f32 %v1399, %v1756
        %v1844 = vmul.f32 %v1400, %v1758
        %v1845 = vmul.f32 %v1401, %v1760
        %v1846 = vmul.f32 %v1402, %v1762
        %v1847 = vmul.f32 %v1403, %v1756
        %v1848 = vmul.f32 %v1404, %v1758
        %v1849 = vmul.f32 %v1405, %v1760
        %v1850 = vmul.f32 %v1406, %v1762
        %v1851 = vmul.f32 %v1407, %v1756
        %v1852 = vmul.f32 %v1408, %v1758
        %v1853 = vmul.f32 %v1409, %v1760
        %v1854 = vmul.f32 %v1410, %v1762
        %v1855 = vmul.f32 %v1411, %v1756
        %v1856 = vmul.f32 %v1412, %v1758
        %v1857 = vmul.f32 %v1413, %v1760
        %v1858 = vmul.f32 %v1414, %v1762
        %v1859 = vmul.f32 %v1415, %v1756
        %v1860 = vmul.f32 %v1416, %v1758
        %v1861 = vmul.f32 %v1417, %v1760
        %v1862 = vmul.f32 %v1418, %v1762
        %v1863 = vmul.f32 %v1419, %v1756
        %v1864 = vmul.f32 %v1420, %v1758
        %v1865 = vmul.f32 %v1421, %v1760
        %v1866 = vmul.f32 %v1422, %v1762
        %v1867 = vmul.f32 %v1423, %v1756
        %v1868 = vmul.f32 %v1424, %v1758
        %v1869 = vmul.f32 %v1425, %v1760
        %v1870 = vmul.f32 %v1426, %v1762
        %v1871 = vmul.f32 %v1427, %v1756
        %v1872 = vmul.f32 %v1428, %v1758
        %v1873 = vmul.f32 %v1429, %v1760
        %v1874 = vmul.f32 %v1430, %v1762
        %v1875 = vmul.f32 %v1431, %v1756
        %v1876 = vmul.f32 %v1432, %v1758
        %v1877 = vmul.f32 %v1433, %v1760
        %v1878 = vmul.f32 %v1434, %v1762
        %v1879 = vmul.f32 %v1435, %v1756
        %v1880 = vmul.f32 %v1436, %v1758
        %v1881 = vmul.f32 %v1437, %v1760
        %v1882 = vmul.f32 %v1438, %v1762
        %v1883 = vmul.f32 %v1439, %v1756
        %v1884 = vmul.f32 %v1440, %v1758
        %v1885 = vmul.f32 %v1441, %v1760
        %v1886 = vmul.f32 %v1442, %v1762
        %v1887 = vmul.f32 %v1443, %v1756
        %v1888 = vmul.f32 %v1444, %v1758
        %v1889 = vmul.f32 %v1445, %v1760
        %v1890 = vmul.f32 %v1446, %v1762
        %v1891 = vld [vmem:[%s2] sm:$0xff]
        %v1892 = vld [vmem:[%s2 + $0x8] sm:$0xff]
        %v1893 = vld [vmem:[%s2 + $0x10] sm:$0xff]
        %v1894 = vld [vmem:[%s2 + $0x18] sm:$0xff]
        %v1895 = vld [vmem:[%s2 + $0x20] sm:$0xff]
        %v1896 = vld [vmem:[%s2 + $0x28] sm:$0xff]
        %v1897 = vld [vmem:[%s2 + $0x30] sm:$0xff]
        %v1898 = vld [vmem:[%s2 + $0x38] sm:$0xff]
        %v1899 = vld [vmem:[%s2 + $0x40] sm:$0xff]
        %v1900 = vld [vmem:[%s2 + $0x48] sm:$0xff]
        %v1901 = vld [vmem:[%s2 + $0x50] sm:$0xff]
        %v1902 = vld [vmem:[%s2 + $0x58] sm:$0xff]
        %v1903 = vld [vmem:[%s2 + $0x60] sm:$0xff]
        %v1904 = vld [vmem:[%s2 + $0x68] sm:$0xff]
        %v1905 = vld [vmem:[%s2 + $0x70] sm:$0xff]
        %v1906 = vld [vmem:[%s2 + $0x78] sm:$0xff]
        %v1907 = vld [vmem:[%s2 + $0x80] sm:$0xff]
        %v1908 = vld [vmem:[%s2 + $0x88] sm:$0xff]
        %v1909 = vld [vmem:[%s2 + $0x90] sm:$0xff]
        %v1910 = vld [vmem:[%s2 + $0x98] sm:$0xff]
        %v1911 = vld [vmem:[%s2 + $0xa0] sm:$0xff]
        %v1912 = vld [vmem:[%s2 + $0xa8] sm:$0xff]
        %v1913 = vld [vmem:[%s2 + $0xb0] sm:$0xff]
        %v1914 = vld [vmem:[%s2 + $0xb8] sm:$0xff]
        %v1915 = vld [vmem:[%s2 + $0xc0] sm:$0xff]
        %v1916 = vld [vmem:[%s2 + $0xc8] sm:$0xff]
        %v1917 = vld [vmem:[%s2 + $0xd0] sm:$0xff]
        %v1918 = vld [vmem:[%s2 + $0xd8] sm:$0xff]
        %v1919 = vld [vmem:[%s2 + $0xe0] sm:$0xff]
        %v1920 = vld [vmem:[%s2 + $0xe8] sm:$0xff]
        %v1921 = vld [vmem:[%s2 + $0xf0] sm:$0xff]
        %v1922 = vld [vmem:[%s2 + $0xf8] sm:$0xff]
        %v1923 = vpack.c.bf16 %v1767, %v1763
        %v1924 = vpack.c.bf16 %v1768, %v1764
        %v1925 = vpack.c.bf16 %v1769, %v1765
        %v1926 = vpack.c.bf16 %v1770, %v1766
        %v1927 = vpack.c.bf16 %v1775, %v1771
        %v1928 = vpack.c.bf16 %v1776, %v1772
        %v1929 = vpack.c.bf16 %v1777, %v1773
        %v1930 = vpack.c.bf16 %v1778, %v1774
        %v1931 = vpack.c.bf16 %v1783, %v1779
        %v1932 = vpack.c.bf16 %v1784, %v1780
        %v1933 = vpack.c.bf16 %v1785, %v1781
        %v1934 = vpack.c.bf16 %v1786, %v1782
        %v1935 = vpack.c.bf16 %v1791, %v1787
        %v1936 = vpack.c.bf16 %v1792, %v1788
        %v1937 = vpack.c.bf16 %v1793, %v1789
        %v1938 = vpack.c.bf16 %v1794, %v1790
        %v1939 = vpack.c.bf16 %v1799, %v1795
        %v1940 = vpack.c.bf16 %v1800, %v1796
        %v1941 = vpack.c.bf16 %v1801, %v1797
        %v1942 = vpack.c.bf16 %v1802, %v1798
        %v1943 = vpack.c.bf16 %v1807, %v1803
        %v1944 = vpack.c.bf16 %v1808, %v1804
        %v1945 = vpack.c.bf16 %v1809, %v1805
        %v1946 = vpack.c.bf16 %v1810, %v1806
        %v1947 = vpack.c.bf16 %v1815, %v1811
        %v1948 = vpack.c.bf16 %v1816, %v1812
        %v1949 = vpack.c.bf16 %v1817, %v1813
        %v1950 = vpack.c.bf16 %v1818, %v1814
        %v1951 = vpack.c.bf16 %v1823, %v1819
        %v1952 = vpack.c.bf16 %v1824, %v1820
        %v1953 = vpack.c.bf16 %v1825, %v1821
        %v1954 = vpack.c.bf16 %v1826, %v1822
        %v1955 = vpack.c.bf16 %v1831, %v1827
        %v1956 = vpack.c.bf16 %v1832, %v1828
        %v1957 = vpack.c.bf16 %v1833, %v1829
        %v1958 = vpack.c.bf16 %v1834, %v1830
        %v1959 = vpack.c.bf16 %v1839, %v1835
        %v1960 = vpack.c.bf16 %v1840, %v1836
        %v1961 = vpack.c.bf16 %v1841, %v1837
        %v1962 = vpack.c.bf16 %v1842, %v1838
        %v1963 = vpack.c.bf16 %v1847, %v1843
        %v1964 = vpack.c.bf16 %v1848, %v1844
        %v1965 = vpack.c.bf16 %v1849, %v1845
        %v1966 = vpack.c.bf16 %v1850, %v1846
        %v1967 = vpack.c.bf16 %v1855, %v1851
        %v1968 = vpack.c.bf16 %v1856, %v1852
        %v1969 = vpack.c.bf16 %v1857, %v1853
        %v1970 = vpack.c.bf16 %v1858, %v1854
        %v1971 = vpack.c.bf16 %v1863, %v1859
        %v1972 = vpack.c.bf16 %v1864, %v1860
        %v1973 = vpack.c.bf16 %v1865, %v1861
        %v1974 = vpack.c.bf16 %v1866, %v1862
        %v1975 = vpack.c.bf16 %v1871, %v1867
        %v1976 = vpack.c.bf16 %v1872, %v1868
        %v1977 = vpack.c.bf16 %v1873, %v1869
        %v1978 = vpack.c.bf16 %v1874, %v1870
        %v1979 = vpack.c.bf16 %v1879, %v1875
        %v1980 = vpack.c.bf16 %v1880, %v1876
        %v1981 = vpack.c.bf16 %v1881, %v1877
        %v1982 = vpack.c.bf16 %v1882, %v1878
        %v1983 = vpack.c.bf16 %v1887, %v1883
        %v1984 = vpack.c.bf16 %v1888, %v1884
        %v1985 = vpack.c.bf16 %v1889, %v1885
        %v1986 = vpack.c.bf16 %v1890, %v1886
        %v1987 = vld [vmem:[%s3] sm:$0xff]
        %v1988 = vld [vmem:[%s3 + $0x8] sm:$0xff]
        %v1989 = vld [vmem:[%s3 + $0x10] sm:$0xff]
        %v1990 = vld [vmem:[%s3 + $0x18] sm:$0xff]
        %v1991 = vld [vmem:[%s3 + $0x20] sm:$0xff]
        %v1992 = vld [vmem:[%s3 + $0x28] sm:$0xff]
        %v1993 = vld [vmem:[%s3 + $0x30] sm:$0xff]
        %v1994 = vld [vmem:[%s3 + $0x38] sm:$0xff]
        %v1995 = vld [vmem:[%s3 + $0x40] sm:$0xff]
        %v1996 = vld [vmem:[%s3 + $0x48] sm:$0xff]
        %v1997 = vld [vmem:[%s3 + $0x50] sm:$0xff]
        %v1998 = vld [vmem:[%s3 + $0x58] sm:$0xff]
        %v1999 = vld [vmem:[%s3 + $0x60] sm:$0xff]
        %v2000 = vld [vmem:[%s3 + $0x68] sm:$0xff]
        %v2001 = vld [vmem:[%s3 + $0x70] sm:$0xff]
        %v2002 = vld [vmem:[%s3 + $0x78] sm:$0xff]
        %v2003 = vld [vmem:[%s3 + $0x80] sm:$0xff]
        %v2004 = vld [vmem:[%s3 + $0x88] sm:$0xff]
        %v2005 = vld [vmem:[%s3 + $0x90] sm:$0xff]
        %v2006 = vld [vmem:[%s3 + $0x98] sm:$0xff]
        %v2007 = vld [vmem:[%s3 + $0xa0] sm:$0xff]
        %v2008 = vld [vmem:[%s3 + $0xa8] sm:$0xff]
        %v2009 = vld [vmem:[%s3 + $0xb0] sm:$0xff]
        %v2010 = vld [vmem:[%s3 + $0xb8] sm:$0xff]
        %v2011 = vld [vmem:[%s3 + $0xc0] sm:$0xff]
        %v2012 = vld [vmem:[%s3 + $0xc8] sm:$0xff]
        %v2013 = vld [vmem:[%s3 + $0xd0] sm:$0xff]
        %v2014 = vld [vmem:[%s3 + $0xd8] sm:$0xff]
        %v2015 = vld [vmem:[%s3 + $0xe0] sm:$0xff]
        %v2016 = vld [vmem:[%s3 + $0xe8] sm:$0xff]
        %v2017 = vld [vmem:[%s3 + $0xf0] sm:$0xff]
        %v2018 = vld [vmem:[%s3 + $0xf8] sm:$0xff]
        %2020 = vset.pattern.permute.xlu0 0
        %2021 = vperm.xlu0 %2020, %v1987
        %v2022 = vpop.permute.xlu0 %2021
        %2025 = vset.pattern.permute.xlu0 0
        %2026 = vperm.xlu0 %2025, %v1988
        %v2027 = vpop.permute.xlu0 %2026
        %2030 = vset.pattern.permute.xlu0 0
        %2031 = vperm.xlu0 %2030, %v1989
        %v2032 = vpop.permute.xlu0 %2031
        %2035 = vset.pattern.permute.xlu0 0
        %2036 = vperm.xlu0 %2035, %v1990
        %v2037 = vpop.permute.xlu0 %2036
        %2040 = vset.pattern.permute.xlu0 0
        %2041 = vperm.xlu0 %2040, %v1991
        %v2042 = vpop.permute.xlu0 %2041
        %2045 = vset.pattern.permute.xlu0 0
        %2046 = vperm.xlu0 %2045, %v1992
        %v2047 = vpop.permute.xlu0 %2046
        %2050 = vset.pattern.permute.xlu0 0
        %2051 = vperm.xlu0 %2050, %v1993
        %v2052 = vpop.permute.xlu0 %2051
        %2055 = vset.pattern.permute.xlu0 0
        %2056 = vperm.xlu0 %2055, %v1994
        %v2057 = vpop.permute.xlu0 %2056
        %2060 = vset.pattern.permute.xlu0 0
        %2061 = vperm.xlu0 %2060, %v1995
        %v2062 = vpop.permute.xlu0 %2061
        %2065 = vset.pattern.permute.xlu0 0
        %2066 = vperm.xlu0 %2065, %v1996
        %v2067 = vpop.permute.xlu0 %2066
        %2070 = vset.pattern.permute.xlu0 0
        %2071 = vperm.xlu0 %2070, %v1997
        %v2072 = vpop.permute.xlu0 %2071
        %2075 = vset.pattern.permute.xlu0 0
        %2076 = vperm.xlu0 %2075, %v1998
        %v2077 = vpop.permute.xlu0 %2076
        %2080 = vset.pattern.permute.xlu0 0
        %2081 = vperm.xlu0 %2080, %v1999
        %v2082 = vpop.permute.xlu0 %2081
        %2085 = vset.pattern.permute.xlu0 0
        %2086 = vperm.xlu0 %2085, %v2000
        %v2087 = vpop.permute.xlu0 %2086
        %2090 = vset.pattern.permute.xlu0 0
        %2091 = vperm.xlu0 %2090, %v2001
        %v2092 = vpop.permute.xlu0 %2091
        %2095 = vset.pattern.permute.xlu0 0
        %2096 = vperm.xlu0 %2095, %v2002
        %v2097 = vpop.permute.xlu0 %2096
        %2100 = vset.pattern.permute.xlu0 0
        %2101 = vperm.xlu0 %2100, %v2003
        %v2102 = vpop.permute.xlu0 %2101
        %2105 = vset.pattern.permute.xlu0 0
        %2106 = vperm.xlu0 %2105, %v2004
        %v2107 = vpop.permute.xlu0 %2106
        %2110 = vset.pattern.permute.xlu0 0
        %2111 = vperm.xlu0 %2110, %v2005
        %v2112 = vpop.permute.xlu0 %2111
        %2115 = vset.pattern.permute.xlu0 0
        %2116 = vperm.xlu0 %2115, %v2006
        %v2117 = vpop.permute.xlu0 %2116
        %2120 = vset.pattern.permute.xlu0 0
        %2121 = vperm.xlu0 %2120, %v2007
        %v2122 = vpop.permute.xlu0 %2121
        %2125 = vset.pattern.permute.xlu0 0
        %2126 = vperm.xlu0 %2125, %v2008
        %v2127 = vpop.permute.xlu0 %2126
        %2130 = vset.pattern.permute.xlu0 0
        %2131 = vperm.xlu0 %2130, %v2009
        %v2132 = vpop.permute.xlu0 %2131
        %2135 = vset.pattern.permute.xlu0 0
        %2136 = vperm.xlu0 %2135, %v2010
        %v2137 = vpop.permute.xlu0 %2136
        %2140 = vset.pattern.permute.xlu0 0
        %2141 = vperm.xlu0 %2140, %v2011
        %v2142 = vpop.permute.xlu0 %2141
        %2145 = vset.pattern.permute.xlu0 0
        %2146 = vperm.xlu0 %2145, %v2012
        %v2147 = vpop.permute.xlu0 %2146
        %2150 = vset.pattern.permute.xlu0 0
        %2151 = vperm.xlu0 %2150, %v2013
        %v2152 = vpop.permute.xlu0 %2151
        %2155 = vset.pattern.permute.xlu0 0
        %2156 = vperm.xlu0 %2155, %v2014
        %v2157 = vpop.permute.xlu0 %2156
        %2160 = vset.pattern.permute.xlu0 0
        %2161 = vperm.xlu0 %2160, %v2015
        %v2162 = vpop.permute.xlu0 %2161
        %2165 = vset.pattern.permute.xlu0 0
        %2166 = vperm.xlu0 %2165, %v2016
        %v2167 = vpop.permute.xlu0 %2166
        %2170 = vset.pattern.permute.xlu0 0
        %2171 = vperm.xlu0 %2170, %v2017
        %v2172 = vpop.permute.xlu0 %2171
        %2175 = vset.pattern.permute.xlu0 0
        %2176 = vperm.xlu0 %2175, %v2018
        %v2177 = vpop.permute.xlu0 %2176
        %v2211 = vunpack.c.l.b16 %v1891
        %v2212 = vunpack.c.h.b16 %v1891
        %v2213 = vunpack.c.l.b16 %v1892
        %v2214 = vunpack.c.h.b16 %v1892
        %v2215 = vunpack.c.l.b16 %v1893
        %v2216 = vunpack.c.h.b16 %v1893
        %v2217 = vunpack.c.l.b16 %v1894
        %v2218 = vunpack.c.h.b16 %v1894
        %v2219 = vunpack.c.l.b16 %v1895
        %v2220 = vunpack.c.h.b16 %v1895
        %v2221 = vunpack.c.l.b16 %v1896
        %v2222 = vunpack.c.h.b16 %v1896
        %v2223 = vunpack.c.l.b16 %v1897
        %v2224 = vunpack.c.h.b16 %v1897
        %v2225 = vunpack.c.l.b16 %v1898
        %v2226 = vunpack.c.h.b16 %v1898
        %v2227 = vunpack.c.l.b16 %v1899
        %v2228 = vunpack.c.h.b16 %v1899
        %v2229 = vunpack.c.l.b16 %v1900
        %v2230 = vunpack.c.h.b16 %v1900
        %v2231 = vunpack.c.l.b16 %v1901
        %v2232 = vunpack.c.h.b16 %v1901
        %v2233 = vunpack.c.l.b16 %v1902
        %v2234 = vunpack.c.h.b16 %v1902
        %v2235 = vunpack.c.l.b16 %v1903
        %v2236 = vunpack.c.h.b16 %v1903
        %v2237 = vunpack.c.l.b16 %v1904
        %v2238 = vunpack.c.h.b16 %v1904
        %v2239 = vunpack.c.l.b16 %v1905
        %v2240 = vunpack.c.h.b16 %v1905
        %v2241 = vunpack.c.l.b16 %v1906
        %v2242 = vunpack.c.h.b16 %v1906
        %v2243 = vunpack.c.l.b16 %v1907
        %v2244 = vunpack.c.h.b16 %v1907
        %v2245 = vunpack.c.l.b16 %v1908
        %v2246 = vunpack.c.h.b16 %v1908
        %v2247 = vunpack.c.l.b16 %v1909
        %v2248 = vunpack.c.h.b16 %v1909
        %v2249 = vunpack.c.l.b16 %v1910
        %v2250 = vunpack.c.h.b16 %v1910
        %v2251 = vunpack.c.l.b16 %v1911
        %v2252 = vunpack.c.h.b16 %v1911
        %v2253 = vunpack.c.l.b16 %v1912
        %v2254 = vunpack.c.h.b16 %v1912
        %v2255 = vunpack.c.l.b16 %v1913
        %v2256 = vunpack.c.h.b16 %v1913
        %v2257 = vunpack.c.l.b16 %v1914
        %v2258 = vunpack.c.h.b16 %v1914
        %v2259 = vunpack.c.l.b16 %v1915
        %v2260 = vunpack.c.h.b16 %v1915
        %v2261 = vunpack.c.l.b16 %v1916
        %v2262 = vunpack.c.h.b16 %v1916
        %v2263 = vunpack.c.l.b16 %v1917
        %v2264 = vunpack.c.h.b16 %v1917
        %v2265 = vunpack.c.l.b16 %v1918
        %v2266 = vunpack.c.h.b16 %v1918
        %v2267 = vunpack.c.l.b16 %v1919
        %v2268 = vunpack.c.h.b16 %v1919
        %v2269 = vunpack.c.l.b16 %v1920
        %v2270 = vunpack.c.h.b16 %v1920
        %v2271 = vunpack.c.l.b16 %v1921
        %v2272 = vunpack.c.h.b16 %v1921
        %v2273 = vunpack.c.l.b16 %v1922
        %v2274 = vunpack.c.h.b16 %v1922
        %v2275 = vpack.c.b16 %v2213, %v2211
        %v2276 = vpack.c.b16 %v2214, %v2212
        %v2277 = vpack.c.b16 %v2217, %v2215
        %v2278 = vpack.c.b16 %v2218, %v2216
        %v2279 = vpack.c.b16 %v2221, %v2219
        %v2280 = vpack.c.b16 %v2222, %v2220
        %v2281 = vpack.c.b16 %v2225, %v2223
        %v2282 = vpack.c.b16 %v2226, %v2224
        %v2283 = vpack.c.b16 %v2229, %v2227
        %v2284 = vpack.c.b16 %v2230, %v2228
        %v2285 = vpack.c.b16 %v2233, %v2231
        %v2286 = vpack.c.b16 %v2234, %v2232
        %v2287 = vpack.c.b16 %v2237, %v2235
        %v2288 = vpack.c.b16 %v2238, %v2236
        %v2289 = vpack.c.b16 %v2241, %v2239
        %v2290 = vpack.c.b16 %v2242, %v2240
        %v2291 = vpack.c.b16 %v2245, %v2243
        %v2292 = vpack.c.b16 %v2246, %v2244
        %v2293 = vpack.c.b16 %v2249, %v2247
        %v2294 = vpack.c.b16 %v2250, %v2248
        %v2295 = vpack.c.b16 %v2253, %v2251
        %v2296 = vpack.c.b16 %v2254, %v2252
        %v2297 = vpack.c.b16 %v2257, %v2255
        %v2298 = vpack.c.b16 %v2258, %v2256
        %v2299 = vpack.c.b16 %v2261, %v2259
        %v2300 = vpack.c.b16 %v2262, %v2260
        %v2301 = vpack.c.b16 %v2265, %v2263
        %v2302 = vpack.c.b16 %v2266, %v2264
        %v2303 = vpack.c.b16 %v2269, %v2267
        %v2304 = vpack.c.b16 %v2270, %v2268
        %v2305 = vpack.c.b16 %v2273, %v2271
        %v2306 = vpack.c.b16 %v2274, %v2272
        %2339 = vmatprep.subr.bf16.mxu0 %v1924
        %2340 = vmatpush1.bf16.msra.mxu0 %v1923
        %2341 = vmatprep.subr.bf16.mxu0 %v1928
        %2342 = vmatpush1.bf16.msra.mxu0 %v1927
        %2343 = vmatprep.subr.bf16.mxu0 %v1932
        %2344 = vmatpush1.bf16.msra.mxu0 %v1931
        %2345 = vmatprep.subr.bf16.mxu0 %v1936
        %2346 = vmatpush1.bf16.msra.mxu0 %v1935
        %2347 = vmatprep.subr.bf16.mxu0 %v1940
        %2348 = vmatpush1.bf16.msra.mxu0 %v1939
        %2349 = vmatprep.subr.bf16.mxu0 %v1944
        %2350 = vmatpush1.bf16.msra.mxu0 %v1943
        %2351 = vmatprep.subr.bf16.mxu0 %v1948
        %2352 = vmatpush1.bf16.msra.mxu0 %v1947
        %2353 = vmatprep.subr.bf16.mxu0 %v1952
        %2354 = vmatpush1.bf16.msra.mxu0 %v1951
        %2355 = vmatprep.subr.bf16.mxu0 %v1956
        %2356 = vmatpush1.bf16.msra.mxu0 %v1955
        %2357 = vmatprep.subr.bf16.mxu0 %v1960
        %2358 = vmatpush1.bf16.msra.mxu0 %v1959
        %2359 = vmatprep.subr.bf16.mxu0 %v1964
        %2360 = vmatpush1.bf16.msra.mxu0 %v1963
        %2361 = vmatprep.subr.bf16.mxu0 %v1968
        %2362 = vmatpush1.bf16.msra.mxu0 %v1967
        %2363 = vmatprep.subr.bf16.mxu0 %v1972
        %2364 = vmatpush1.bf16.msra.mxu0 %v1971
        %2365 = vmatprep.subr.bf16.mxu0 %v1976
        %2366 = vmatpush1.bf16.msra.mxu0 %v1975
        %2367 = vmatprep.subr.bf16.mxu0 %v1980
        %2368 = vmatpush1.bf16.msra.mxu0 %v1979
        %2369 = vmatprep.subr.bf16.mxu0 %v1984
        %2370 = vmatpush1.bf16.msra.mxu0 %v1983
        %2371 = vmatprep.mubr.bf16.mxu0 %v2276
        %2372 = vmatmul.mubr.bf16.gmra.mrb[0].mxu0 %v2275
        %v2373 = vpop.f32.mrb[0].mxu0
        %v2374 = vadd.f32 %v2022, %v2373
        %v2375 = vpop.f32.mrb[0].mxu0
        %v2376 = vadd.f32 %v2022, %v2375
        %v2377 = vpop.f32.mrb[0].mxu0
        %v2378 = vadd.f32 %v2027, %v2377
        %v2379 = vpop.f32.mrb[0].mxu0
        %v2380 = vadd.f32 %v2027, %v2379
        %2381 = vmatprep.mubr.bf16.mxu0 %v2278
        %2382 = vmatmul.mubr.bf16.gmra.mrb[0].mxu0 %v2277
        %v2383 = vpop.f32.mrb[0].mxu0
        %v2384 = vadd.f32 %v2032, %v2383
        %v2385 = vpop.f32.mrb[0].mxu0
        %v2386 = vadd.f32 %v2032, %v2385
        %v2387 = vpop.f32.mrb[0].mxu0
        %v2388 = vadd.f32 %v2037, %v2387
        %v2389 = vpop.f32.mrb[0].mxu0
        %v2390 = vadd.f32 %v2037, %v2389
        %2391 = vmatprep.mubr.bf16.mxu0 %v2280
        %2392 = vmatmul.mubr.bf16.gmra.mrb[0].mxu0 %v2279
        %v2393 = vpop.f32.mrb[0].mxu0
        %v2394 = vadd.f32 %v2042, %v2393
        %v2395 = vpop.f32.mrb[0].mxu0
        %v2396 = vadd.f32 %v2042, %v2395
        %v2397 = vpop.f32.mrb[0].mxu0
        %v2398 = vadd.f32 %v2047, %v2397
        %v2399 = vpop.f32.mrb[0].mxu0
        %v2400 = vadd.f32 %v2047, %v2399
        %2401 = vmatprep.mubr.bf16.mxu0 %v2282
        %2402 = vmatmul.mubr.bf16.gmra.mrb[0].mxu0 %v2281
        %v2403 = vpop.f32.mrb[0].mxu0
        %v2404 = vadd.f32 %v2052, %v2403
        %v2405 = vpop.f32.mrb[0].mxu0
        %v2406 = vadd.f32 %v2052, %v2405
        %v2407 = vpop.f32.mrb[0].mxu0
        %v2408 = vadd.f32 %v2057, %v2407
        %v2409 = vpop.f32.mrb[0].mxu0
        %v2410 = vadd.f32 %v2057, %v2409
        %2411 = vmatprep.mubr.bf16.mxu0 %v2284
        %2412 = vmatmul.mubr.bf16.gmra.mrb[0].mxu0 %v2283
        %v2413 = vpop.f32.mrb[0].mxu0
        %v2414 = vadd.f32 %v2062, %v2413
        %v2415 = vpop.f32.mrb[0].mxu0
        %v2416 = vadd.f32 %v2062, %v2415
        %v2417 = vpop.f32.mrb[0].mxu0
        %v2418 = vadd.f32 %v2067, %v2417
        %v2419 = vpop.f32.mrb[0].mxu0
        %v2420 = vadd.f32 %v2067, %v2419
        %2421 = vmatprep.mubr.bf16.mxu0 %v2286
        %2422 = vmatmul.mubr.bf16.gmra.mrb[0].mxu0 %v2285
        %v2423 = vpop.f32.mrb[0].mxu0
        %v2424 = vadd.f32 %v2072, %v2423
        %v2425 = vpop.f32.mrb[0].mxu0
        %v2426 = vadd.f32 %v2072, %v2425
        %v2427 = vpop.f32.mrb[0].mxu0
        %v2428 = vadd.f32 %v2077, %v2427
        %v2429 = vpop.f32.mrb[0].mxu0
        %v2430 = vadd.f32 %v2077, %v2429
        %2431 = vmatprep.mubr.bf16.mxu0 %v2288
        %2432 = vmatmul.mubr.bf16.gmra.mrb[0].mxu0 %v2287
        %v2433 = vpop.f32.mrb[0].mxu0
        %v2434 = vadd.f32 %v2082, %v2433
        %v2435 = vpop.f32.mrb[0].mxu0
        %v2436 = vadd.f32 %v2082, %v2435
        %v2437 = vpop.f32.mrb[0].mxu0
        %v2438 = vadd.f32 %v2087, %v2437
        %v2439 = vpop.f32.mrb[0].mxu0
        %v2440 = vadd.f32 %v2087, %v2439
        %2441 = vmatprep.mubr.bf16.mxu0 %v2290
        %2442 = vmatmul.mubr.bf16.gmra.mrb[0].mxu0 %v2289
        %v2443 = vpop.f32.mrb[0].mxu0
        %v2444 = vadd.f32 %v2092, %v2443
        %v2445 = vpop.f32.mrb[0].mxu0
        %v2446 = vadd.f32 %v2092, %v2445
        %v2447 = vpop.f32.mrb[0].mxu0
        %v2448 = vadd.f32 %v2097, %v2447
        %v2449 = vpop.f32.mrb[0].mxu0
        %v2450 = vadd.f32 %v2097, %v2449
        %2451 = vmatprep.mubr.bf16.mxu0 %v2292
        %2452 = vmatmul.mubr.bf16.gmra.mrb[0].mxu0 %v2291
        %v2453 = vpop.f32.mrb[0].mxu0
        %v2454 = vadd.f32 %v2102, %v2453
        %v2455 = vpop.f32.mrb[0].mxu0
        %v2456 = vadd.f32 %v2102, %v2455
        %v2457 = vpop.f32.mrb[0].mxu0
        %v2458 = vadd.f32 %v2107, %v2457
        %v2459 = vpop.f32.mrb[0].mxu0
        %v2460 = vadd.f32 %v2107, %v2459
        %2461 = vmatprep.mubr.bf16.mxu0 %v2294
        %2462 = vmatmul.mubr.bf16.gmra.mrb[0].mxu0 %v2293
        %v2463 = vpop.f32.mrb[0].mxu0
        %v2464 = vadd.f32 %v2112, %v2463
        %v2465 = vpop.f32.mrb[0].mxu0
        %v2466 = vadd.f32 %v2112, %v2465
        %v2467 = vpop.f32.mrb[0].mxu0
        %v2468 = vadd.f32 %v2117, %v2467
        %v2469 = vpop.f32.mrb[0].mxu0
        %v2470 = vadd.f32 %v2117, %v2469
        %2471 = vmatprep.mubr.bf16.mxu0 %v2296
        %2472 = vmatmul.mubr.bf16.gmra.mrb[0].mxu0 %v2295
        %v2473 = vpop.f32.mrb[0].mxu0
        %v2474 = vadd.f32 %v2122, %v2473
        %v2475 = vpop.f32.mrb[0].mxu0
        %v2476 = vadd.f32 %v2122, %v2475
        %v2477 = vpop.f32.mrb[0].mxu0
        %v2478 = vadd.f32 %v2127, %v2477
        %v2479 = vpop.f32.mrb[0].mxu0
        %v2480 = vadd.f32 %v2127, %v2479
        %2481 = vmatprep.mubr.bf16.mxu0 %v2298
        %2482 = vmatmul.mubr.bf16.gmra.mrb[0].mxu0 %v2297
        %v2483 = vpop.f32.mrb[0].mxu0
        %v2484 = vadd.f32 %v2132, %v2483
        %v2485 = vpop.f32.mrb[0].mxu0
        %v2486 = vadd.f32 %v2132, %v2485
        %v2487 = vpop.f32.mrb[0].mxu0
        %v2488 = vadd.f32 %v2137, %v2487
        %v2489 = vpop.f32.mrb[0].mxu0
        %v2490 = vadd.f32 %v2137, %v2489
        %2491 = vmatprep.mubr.bf16.mxu0 %v2300
        %2492 = vmatmul.mubr.bf16.gmra.mrb[0].mxu0 %v2299
        %v2493 = vpop.f32.mrb[0].mxu0
        %v2494 = vadd.f32 %v2142, %v2493
        %v2495 = vpop.f32.mrb[0].mxu0
        %v2496 = vadd.f32 %v2142, %v2495
        %v2497 = vpop.f32.mrb[0].mxu0
        %v2498 = vadd.f32 %v2147, %v2497
        %v2499 = vpop.f32.mrb[0].mxu0
        %v2500 = vadd.f32 %v2147, %v2499
        %2501 = vmatprep.mubr.bf16.mxu0 %v2302
        %2502 = vmatmul.mubr.bf16.gmra.mrb[0].mxu0 %v2301
        %v2503 = vpop.f32.mrb[0].mxu0
        %v2504 = vadd.f32 %v2152, %v2503
        %v2505 = vpop.f32.mrb[0].mxu0
        %v2506 = vadd.f32 %v2152, %v2505
        %v2507 = vpop.f32.mrb[0].mxu0
        %v2508 = vadd.f32 %v2157, %v2507
        %v2509 = vpop.f32.mrb[0].mxu0
        %v2510 = vadd.f32 %v2157, %v2509
        %2511 = vmatprep.mubr.bf16.mxu0 %v2304
        %2512 = vmatmul.mubr.bf16.gmra.mrb[0].mxu0 %v2303
        %v2513 = vpop.f32.mrb[0].mxu0
        %v2514 = vadd.f32 %v2162, %v2513
        %v2515 = vpop.f32.mrb[0].mxu0
        %v2516 = vadd.f32 %v2162, %v2515
        %v2517 = vpop.f32.mrb[0].mxu0
        %v2518 = vadd.f32 %v2167, %v2517
        %v2519 = vpop.f32.mrb[0].mxu0
        %v2520 = vadd.f32 %v2167, %v2519
        %2521 = vmatprep.mubr.bf16.mxu0 %v2306
        %2522 = vmatmul.mubr.bf16.gmra.mrb[0].mxu0 %v2305
        %v2523 = vpop.f32.mrb[0].mxu0
        %v2524 = vadd.f32 %v2172, %v2523
        %v2525 = vpop.f32.mrb[0].mxu0
        %v2526 = vadd.f32 %v2172, %v2525
        %v2527 = vpop.f32.mrb[0].mxu0
        %v2528 = vadd.f32 %v2177, %v2527
        %v2529 = vpop.f32.mrb[0].mxu0
        %v2530 = vadd.f32 %v2177, %v2529
        %2531 = vdwg.mxu0
        %2532 = vmatprep.subr.bf16.mxu0 %v1926
        %2533 = vmatpush1.bf16.msra.mxu0 %v1925
        %2534 = vmatprep.subr.bf16.mxu0 %v1930
        %2535 = vmatpush1.bf16.msra.mxu0 %v1929
        %2536 = vmatprep.subr.bf16.mxu0 %v1934
        %2537 = vmatpush1.bf16.msra.mxu0 %v1933
        %2538 = vmatprep.subr.bf16.mxu0 %v1938
        %2539 = vmatpush1.bf16.msra.mxu0 %v1937
        %2540 = vmatprep.subr.bf16.mxu0 %v1942
        %2541 = vmatpush1.bf16.msra.mxu0 %v1941
        %2542 = vmatprep.subr.bf16.mxu0 %v1946
        %2543 = vmatpush1.bf16.msra.mxu0 %v1945
        %2544 = vmatprep.subr.bf16.mxu0 %v1950
        %2545 = vmatpush1.bf16.msra.mxu0 %v1949
        %2546 = vmatprep.subr.bf16.mxu0 %v1954
        %2547 = vmatpush1.bf16.msra.mxu0 %v1953
        %2548 = vmatprep.subr.bf16.mxu0 %v1958
        %2549 = vmatpush1.bf16.msra.mxu0 %v1957
        %2550 = vmatprep.subr.bf16.mxu0 %v1962
        %2551 = vmatpush1.bf16.msra.mxu0 %v1961
        %2552 = vmatprep.subr.bf16.mxu0 %v1966
        %2553 = vmatpush1.bf16.msra.mxu0 %v1965
        %2554 = vmatprep.subr.bf16.mxu0 %v1970
        %2555 = vmatpush1.bf16.msra.mxu0 %v1969
        %2556 = vmatprep.subr.bf16.mxu0 %v1974
        %2557 = vmatpush1.bf16.msra.mxu0 %v1973
        %2558 = vmatprep.subr.bf16.mxu0 %v1978
        %2559 = vmatpush1.bf16.msra.mxu0 %v1977
        %2560 = vmatprep.subr.bf16.mxu0 %v1982
        %2561 = vmatpush1.bf16.msra.mxu0 %v1981
        %2562 = vmatprep.subr.bf16.mxu0 %v1986
        %2563 = vmatpush1.bf16.msra.mxu0 %v1985
        %2564 = vmatprep.mubr.bf16.mxu0 %v2276
        %2565 = vmatmul.mubr.bf16.gmra.mrb[0].mxu0 %v2275
        %v2566 = vpop.f32.mrb[0].mxu0
        %v2567 = vadd.f32 %v2022, %v2566
        %v2568 = vpop.f32.mrb[0].mxu0
        %v2569 = vadd.f32 %v2022, %v2568
        %v2570 = vpop.f32.mrb[0].mxu0
        %v2571 = vadd.f32 %v2027, %v2570
        %v2572 = vpop.f32.mrb[0].mxu0
        %v2573 = vadd.f32 %v2027, %v2572
        %2574 = vmatprep.mubr.bf16.mxu0 %v2278
        %2575 = vmatmul.mubr.bf16.gmra.mrb[0].mxu0 %v2277
        %v2576 = vpop.f32.mrb[0].mxu0
        %v2577 = vadd.f32 %v2032, %v2576
        %v2578 = vpop.f32.mrb[0].mxu0
        %v2579 = vadd.f32 %v2032, %v2578
        %v2580 = vpop.f32.mrb[0].mxu0
        %v2581 = vadd.f32 %v2037, %v2580
        %v2582 = vpop.f32.mrb[0].mxu0
        %v2583 = vadd.f32 %v2037, %v2582
        %2584 = vmatprep.mubr.bf16.mxu0 %v2280
        %2585 = vmatmul.mubr.bf16.gmra.mrb[0].mxu0 %v2279
        %v2586 = vpop.f32.mrb[0].mxu0
        %v2587 = vadd.f32 %v2042, %v2586
        %v2588 = vpop.f32.mrb[0].mxu0
        %v2589 = vadd.f32 %v2042, %v2588
        %v2590 = vpop.f32.mrb[0].mxu0
        %v2591 = vadd.f32 %v2047, %v2590
        %v2592 = vpop.f32.mrb[0].mxu0
        %v2593 = vadd.f32 %v2047, %v2592
        %2594 = vmatprep.mubr.bf16.mxu0 %v2282
        %2595 = vmatmul.mubr.bf16.gmra.mrb[0].mxu0 %v2281
        %v2596 = vpop.f32.mrb[0].mxu0
        %v2597 = vadd.f32 %v2052, %v2596
        %v2598 = vpop.f32.mrb[0].mxu0
        %v2599 = vadd.f32 %v2052, %v2598
        %v2600 = vpop.f32.mrb[0].mxu0
        %v2601 = vadd.f32 %v2057, %v2600
        %v2602 = vpop.f32.mrb[0].mxu0
        %v2603 = vadd.f32 %v2057, %v2602
        %2604 = vmatprep.mubr.bf16.mxu0 %v2284
        %2605 = vmatmul.mubr.bf16.gmra.mrb[0].mxu0 %v2283
        %v2606 = vpop.f32.mrb[0].mxu0
        %v2607 = vadd.f32 %v2062, %v2606
        %v2608 = vpop.f32.mrb[0].mxu0
        %v2609 = vadd.f32 %v2062, %v2608
        %v2610 = vpop.f32.mrb[0].mxu0
        %v2611 = vadd.f32 %v2067, %v2610
        %v2612 = vpop.f32.mrb[0].mxu0
        %v2613 = vadd.f32 %v2067, %v2612
        %2614 = vmatprep.mubr.bf16.mxu0 %v2286
        %2615 = vmatmul.mubr.bf16.gmra.mrb[0].mxu0 %v2285
        %v2616 = vpop.f32.mrb[0].mxu0
        %v2617 = vadd.f32 %v2072, %v2616
        %v2618 = vpop.f32.mrb[0].mxu0
        %v2619 = vadd.f32 %v2072, %v2618
        %v2620 = vpop.f32.mrb[0].mxu0
        %v2621 = vadd.f32 %v2077, %v2620
        %v2622 = vpop.f32.mrb[0].mxu0
        %v2623 = vadd.f32 %v2077, %v2622
        %2624 = vmatprep.mubr.bf16.mxu0 %v2288
        %2625 = vmatmul.mubr.bf16.gmra.mrb[0].mxu0 %v2287
        %v2626 = vpop.f32.mrb[0].mxu0
        %v2627 = vadd.f32 %v2082, %v2626
        %v2628 = vpop.f32.mrb[0].mxu0
        %v2629 = vadd.f32 %v2082, %v2628
        %v2630 = vpop.f32.mrb[0].mxu0
        %v2631 = vadd.f32 %v2087, %v2630
        %v2632 = vpop.f32.mrb[0].mxu0
        %v2633 = vadd.f32 %v2087, %v2632
        %2634 = vmatprep.mubr.bf16.mxu0 %v2290
        %2635 = vmatmul.mubr.bf16.gmra.mrb[0].mxu0 %v2289
        %v2636 = vpop.f32.mrb[0].mxu0
        %v2637 = vadd.f32 %v2092, %v2636
        %v2638 = vpop.f32.mrb[0].mxu0
        %v2639 = vadd.f32 %v2092, %v2638
        %v2640 = vpop.f32.mrb[0].mxu0
        %v2641 = vadd.f32 %v2097, %v2640
        %v2642 = vpop.f32.mrb[0].mxu0
        %v2643 = vadd.f32 %v2097, %v2642
        %2644 = vmatprep.mubr.bf16.mxu0 %v2292
        %2645 = vmatmul.mubr.bf16.gmra.mrb[0].mxu0 %v2291
        %v2646 = vpop.f32.mrb[0].mxu0
        %v2647 = vadd.f32 %v2102, %v2646
        %v2648 = vpop.f32.mrb[0].mxu0
        %v2649 = vadd.f32 %v2102, %v2648
        %v2650 = vpop.f32.mrb[0].mxu0
        %v2651 = vadd.f32 %v2107, %v2650
        %v2652 = vpop.f32.mrb[0].mxu0
        %v2653 = vadd.f32 %v2107, %v2652
        %2654 = vmatprep.mubr.bf16.mxu0 %v2294
        %2655 = vmatmul.mubr.bf16.gmra.mrb[0].mxu0 %v2293
        %v2656 = vpop.f32.mrb[0].mxu0
        %v2657 = vadd.f32 %v2112, %v2656
        %v2658 = vpop.f32.mrb[0].mxu0
        %v2659 = vadd.f32 %v2112, %v2658
        %v2660 = vpop.f32.mrb[0].mxu0
        %v2661 = vadd.f32 %v2117, %v2660
        %v2662 = vpop.f32.mrb[0].mxu0
        %v2663 = vadd.f32 %v2117, %v2662
        %2664 = vmatprep.mubr.bf16.mxu0 %v2296
        %2665 = vmatmul.mubr.bf16.gmra.mrb[0].mxu0 %v2295
        %v2666 = vpop.f32.mrb[0].mxu0
        %v2667 = vadd.f32 %v2122, %v2666
        %v2668 = vpop.f32.mrb[0].mxu0
        %v2669 = vadd.f32 %v2122, %v2668
        %v2670 = vpop.f32.mrb[0].mxu0
        %v2671 = vadd.f32 %v2127, %v2670
        %v2672 = vpop.f32.mrb[0].mxu0
        %v2673 = vadd.f32 %v2127, %v2672
        %2674 = vmatprep.mubr.bf16.mxu0 %v2298
        %2675 = vmatmul.mubr.bf16.gmra.mrb[0].mxu0 %v2297
        %v2676 = vpop.f32.mrb[0].mxu0
        %v2677 = vadd.f32 %v2132, %v2676
        %v2678 = vpop.f32.mrb[0].mxu0
        %v2679 = vadd.f32 %v2132, %v2678
        %v2680 = vpop.f32.mrb[0].mxu0
        %v2681 = vadd.f32 %v2137, %v2680
        %v2682 = vpop.f32.mrb[0].mxu0
        %v2683 = vadd.f32 %v2137, %v2682
        %2684 = vmatprep.mubr.bf16.mxu0 %v2300
        %2685 = vmatmul.mubr.bf16.gmra.mrb[0].mxu0 %v2299
        %v2686 = vpop.f32.mrb[0].mxu0
        %v2687 = vadd.f32 %v2142, %v2686
        %v2688 = vpop.f32.mrb[0].mxu0
        %v2689 = vadd.f32 %v2142, %v2688
        %v2690 = vpop.f32.mrb[0].mxu0
        %v2691 = vadd.f32 %v2147, %v2690
        %v2692 = vpop.f32.mrb[0].mxu0
        %v2693 = vadd.f32 %v2147, %v2692
        %2694 = vmatprep.mubr.bf16.mxu0 %v2302
        %2695 = vmatmul.mubr.bf16.gmra.mrb[0].mxu0 %v2301
        %v2696 = vpop.f32.mrb[0].mxu0
        %v2697 = vadd.f32 %v2152, %v2696
        %v2698 = vpop.f32.mrb[0].mxu0
        %v2699 = vadd.f32 %v2152, %v2698
        %v2700 = vpop.f32.mrb[0].mxu0
        %v2701 = vadd.f32 %v2157, %v2700
        %v2702 = vpop.f32.mrb[0].mxu0
        %v2703 = vadd.f32 %v2157, %v2702
        %2704 = vmatprep.mubr.bf16.mxu0 %v2304
        %2705 = vmatmul.mubr.bf16.gmra.mrb[0].mxu0 %v2303
        %v2706 = vpop.f32.mrb[0].mxu0
        %v2707 = vadd.f32 %v2162, %v2706
        %v2708 = vpop.f32.mrb[0].mxu0
        %v2709 = vadd.f32 %v2162, %v2708
        %v2710 = vpop.f32.mrb[0].mxu0
        %v2711 = vadd.f32 %v2167, %v2710
        %v2712 = vpop.f32.mrb[0].mxu0
        %v2713 = vadd.f32 %v2167, %v2712
        %2714 = vmatprep.mubr.bf16.mxu0 %v2306
        %2715 = vmatmul.mubr.bf16.gmra.mrb[0].mxu0 %v2305
        %v2716 = vpop.f32.mrb[0].mxu0
        %v2717 = vadd.f32 %v2172, %v2716
        %v2718 = vpop.f32.mrb[0].mxu0
        %v2719 = vadd.f32 %v2172, %v2718
        %v2720 = vpop.f32.mrb[0].mxu0
        %v2721 = vadd.f32 %v2177, %v2720
        %v2722 = vpop.f32.mrb[0].mxu0
        %v2723 = vadd.f32 %v2177, %v2722
        %2724 = vdwg.mxu0
        %v2725 = vmul.f32 %v2374, 0.5
        %v2726 = vmul.f32 %v2376, 0.5
        %v2727 = vmul.f32 %v2567, 0.5
        %v2728 = vmul.f32 %v2569, 0.5
        %v2729 = vmul.f32 %v2378, 0.5
        %v2730 = vmul.f32 %v2380, 0.5
        %v2731 = vmul.f32 %v2571, 0.5
        %v2732 = vmul.f32 %v2573, 0.5
        %v2733 = vmul.f32 %v2384, 0.5
        %v2734 = vmul.f32 %v2386, 0.5
        %v2735 = vmul.f32 %v2577, 0.5
        %v2736 = vmul.f32 %v2579, 0.5
        %v2737 = vmul.f32 %v2388, 0.5
        %v2738 = vmul.f32 %v2390, 0.5
        %v2739 = vmul.f32 %v2581, 0.5
        %v2740 = vmul.f32 %v2583, 0.5
        %v2741 = vmul.f32 %v2394, 0.5
        %v2742 = vmul.f32 %v2396, 0.5
        %v2743 = vmul.f32 %v2587, 0.5
        %v2744 = vmul.f32 %v2589, 0.5
        %v2745 = vmul.f32 %v2398, 0.5
        %v2746 = vmul.f32 %v2400, 0.5
        %v2747 = vmul.f32 %v2591, 0.5
        %v2748 = vmul.f32 %v2593, 0.5
        %v2749 = vmul.f32 %v2404, 0.5
        %v2750 = vmul.f32 %v2406, 0.5
        %v2751 = vmul.f32 %v2597, 0.5
        %v2752 = vmul.f32 %v2599, 0.5
        %v2753 = vmul.f32 %v2408, 0.5
        %v2754 = vmul.f32 %v2410, 0.5
        %v2755 = vmul.f32 %v2601, 0.5
        %v2756 = vmul.f32 %v2603, 0.5
        %v2757 = vmul.f32 %v2414, 0.5
        %v2758 = vmul.f32 %v2416, 0.5
        %v2759 = vmul.f32 %v2607, 0.5
        %v2760 = vmul.f32 %v2609, 0.5
        %v2761 = vmul.f32 %v2418, 0.5
        %v2762 = vmul.f32 %v2420, 0.5
        %v2763 = vmul.f32 %v2611, 0.5
        %v2764 = vmul.f32 %v2613, 0.5
        %v2765 = vmul.f32 %v2424, 0.5
        %v2766 = vmul.f32 %v2426, 0.5
        %v2767 = vmul.f32 %v2617, 0.5
        %v2768 = vmul.f32 %v2619, 0.5
        %v2769 = vmul.f32 %v2428, 0.5
        %v2770 = vmul.f32 %v2430, 0.5
        %v2771 = vmul.f32 %v2621, 0.5
        %v2772 = vmul.f32 %v2623, 0.5
        %v2773 = vmul.f32 %v2434, 0.5
        %v2774 = vmul.f32 %v2436, 0.5
        %v2775 = vmul.f32 %v2627, 0.5
        %v2776 = vmul.f32 %v2629, 0.5
        %v2777 = vmul.f32 %v2438, 0.5
        %v2778 = vmul.f32 %v2440, 0.5
        %v2779 = vmul.f32 %v2631, 0.5
        %v2780 = vmul.f32 %v2633, 0.5
        %v2781 = vmul.f32 %v2444, 0.5
        %v2782 = vmul.f32 %v2446, 0.5
        %v2783 = vmul.f32 %v2637, 0.5
        %v2784 = vmul.f32 %v2639, 0.5
        %v2785 = vmul.f32 %v2448, 0.5
        %v2786 = vmul.f32 %v2450, 0.5
        %v2787 = vmul.f32 %v2641, 0.5
        %v2788 = vmul.f32 %v2643, 0.5
        %v2789 = vmul.f32 %v2454, 0.5
        %v2790 = vmul.f32 %v2456, 0.5
        %v2791 = vmul.f32 %v2647, 0.5
        %v2792 = vmul.f32 %v2649, 0.5
        %v2793 = vmul.f32 %v2458, 0.5
        %v2794 = vmul.f32 %v2460, 0.5
        %v2795 = vmul.f32 %v2651, 0.5
        %v2796 = vmul.f32 %v2653, 0.5
        %v2797 = vmul.f32 %v2464, 0.5
        %v2798 = vmul.f32 %v2466, 0.5
        %v2799 = vmul.f32 %v2657, 0.5
        %v2800 = vmul.f32 %v2659, 0.5
        %v2801 = vmul.f32 %v2468, 0.5
        %v2802 = vmul.f32 %v2470, 0.5
        %v2803 = vmul.f32 %v2661, 0.5
        %v2804 = vmul.f32 %v2663, 0.5
        %v2805 = vmul.f32 %v2474, 0.5
        %v2806 = vmul.f32 %v2476, 0.5
        %v2807 = vmul.f32 %v2667, 0.5
        %v2808 = vmul.f32 %v2669, 0.5
        %v2809 = vmul.f32 %v2478, 0.5
        %v2810 = vmul.f32 %v2480, 0.5
        %v2811 = vmul.f32 %v2671, 0.5
        %v2812 = vmul.f32 %v2673, 0.5
        %v2813 = vmul.f32 %v2484, 0.5
        %v2814 = vmul.f32 %v2486, 0.5
        %v2815 = vmul.f32 %v2677, 0.5
        %v2816 = vmul.f32 %v2679, 0.5
        %v2817 = vmul.f32 %v2488, 0.5
        %v2818 = vmul.f32 %v2490, 0.5
        %v2819 = vmul.f32 %v2681, 0.5
        %v2820 = vmul.f32 %v2683, 0.5
        %v2821 = vmul.f32 %v2494, 0.5
        %v2822 = vmul.f32 %v2496, 0.5
        %v2823 = vmul.f32 %v2687, 0.5
        %v2824 = vmul.f32 %v2689, 0.5
        %v2825 = vmul.f32 %v2498, 0.5
        %v2826 = vmul.f32 %v2500, 0.5
        %v2827 = vmul.f32 %v2691, 0.5
        %v2828 = vmul.f32 %v2693, 0.5
        %v2829 = vmul.f32 %v2504, 0.5
        %v2830 = vmul.f32 %v2506, 0.5
        %v2831 = vmul.f32 %v2697, 0.5
        %v2832 = vmul.f32 %v2699, 0.5
        %v2833 = vmul.f32 %v2508, 0.5
        %v2834 = vmul.f32 %v2510, 0.5
        %v2835 = vmul.f32 %v2701, 0.5
        %v2836 = vmul.f32 %v2703, 0.5
        %v2837 = vmul.f32 %v2514, 0.5
        %v2838 = vmul.f32 %v2516, 0.5
        %v2839 = vmul.f32 %v2707, 0.5
        %v2840 = vmul.f32 %v2709, 0.5
        %v2841 = vmul.f32 %v2518, 0.5
        %v2842 = vmul.f32 %v2520, 0.5
        %v2843 = vmul.f32 %v2711, 0.5
        %v2844 = vmul.f32 %v2713, 0.5
        %v2845 = vmul.f32 %v2524, 0.5
        %v2846 = vmul.f32 %v2526, 0.5
        %v2847 = vmul.f32 %v2717, 0.5
        %v2848 = vmul.f32 %v2719, 0.5
        %v2849 = vmul.f32 %v2528, 0.5
        %v2850 = vmul.f32 %v2530, 0.5
        %v2851 = vmul.f32 %v2721, 0.5
        %v2852 = vmul.f32 %v2723, 0.5
        %v2853 = vmul.f32 %v2374, 0.044715
        %v2854 = vmul.f32 %v2376, 0.044715
        %v2855 = vmul.f32 %v2567, 0.044715
        %v2856 = vmul.f32 %v2569, 0.044715
        %v2857 = vmul.f32 %v2378, 0.044715
        %v2858 = vmul.f32 %v2380, 0.044715
        %v2859 = vmul.f32 %v2571, 0.044715
        %v2860 = vmul.f32 %v2573, 0.044715
        %v2861 = vmul.f32 %v2384, 0.044715
        %v2862 = vmul.f32 %v2386, 0.044715
        %v2863 = vmul.f32 %v2577, 0.044715
        %v2864 = vmul.f32 %v2579, 0.044715
        %v2865 = vmul.f32 %v2388, 0.044715
        %v2866 = vmul.f32 %v2390, 0.044715
        %v2867 = vmul.f32 %v2581, 0.044715
        %v2868 = vmul.f32 %v2583, 0.044715
        %v2869 = vmul.f32 %v2394, 0.044715
        %v2870 = vmul.f32 %v2396, 0.044715
        %v2871 = vmul.f32 %v2587, 0.044715
        %v2872 = vmul.f32 %v2589, 0.044715
        %v2873 = vmul.f32 %v2398, 0.044715
        %v2874 = vmul.f32 %v2400, 0.044715
        %v2875 = vmul.f32 %v2591, 0.044715
        %v2876 = vmul.f32 %v2593, 0.044715
        %v2877 = vmul.f32 %v2404, 0.044715
        %v2878 = vmul.f32 %v2406, 0.044715
        %v2879 = vmul.f32 %v2597, 0.044715
        %v2880 = vmul.f32 %v2599, 0.044715
        %v2881 = vmul.f32 %v2408, 0.044715
        %v2882 = vmul.f32 %v2410, 0.044715
        %v2883 = vmul.f32 %v2601, 0.044715
        %v2884 = vmul.f32 %v2603, 0.044715
        %v2885 = vmul.f32 %v2414, 0.044715
        %v2886 = vmul.f32 %v2416, 0.044715
        %v2887 = vmul.f32 %v2607, 0.044715
        %v2888 = vmul.f32 %v2609, 0.044715
        %v2889 = vmul.f32 %v2418, 0.044715
        %v2890 = vmul.f32 %v2420, 0.044715
        %v2891 = vmul.f32 %v2611, 0.044715
        %v2892 = vmul.f32 %v2613, 0.044715
        %v2893 = vmul.f32 %v2424, 0.044715
        %v2894 = vmul.f32 %v2426, 0.044715
        %v2895 = vmul.f32 %v2617, 0.044715
        %v2896 = vmul.f32 %v2619, 0.044715
        %v2897 = vmul.f32 %v2428, 0.044715
        %v2898 = vmul.f32 %v2430, 0.044715
        %v2899 = vmul.f32 %v2621, 0.044715
        %v2900 = vmul.f32 %v2623, 0.044715
        %v2901 = vmul.f32 %v2434, 0.044715
        %v2902 = vmul.f32 %v2436, 0.044715
        %v2903 = vmul.f32 %v2627, 0.044715
        %v2904 = vmul.f32 %v2629, 0.044715
        %v2905 = vmul.f32 %v2438, 0.044715
        %v2906 = vmul.f32 %v2440, 0.044715
        %v2907 = vmul.f32 %v2631, 0.044715
        %v2908 = vmul.f32 %v2633, 0.044715
        %v2909 = vmul.f32 %v2444, 0.044715
        %v2910 = vmul.f32 %v2446, 0.044715
        %v2911 = vmul.f32 %v2637, 0.044715
        %v2912 = vmul.f32 %v2639, 0.044715
        %v2913 = vmul.f32 %v2448, 0.044715
        %v2914 = vmul.f32 %v2450, 0.044715
        %v2915 = vmul.f32 %v2641, 0.044715
        %v2916 = vmul.f32 %v2643, 0.044715
        %v2917 = vmul.f32 %v2454, 0.044715
        %v2918 = vmul.f32 %v2456, 0.044715
        %v2919 = vmul.f32 %v2647, 0.044715
        %v2920 = vmul.f32 %v2649, 0.044715
        %v2921 = vmul.f32 %v2458, 0.044715
        %v2922 = vmul.f32 %v2460, 0.044715
        %v2923 = vmul.f32 %v2651, 0.044715
        %v2924 = vmul.f32 %v2653, 0.044715
        %v2925 = vmul.f32 %v2464, 0.044715
        %v2926 = vmul.f32 %v2466, 0.044715
        %v2927 = vmul.f32 %v2657, 0.044715
        %v2928 = vmul.f32 %v2659, 0.044715
        %v2929 = vmul.f32 %v2468, 0.044715
        %v2930 = vmul.f32 %v2470, 0.044715
        %v2931 = vmul.f32 %v2661, 0.044715
        %v2932 = vmul.f32 %v2663, 0.044715
        %v2933 = vmul.f32 %v2474, 0.044715
        %v2934 = vmul.f32 %v2476, 0.044715
        %v2935 = vmul.f32 %v2667, 0.044715
        %v2936 = vmul.f32 %v2669, 0.044715
        %v2937 = vmul.f32 %v2478, 0.044715
        %v2938 = vmul.f32 %v2480, 0.044715
        %v2939 = vmul.f32 %v2671, 0.044715
        %v2940 = vmul.f32 %v2673, 0.044715
        %v2941 = vmul.f32 %v2484, 0.044715
        %v2942 = vmul.f32 %v2486, 0.044715
        %v2943 = vmul.f32 %v2677, 0.044715
        %v2944 = vmul.f32 %v2679, 0.044715
        %v2945 = vmul.f32 %v2488, 0.044715
        %v2946 = vmul.f32 %v2490, 0.044715
        %v2947 = vmul.f32 %v2681, 0.044715
        %v2948 = vmul.f32 %v2683, 0.044715
        %v2949 = vmul.f32 %v2494, 0.044715
        %v2950 = vmul.f32 %v2496, 0.044715
        %v2951 = vmul.f32 %v2687, 0.044715
        %v2952 = vmul.f32 %v2689, 0.044715
        %v2953 = vmul.f32 %v2498, 0.044715
        %v2954 = vmul.f32 %v2500, 0.044715
        %v2955 = vmul.f32 %v2691, 0.044715
        %v2956 = vmul.f32 %v2693, 0.044715
        %v2957 = vmul.f32 %v2504, 0.044715
        %v2958 = vmul.f32 %v2506, 0.044715
        %v2959 = vmul.f32 %v2697, 0.044715
        %v2960 = vmul.f32 %v2699, 0.044715
        %v2961 = vmul.f32 %v2508, 0.044715
        %v2962 = vmul.f32 %v2510, 0.044715
        %v2963 = vmul.f32 %v2701, 0.044715
        %v2964 = vmul.f32 %v2703, 0.044715
        %v2965 = vmul.f32 %v2514, 0.044715
        %v2966 = vmul.f32 %v2516, 0.044715
        %v2967 = vmul.f32 %v2707, 0.044715
        %v2968 = vmul.f32 %v2709, 0.044715
        %v2969 = vmul.f32 %v2518, 0.044715
        %v2970 = vmul.f32 %v2520, 0.044715
        %v2971 = vmul.f32 %v2711, 0.044715
        %v2972 = vmul.f32 %v2713, 0.044715
        %v2973 = vmul.f32 %v2524, 0.044715
        %v2974 = vmul.f32 %v2526, 0.044715
        %v2975 = vmul.f32 %v2717, 0.044715
        %v2976 = vmul.f32 %v2719, 0.044715
        %v2977 = vmul.f32 %v2528, 0.044715
        %v2978 = vmul.f32 %v2530, 0.044715
        %v2979 = vmul.f32 %v2721, 0.044715
        %v2980 = vmul.f32 %v2723, 0.044715
        %v2981 = vmul.f32 %v2853, %v2374
        %v2982 = vmul.f32 %v2854, %v2376
        %v2983 = vmul.f32 %v2855, %v2567
        %v2984 = vmul.f32 %v2856, %v2569
        %v2985 = vmul.f32 %v2857, %v2378
        %v2986 = vmul.f32 %v2858, %v2380
        %v2987 = vmul.f32 %v2859, %v2571
        %v2988 = vmul.f32 %v2860, %v2573
        %v2989 = vmul.f32 %v2861, %v2384
        %v2990 = vmul.f32 %v2862, %v2386
        %v2991 = vmul.f32 %v2863, %v2577
        %v2992 = vmul.f32 %v2864, %v2579
        %v2993 = vmul.f32 %v2865, %v2388
        %v2994 = vmul.f32 %v2866, %v2390
        %v2995 = vmul.f32 %v2867, %v2581
        %v2996 = vmul.f32 %v2868, %v2583
        %v2997 = vmul.f32 %v2869, %v2394
        %v2998 = vmul.f32 %v2870, %v2396
        %v2999 = vmul.f32 %v2871, %v2587
        %v3000 = vmul.f32 %v2872, %v2589
        %v3001 = vmul.f32 %v2873, %v2398
        %v3002 = vmul.f32 %v2874, %v2400
        %v3003 = vmul.f32 %v2875, %v2591
        %v3004 = vmul.f32 %v2876, %v2593
        %v3005 = vmul.f32 %v2877, %v2404
        %v3006 = vmul.f32 %v2878, %v2406
        %v3007 = vmul.f32 %v2879, %v2597
        %v3008 = vmul.f32 %v2880, %v2599
        %v3009 = vmul.f32 %v2881, %v2408
        %v3010 = vmul.f32 %v2882, %v2410
        %v3011 = vmul.f32 %v2883, %v2601
        %v3012 = vmul.f32 %v2884, %v2603
        %v3013 = vmul.f32 %v2885, %v2414
        %v3014 = vmul.f32 %v2886, %v2416
        %v3015 = vmul.f32 %v2887, %v2607
        %v3016 = vmul.f32 %v2888, %v2609
        %v3017 = vmul.f32 %v2889, %v2418
        %v3018 = vmul.f32 %v2890, %v2420
        %v3019 = vmul.f32 %v2891, %v2611
        %v3020 = vmul.f32 %v2892, %v2613
        %v3021 = vmul.f32 %v2893, %v2424
        %v3022 = vmul.f32 %v2894, %v2426
        %v3023 = vmul.f32 %v2895, %v2617
        %v3024 = vmul.f32 %v2896, %v2619
        %v3025 = vmul.f32 %v2897, %v2428
        %v3026 = vmul.f32 %v2898, %v2430
        %v3027 = vmul.f32 %v2899, %v2621
        %v3028 = vmul.f32 %v2900, %v2623
        %v3029 = vmul.f32 %v2901, %v2434
        %v3030 = vmul.f32 %v2902, %v2436
        %v3031 = vmul.f32 %v2903, %v2627
        %v3032 = vmul.f32 %v2904, %v2629
        %v3033 = vmul.f32 %v2905, %v2438
        %v3034 = vmul.f32 %v2906, %v2440
        %v3035 = vmul.f32 %v2907, %v2631
        %v3036 = vmul.f32 %v2908, %v2633
        %v3037 = vmul.f32 %v2909, %v2444
        %v3038 = vmul.f32 %v2910, %v2446
        %v3039 = vmul.f32 %v2911, %v2637
        %v3040 = vmul.f32 %v2912, %v2639
        %v3041 = vmul.f32 %v2913, %v2448
        %v3042 = vmul.f32 %v2914, %v2450
        %v3043 = vmul.f32 %v2915, %v2641
        %v3044 = vmul.f32 %v2916, %v2643
        %v3045 = vmul.f32 %v2917, %v2454
        %v3046 = vmul.f32 %v2918, %v2456
        %v3047 = vmul.f32 %v2919, %v2647
        %v3048 = vmul.f32 %v2920, %v2649
        %v3049 = vmul.f32 %v2921, %v2458
        %v3050 = vmul.f32 %v2922, %v2460
        %v3051 = vmul.f32 %v2923, %v2651
        %v3052 = vmul.f32 %v2924, %v2653
        %v3053 = vmul.f32 %v2925, %v2464
        %v3054 = vmul.f32 %v2926, %v2466
        %v3055 = vmul.f32 %v2927, %v2657
        %v3056 = vmul.f32 %v2928, %v2659
        %v3057 = vmul.f32 %v2929, %v2468
        %v3058 = vmul.f32 %v2930, %v2470
        %v3059 = vmul.f32 %v2931, %v2661
        %v3060 = vmul.f32 %v2932, %v2663
        %v3061 = vmul.f32 %v2933, %v2474
        %v3062 = vmul.f32 %v2934, %v2476
        %v3063 = vmul.f32 %v2935, %v2667
        %v3064 = vmul.f32 %v2936, %v2669
        %v3065 = vmul.f32 %v2937, %v2478
        %v3066 = vmul.f32 %v2938, %v2480
        %v3067 = vmul.f32 %v2939, %v2671
        %v3068 = vmul.f32 %v2940, %v2673
        %v3069 = vmul.f32 %v2941, %v2484
        %v3070 = vmul.f32 %v2942, %v2486
        %v3071 = vmul.f32 %v2943, %v2677
        %v3072 = vmul.f32 %v2944, %v2679
        %v3073 = vmul.f32 %v2945, %v2488
        %v3074 = vmul.f32 %v2946, %v2490
        %v3075 = vmul.f32 %v2947, %v2681
        %v3076 = vmul.f32 %v2948, %v2683
        %v3077 = vmul.f32 %v2949, %v2494
        %v3078 = vmul.f32 %v2950, %v2496
        %v3079 = vmul.f32 %v2951, %v2687
        %v3080 = vmul.f32 %v2952, %v2689
        %v3081 = vmul.f32 %v2953, %v2498
        %v3082 = vmul.f32 %v2954, %v2500
        %v3083 = vmul.f32 %v2955, %v2691
        %v3084 = vmul.f32 %v2956, %v2693
        %v3085 = vmul.f32 %v2957, %v2504
        %v3086 = vmul.f32 %v2958, %v2506
        %v3087 = vmul.f32 %v2959, %v2697
        %v3088 = vmul.f32 %v2960, %v2699
        %v3089 = vmul.f32 %v2961, %v2508
        %v3090 = vmul.f32 %v2962, %v2510
        %v3091 = vmul.f32 %v2963, %v2701
        %v3092 = vmul.f32 %v2964, %v2703
        %v3093 = vmul.f32 %v2965, %v2514
        %v3094 = vmul.f32 %v2966, %v2516
        %v3095 = vmul.f32 %v2967, %v2707
        %v3096 = vmul.f32 %v2968, %v2709
        %v3097 = vmul.f32 %v2969, %v2518
        %v3098 = vmul.f32 %v2970, %v2520
        %v3099 = vmul.f32 %v2971, %v2711
        %v3100 = vmul.f32 %v2972, %v2713
        %v3101 = vmul.f32 %v2973, %v2524
        %v3102 = vmul.f32 %v2974, %v2526
        %v3103 = vmul.f32 %v2975, %v2717
        %v3104 = vmul.f32 %v2976, %v2719
        %v3105 = vmul.f32 %v2977, %v2528
        %v3106 = vmul.f32 %v2978, %v2530
        %v3107 = vmul.f32 %v2979, %v2721
        %v3108 = vmul.f32 %v2980, %v2723
        %v3109 = vmul.f32 %v2981, %v2374
        %v3110 = vmul.f32 %v2982, %v2376
        %v3111 = vmul.f32 %v2983, %v2567
        %v3112 = vmul.f32 %v2984, %v2569
        %v3113 = vmul.f32 %v2985, %v2378
        %v3114 = vmul.f32 %v2986, %v2380
        %v3115 = vmul.f32 %v2987, %v2571
        %v3116 = vmul.f32 %v2988, %v2573
        %v3117 = vmul.f32 %v2989, %v2384
        %v3118 = vmul.f32 %v2990, %v2386
        %v3119 = vmul.f32 %v2991, %v2577
        %v3120 = vmul.f32 %v2992, %v2579
        %v3121 = vmul.f32 %v2993, %v2388
        %v3122 = vmul.f32 %v2994, %v2390
        %v3123 = vmul.f32 %v2995, %v2581
        %v3124 = vmul.f32 %v2996, %v2583
        %v3125 = vmul.f32 %v2997, %v2394
        %v3126 = vmul.f32 %v2998, %v2396
        %v3127 = vmul.f32 %v2999, %v2587
        %v3128 = vmul.f32 %v3000, %v2589
        %v3129 = vmul.f32 %v3001, %v2398
        %v3130 = vmul.f32 %v3002, %v2400
        %v3131 = vmul.f32 %v3003, %v2591
        %v3132 = vmul.f32 %v3004, %v2593
        %v3133 = vmul.f32 %v3005, %v2404
        %v3134 = vmul.f32 %v3006, %v2406
        %v3135 = vmul.f32 %v3007, %v2597
        %v3136 = vmul.f32 %v3008, %v2599
        %v3137 = vmul.f32 %v3009, %v2408
        %v3138 = vmul.f32 %v3010, %v2410
        %v3139 = vmul.f32 %v3011, %v2601
        %v3140 = vmul.f32 %v3012, %v2603
        %v3141 = vmul.f32 %v3013, %v2414
        %v3142 = vmul.f32 %v3014, %v2416
        %v3143 = vmul.f32 %v3015, %v2607
        %v3144 = vmul.f32 %v3016, %v2609
        %v3145 = vmul.f32 %v3017, %v2418
        %v3146 = vmul.f32 %v3018, %v2420
        %v3147 = vmul.f32 %v3019, %v2611
        %v3148 = vmul.f32 %v3020, %v2613
        %v3149 = vmul.f32 %v3021, %v2424
        %v3150 = vmul.f32 %v3022, %v2426
        %v3151 = vmul.f32 %v3023, %v2617
        %v3152 = vmul.f32 %v3024, %v2619
        %v3153 = vmul.f32 %v3025, %v2428
        %v3154 = vmul.f32 %v3026, %v2430
        %v3155 = vmul.f32 %v3027, %v2621
        %v3156 = vmul.f32 %v3028, %v2623
        %v3157 = vmul.f32 %v3029, %v2434
        %v3158 = vmul.f32 %v3030, %v2436
        %v3159 = vmul.f32 %v3031, %v2627
        %v3160 = vmul.f32 %v3032, %v2629
        %v3161 = vmul.f32 %v3033, %v2438
        %v3162 = vmul.f32 %v3034, %v2440
        %v3163 = vmul.f32 %v3035, %v2631
        %v3164 = vmul.f32 %v3036, %v2633
        %v3165 = vmul.f32 %v3037, %v2444
        %v3166 = vmul.f32 %v3038, %v2446
        %v3167 = vmul.f32 %v3039, %v2637
        %v3168 = vmul.f32 %v3040, %v2639
        %v3169 = vmul.f32 %v3041, %v2448
        %v3170 = vmul.f32 %v3042, %v2450
        %v3171 = vmul.f32 %v3043, %v2641
        %v3172 = vmul.f32 %v3044, %v2643
        %v3173 = vmul.f32 %v3045, %v2454
        %v3174 = vmul.f32 %v3046, %v2456
        %v3175 = vmul.f32 %v3047, %v2647
        %v3176 = vmul.f32 %v3048, %v2649
        %v3177 = vmul.f32 %v3049, %v2458
        %v3178 = vmul.f32 %v3050, %v2460
        %v3179 = vmul.f32 %v3051, %v2651
        %v3180 = vmul.f32 %v3052, %v2653
        %v3181 = vmul.f32 %v3053, %v2464
        %v3182 = vmul.f32 %v3054, %v2466
        %v3183 = vmul.f32 %v3055, %v2657
        %v3184 = vmul.f32 %v3056, %v2659
        %v3185 = vmul.f32 %v3057, %v2468
        %v3186 = vmul.f32 %v3058, %v2470
        %v3187 = vmul.f32 %v3059, %v2661
        %v3188 = vmul.f32 %v3060, %v2663
        %v3189 = vmul.f32 %v3061, %v2474
        %v3190 = vmul.f32 %v3062, %v2476
        %v3191 = vmul.f32 %v3063, %v2667
        %v3192 = vmul.f32 %v3064, %v2669
        %v3193 = vmul.f32 %v3065, %v2478
        %v3194 = vmul.f32 %v3066, %v2480
        %v3195 = vmul.f32 %v3067, %v2671
        %v3196 = vmul.f32 %v3068, %v2673
        %v3197 = vmul.f32 %v3069, %v2484
        %v3198 = vmul.f32 %v3070, %v2486
        %v3199 = vmul.f32 %v3071, %v2677
        %v3200 = vmul.f32 %v3072, %v2679
        %v3201 = vmul.f32 %v3073, %v2488
        %v3202 = vmul.f32 %v3074, %v2490
        %v3203 = vmul.f32 %v3075, %v2681
        %v3204 = vmul.f32 %v3076, %v2683
        %v3205 = vmul.f32 %v3077, %v2494
        %v3206 = vmul.f32 %v3078, %v2496
        %v3207 = vmul.f32 %v3079, %v2687
        %v3208 = vmul.f32 %v3080, %v2689
        %v3209 = vmul.f32 %v3081, %v2498
        %v3210 = vmul.f32 %v3082, %v2500
        %v3211 = vmul.f32 %v3083, %v2691
        %v3212 = vmul.f32 %v3084, %v2693
        %v3213 = vmul.f32 %v3085, %v2504
        %v3214 = vmul.f32 %v3086, %v2506
        %v3215 = vmul.f32 %v3087, %v2697
        %v3216 = vmul.f32 %v3088, %v2699
        %v3217 = vmul.f32 %v3089, %v2508
        %v3218 = vmul.f32 %v3090, %v2510
        %v3219 = vmul.f32 %v3091, %v2701
        %v3220 = vmul.f32 %v3092, %v2703
        %v3221 = vmul.f32 %v3093, %v2514
        %v3222 = vmul.f32 %v3094, %v2516
        %v3223 = vmul.f32 %v3095, %v2707
        %v3224 = vmul.f32 %v3096, %v2709
        %v3225 = vmul.f32 %v3097, %v2518
        %v3226 = vmul.f32 %v3098, %v2520
        %v3227 = vmul.f32 %v3099, %v2711
        %v3228 = vmul.f32 %v3100, %v2713
        %v3229 = vmul.f32 %v3101, %v2524
        %v3230 = vmul.f32 %v3102, %v2526
        %v3231 = vmul.f32 %v3103, %v2717
        %v3232 = vmul.f32 %v3104, %v2719
        %v3233 = vmul.f32 %v3105, %v2528
        %v3234 = vmul.f32 %v3106, %v2530
        %v3235 = vmul.f32 %v3107, %v2721
        %v3236 = vmul.f32 %v3108, %v2723
        %v3237 = vadd.f32 %v2374, %v3109
        %v3238 = vadd.f32 %v2376, %v3110
        %v3239 = vadd.f32 %v2567, %v3111
        %v3240 = vadd.f32 %v2569, %v3112
        %v3241 = vadd.f32 %v2378, %v3113
        %v3242 = vadd.f32 %v2380, %v3114
        %v3243 = vadd.f32 %v2571, %v3115
        %v3244 = vadd.f32 %v2573, %v3116
        %v3245 = vadd.f32 %v2384, %v3117
        %v3246 = vadd.f32 %v2386, %v3118
        %v3247 = vadd.f32 %v2577, %v3119
        %v3248 = vadd.f32 %v2579, %v3120
        %v3249 = vadd.f32 %v2388, %v3121
        %v3250 = vadd.f32 %v2390, %v3122
        %v3251 = vadd.f32 %v2581, %v3123
        %v3252 = vadd.f32 %v2583, %v3124
        %v3253 = vadd.f32 %v2394, %v3125
        %v3254 = vadd.f32 %v2396, %v3126
        %v3255 = vadd.f32 %v2587, %v3127
        %v3256 = vadd.f32 %v2589, %v3128
        %v3257 = vadd.f32 %v2398, %v3129
        %v3258 = vadd.f32 %v2400, %v3130
        %v3259 = vadd.f32 %v2591, %v3131
        %v3260 = vadd.f32 %v2593, %v3132
        %v3261 = vadd.f32 %v2404, %v3133
        %v3262 = vadd.f32 %v2406, %v3134
        %v3263 = vadd.f32 %v2597, %v3135
        %v3264 = vadd.f32 %v2599, %v3136
        %v3265 = vadd.f32 %v2408, %v3137
        %v3266 = vadd.f32 %v2410, %v3138
        %v3267 = vadd.f32 %v2601, %v3139
        %v3268 = vadd.f32 %v2603, %v3140
        %v3269 = vadd.f32 %v2414, %v3141
        %v3270 = vadd.f32 %v2416, %v3142
        %v3271 = vadd.f32 %v2607, %v3143
        %v3272 = vadd.f32 %v2609, %v3144
        %v3273 = vadd.f32 %v2418, %v3145
        %v3274 = vadd.f32 %v2420, %v3146
        %v3275 = vadd.f32 %v2611, %v3147
        %v3276 = vadd.f32 %v2613, %v3148
        %v3277 = vadd.f32 %v2424, %v3149
        %v3278 = vadd.f32 %v2426, %v3150
        %v3279 = vadd.f32 %v2617, %v3151
        %v3280 = vadd.f32 %v2619, %v3152
        %v3281 = vadd.f32 %v2428, %v3153
        %v3282 = vadd.f32 %v2430, %v3154
        %v3283 = vadd.f32 %v2621, %v3155
        %v3284 = vadd.f32 %v2623, %v3156
        %v3285 = vadd.f32 %v2434, %v3157
        %v3286 = vadd.f32 %v2436, %v3158
        %v3287 = vadd.f32 %v2627, %v3159
        %v3288 = vadd.f32 %v2629, %v3160
        %v3289 = vadd.f32 %v2438, %v3161
        %v3290 = vadd.f32 %v2440, %v3162
        %v3291 = vadd.f32 %v2631, %v3163
        %v3292 = vadd.f32 %v2633, %v3164
        %v3293 = vadd.f32 %v2444, %v3165
        %v3294 = vadd.f32 %v2446, %v3166
        %v3295 = vadd.f32 %v2637, %v3167
        %v3296 = vadd.f32 %v2639, %v3168
        %v3297 = vadd.f32 %v2448, %v3169
        %v3298 = vadd.f32 %v2450, %v3170
        %v3299 = vadd.f32 %v2641, %v3171
        %v3300 = vadd.f32 %v2643, %v3172
        %v3301 = vadd.f32 %v2454, %v3173
        %v3302 = vadd.f32 %v2456, %v3174
        %v3303 = vadd.f32 %v2647, %v3175
        %v3304 = vadd.f32 %v2649, %v3176
        %v3305 = vadd.f32 %v2458, %v3177
        %v3306 = vadd.f32 %v2460, %v3178
        %v3307 = vadd.f32 %v2651, %v3179
        %v3308 = vadd.f32 %v2653, %v3180
        %v3309 = vadd.f32 %v2464, %v3181
        %v3310 = vadd.f32 %v2466, %v3182
        %v3311 = vadd.f32 %v2657, %v3183
        %v3312 = vadd.f32 %v2659, %v3184
        %v3313 = vadd.f32 %v2468, %v3185
        %v3314 = vadd.f32 %v2470, %v3186
        %v3315 = vadd.f32 %v2661, %v3187
        %v3316 = vadd.f32 %v2663, %v3188
        %v3317 = vadd.f32 %v2474, %v3189
        %v3318 = vadd.f32 %v2476, %v3190
        %v3319 = vadd.f32 %v2667, %v3191
        %v3320 = vadd.f32 %v2669, %v3192
        %v3321 = vadd.f32 %v2478, %v3193
        %v3322 = vadd.f32 %v2480, %v3194
        %v3323 = vadd.f32 %v2671, %v3195
        %v3324 = vadd.f32 %v2673, %v3196
        %v3325 = vadd.f32 %v2484, %v3197
        %v3326 = vadd.f32 %v2486, %v3198
        %v3327 = vadd.f32 %v2677, %v3199
        %v3328 = vadd.f32 %v2679, %v3200
        %v3329 = vadd.f32 %v2488, %v3201
        %v3330 = vadd.f32 %v2490, %v3202
        %v3331 = vadd.f32 %v2681, %v3203
        %v3332 = vadd.f32 %v2683, %v3204
        %v3333 = vadd.f32 %v2494, %v3205
        %v3334 = vadd.f32 %v2496, %v3206
        %v3335 = vadd.f32 %v2687, %v3207
        %v3336 = vadd.f32 %v2689, %v3208
        %v3337 = vadd.f32 %v2498, %v3209
        %v3338 = vadd.f32 %v2500, %v3210
        %v3339 = vadd.f32 %v2691, %v3211
        %v3340 = vadd.f32 %v2693, %v3212
        %v3341 = vadd.f32 %v2504, %v3213
        %v3342 = vadd.f32 %v2506, %v3214
        %v3343 = vadd.f32 %v2697, %v3215
        %v3344 = vadd.f32 %v2699, %v3216
        %v3345 = vadd.f32 %v2508, %v3217
        %v3346 = vadd.f32 %v2510, %v3218
        %v3347 = vadd.f32 %v2701, %v3219
        %v3348 = vadd.f32 %v2703, %v3220
        %v3349 = vadd.f32 %v2514, %v3221
        %v3350 = vadd.f32 %v2516, %v3222
        %v3351 = vadd.f32 %v2707, %v3223
        %v3352 = vadd.f32 %v2709, %v3224
        %v3353 = vadd.f32 %v2518, %v3225
        %v3354 = vadd.f32 %v2520, %v3226
        %v3355 = vadd.f32 %v2711, %v3227
        %v3356 = vadd.f32 %v2713, %v3228
        %v3357 = vadd.f32 %v2524, %v3229
        %v3358 = vadd.f32 %v2526, %v3230
        %v3359 = vadd.f32 %v2717, %v3231
        %v3360 = vadd.f32 %v2719, %v3232
        %v3361 = vadd.f32 %v2528, %v3233
        %v3362 = vadd.f32 %v2530, %v3234
        %v3363 = vadd.f32 %v2721, %v3235
        %v3364 = vadd.f32 %v2723, %v3236
        %v3365 = vmul.f32 %v3237, 0.7978846
        %v3366 = vmul.f32 %v3238, 0.7978846
        %v3367 = vmul.f32 %v3239, 0.7978846
        %v3368 = vmul.f32 %v3240, 0.7978846
        %v3369 = vmul.f32 %v3241, 0.7978846
        %v3370 = vmul.f32 %v3242, 0.7978846
        %v3371 = vmul.f32 %v3243, 0.7978846
        %v3372 = vmul.f32 %v3244, 0.7978846
        %v3373 = vmul.f32 %v3245, 0.7978846
        %v3374 = vmul.f32 %v3246, 0.7978846
        %v3375 = vmul.f32 %v3247, 0.7978846
        %v3376 = vmul.f32 %v3248, 0.7978846
        %v3377 = vmul.f32 %v3249, 0.7978846
        %v3378 = vmul.f32 %v3250, 0.7978846
        %v3379 = vmul.f32 %v3251, 0.7978846
        %v3380 = vmul.f32 %v3252, 0.7978846
        %v3381 = vmul.f32 %v3253, 0.7978846
        %v3382 = vmul.f32 %v3254, 0.7978846
        %v3383 = vmul.f32 %v3255, 0.7978846
        %v3384 = vmul.f32 %v3256, 0.7978846
        %v3385 = vmul.f32 %v3257, 0.7978846
        %v3386 = vmul.f32 %v3258, 0.7978846
        %v3387 = vmul.f32 %v3259, 0.7978846
        %v3388 = vmul.f32 %v3260, 0.7978846
        %v3389 = vmul.f32 %v3261, 0.7978846
        %v3390 = vmul.f32 %v3262, 0.7978846
        %v3391 = vmul.f32 %v3263, 0.7978846
        %v3392 = vmul.f32 %v3264, 0.7978846
        %v3393 = vmul.f32 %v3265, 0.7978846
        %v3394 = vmul.f32 %v3266, 0.7978846
        %v3395 = vmul.f32 %v3267, 0.7978846
        %v3396 = vmul.f32 %v3268, 0.7978846
        %v3397 = vmul.f32 %v3269, 0.7978846
        %v3398 = vmul.f32 %v3270, 0.7978846
        %v3399 = vmul.f32 %v3271, 0.7978846
        %v3400 = vmul.f32 %v3272, 0.7978846
        %v3401 = vmul.f32 %v3273, 0.7978846
        %v3402 = vmul.f32 %v3274, 0.7978846
        %v3403 = vmul.f32 %v3275, 0.7978846
        %v3404 = vmul.f32 %v3276, 0.7978846
        %v3405 = vmul.f32 %v3277, 0.7978846
        %v3406 = vmul.f32 %v3278, 0.7978846
        %v3407 = vmul.f32 %v3279, 0.7978846
        %v3408 = vmul.f32 %v3280, 0.7978846
        %v3409 = vmul.f32 %v3281, 0.7978846
        %v3410 = vmul.f32 %v3282, 0.7978846
        %v3411 = vmul.f32 %v3283, 0.7978846
        %v3412 = vmul.f32 %v3284, 0.7978846
        %v3413 = vmul.f32 %v3285, 0.7978846
        %v3414 = vmul.f32 %v3286, 0.7978846
        %v3415 = vmul.f32 %v3287, 0.7978846
        %v3416 = vmul.f32 %v3288, 0.7978846
        %v3417 = vmul.f32 %v3289, 0.7978846
        %v3418 = vmul.f32 %v3290, 0.7978846
        %v3419 = vmul.f32 %v3291, 0.7978846
        %v3420 = vmul.f32 %v3292, 0.7978846
        %v3421 = vmul.f32 %v3293, 0.7978846
        %v3422 = vmul.f32 %v3294, 0.7978846
        %v3423 = vmul.f32 %v3295, 0.7978846
        %v3424 = vmul.f32 %v3296, 0.7978846
        %v3425 = vmul.f32 %v3297, 0.7978846
        %v3426 = vmul.f32 %v3298, 0.7978846
        %v3427 = vmul.f32 %v3299, 0.7978846
        %v3428 = vmul.f32 %v3300, 0.7978846
        %v3429 = vmul.f32 %v3301, 0.7978846
        %v3430 = vmul.f32 %v3302, 0.7978846
        %v3431 = vmul.f32 %v3303, 0.7978846
        %v3432 = vmul.f32 %v3304, 0.7978846
        %v3433 = vmul.f32 %v3305, 0.7978846
        %v3434 = vmul.f32 %v3306, 0.7978846
        %v3435 = vmul.f32 %v3307, 0.7978846
        %v3436 = vmul.f32 %v3308, 0.7978846
        %v3437 = vmul.f32 %v3309, 0.7978846
        %v3438 = vmul.f32 %v3310, 0.7978846
        %v3439 = vmul.f32 %v3311, 0.7978846
        %v3440 = vmul.f32 %v3312, 0.7978846
        %v3441 = vmul.f32 %v3313, 0.7978846
        %v3442 = vmul.f32 %v3314, 0.7978846
        %v3443 = vmul.f32 %v3315, 0.7978846
        %v3444 = vmul.f32 %v3316, 0.7978846
        %v3445 = vmul.f32 %v3317, 0.7978846
        %v3446 = vmul.f32 %v3318, 0.7978846
        %v3447 = vmul.f32 %v3319, 0.7978846
        %v3448 = vmul.f32 %v3320, 0.7978846
        %v3449 = vmul.f32 %v3321, 0.7978846
        %v3450 = vmul.f32 %v3322, 0.7978846
        %v3451 = vmul.f32 %v3323, 0.7978846
        %v3452 = vmul.f32 %v3324, 0.7978846
        %v3453 = vmul.f32 %v3325, 0.7978846
        %v3454 = vmul.f32 %v3326, 0.7978846
        %v3455 = vmul.f32 %v3327, 0.7978846
        %v3456 = vmul.f32 %v3328, 0.7978846
        %v3457 = vmul.f32 %v3329, 0.7978846
        %v3458 = vmul.f32 %v3330, 0.7978846
        %v3459 = vmul.f32 %v3331, 0.7978846
        %v3460 = vmul.f32 %v3332, 0.7978846
        %v3461 = vmul.f32 %v3333, 0.7978846
        %v3462 = vmul.f32 %v3334, 0.7978846
        %v3463 = vmul.f32 %v3335, 0.7978846
        %v3464 = vmul.f32 %v3336, 0.7978846
        %v3465 = vmul.f32 %v3337, 0.7978846
        %v3466 = vmul.f32 %v3338, 0.7978846
        %v3467 = vmul.f32 %v3339, 0.7978846
        %v3468 = vmul.f32 %v3340, 0.7978846
        %v3469 = vmul.f32 %v3341, 0.7978846
        %v3470 = vmul.f32 %v3342, 0.7978846
        %v3471 = vmul.f32 %v3343, 0.7978846
        %v3472 = vmul.f32 %v3344, 0.7978846
        %v3473 = vmul.f32 %v3345, 0.7978846
        %v3474 = vmul.f32 %v3346, 0.7978846
        %v3475 = vmul.f32 %v3347, 0.7978846
        %v3476 = vmul.f32 %v3348, 0.7978846
        %v3477 = vmul.f32 %v3349, 0.7978846
        %v3478 = vmul.f32 %v3350, 0.7978846
        %v3479 = vmul.f32 %v3351, 0.7978846
        %v3480 = vmul.f32 %v3352, 0.7978846
        %v3481 = vmul.f32 %v3353, 0.7978846
        %v3482 = vmul.f32 %v3354, 0.7978846
        %v3483 = vmul.f32 %v3355, 0.7978846
        %v3484 = vmul.f32 %v3356, 0.7978846
        %v3485 = vmul.f32 %v3357, 0.7978846
        %v3486 = vmul.f32 %v3358, 0.7978846
        %v3487 = vmul.f32 %v3359, 0.7978846
        %v3488 = vmul.f32 %v3360, 0.7978846
        %v3489 = vmul.f32 %v3361, 0.7978846
        %v3490 = vmul.f32 %v3362, 0.7978846
        %v3491 = vmul.f32 %v3363, 0.7978846
        %v3492 = vmul.f32 %v3364, 0.7978846
        %v3493 = vtanh.pop %v3365
        %v3494 = vtanh.pop %v3366
        %v3495 = vtanh.pop %v3367
        %v3496 = vtanh.pop %v3368
        %v3497 = vtanh.pop %v3369
        %v3498 = vtanh.pop %v3370
        %v3499 = vtanh.pop %v3371
        %v3500 = vtanh.pop %v3372
        %v3501 = vtanh.pop %v3373
        %v3502 = vtanh.pop %v3374
        %v3503 = vtanh.pop %v3375
        %v3504 = vtanh.pop %v3376
        %v3505 = vtanh.pop %v3377
        %v3506 = vtanh.pop %v3378
        %v3507 = vtanh.pop %v3379
        %v3508 = vtanh.pop %v3380
        %v3509 = vtanh.pop %v3381
        %v3510 = vtanh.pop %v3382
        %v3511 = vtanh.pop %v3383
        %v3512 = vtanh.pop %v3384
        %v3513 = vtanh.pop %v3385
        %v3514 = vtanh.pop %v3386
        %v3515 = vtanh.pop %v3387
        %v3516 = vtanh.pop %v3388
        %v3517 = vtanh.pop %v3389
        %v3518 = vtanh.pop %v3390
        %v3519 = vtanh.pop %v3391
        %v3520 = vtanh.pop %v3392
        %v3521 = vtanh.pop %v3393
        %v3522 = vtanh.pop %v3394
        %v3523 = vtanh.pop %v3395
        %v3524 = vtanh.pop %v3396
        %v3525 = vtanh.pop %v3397
        %v3526 = vtanh.pop %v3398
        %v3527 = vtanh.pop %v3399
        %v3528 = vtanh.pop %v3400
        %v3529 = vtanh.pop %v3401
        %v3530 = vtanh.pop %v3402
        %v3531 = vtanh.pop %v3403
        %v3532 = vtanh.pop %v3404
        %v3533 = vtanh.pop %v3405
        %v3534 = vtanh.pop %v3406
        %v3535 = vtanh.pop %v3407
        %v3536 = vtanh.pop %v3408
        %v3537 = vtanh.pop %v3409
        %v3538 = vtanh.pop %v3410
        %v3539 = vtanh.pop %v3411
        %v3540 = vtanh.pop %v3412
        %v3541 = vtanh.pop %v3413
        %v3542 = vtanh.pop %v3414
        %v3543 = vtanh.pop %v3415
        %v3544 = vtanh.pop %v3416
        %v3545 = vtanh.pop %v3417
        %v3546 = vtanh.pop %v3418
        %v3547 = vtanh.pop %v3419
        %v3548 = vtanh.pop %v3420
        %v3549 = vtanh.pop %v3421
        %v3550 = vtanh.pop %v3422
        %v3551 = vtanh.pop %v3423
        %v3552 = vtanh.pop %v3424
        %v3553 = vtanh.pop %v3425
        %v3554 = vtanh.pop %v3426
        %v3555 = vtanh.pop %v3427
        %v3556 = vtanh.pop %v3428
        %v3557 = vtanh.pop %v3429
        %v3558 = vtanh.pop %v3430
        %v3559 = vtanh.pop %v3431
        %v3560 = vtanh.pop %v3432
        %v3561 = vtanh.pop %v3433
        %v3562 = vtanh.pop %v3434
        %v3563 = vtanh.pop %v3435
        %v3564 = vtanh.pop %v3436
        %v3565 = vtanh.pop %v3437
        %v3566 = vtanh.pop %v3438
        %v3567 = vtanh.pop %v3439
        %v3568 = vtanh.pop %v3440
        %v3569 = vtanh.pop %v3441
        %v3570 = vtanh.pop %v3442
        %v3571 = vtanh.pop %v3443
        %v3572 = vtanh.pop %v3444
        %v3573 = vtanh.pop %v3445
        %v3574 = vtanh.pop %v3446
        %v3575 = vtanh.pop %v3447
        %v3576 = vtanh.pop %v3448
        %v3577 = vtanh.pop %v3449
        %v3578 = vtanh.pop %v3450
        %v3579 = vtanh.pop %v3451
        %v3580 = vtanh.pop %v3452
        %v3581 = vtanh.pop %v3453
        %v3582 = vtanh.pop %v3454
        %v3583 = vtanh.pop %v3455
        %v3584 = vtanh.pop %v3456
        %v3585 = vtanh.pop %v3457
        %v3586 = vtanh.pop %v3458
        %v3587 = vtanh.pop %v3459
        %v3588 = vtanh.pop %v3460
        %v3589 = vtanh.pop %v3461
        %v3590 = vtanh.pop %v3462
        %v3591 = vtanh.pop %v3463
        %v3592 = vtanh.pop %v3464
        %v3593 = vtanh.pop %v3465
        %v3594 = vtanh.pop %v3466
        %v3595 = vtanh.pop %v3467
        %v3596 = vtanh.pop %v3468
        %v3597 = vtanh.pop %v3469
        %v3598 = vtanh.pop %v3470
        %v3599 = vtanh.pop %v3471
        %v3600 = vtanh.pop %v3472
        %v3601 = vtanh.pop %v3473
        %v3602 = vtanh.pop %v3474
        %v3603 = vtanh.pop %v3475
        %v3604 = vtanh.pop %v3476
        %v3605 = vtanh.pop %v3477
        %v3606 = vtanh.pop %v3478
        %v3607 = vtanh.pop %v3479
        %v3608 = vtanh.pop %v3480
        %v3609 = vtanh.pop %v3481
        %v3610 = vtanh.pop %v3482
        %v3611 = vtanh.pop %v3483
        %v3612 = vtanh.pop %v3484
        %v3613 = vtanh.pop %v3485
        %v3614 = vtanh.pop %v3486
        %v3615 = vtanh.pop %v3487
        %v3616 = vtanh.pop %v3488
        %v3617 = vtanh.pop %v3489
        %v3618 = vtanh.pop %v3490
        %v3619 = vtanh.pop %v3491
        %v3620 = vtanh.pop %v3492
        %v3621 = vadd.f32 %v3493, 1.0
        %v3622 = vadd.f32 %v3494, 1.0
        %v3623 = vadd.f32 %v3495, 1.0
        %v3624 = vadd.f32 %v3496, 1.0
        %v3625 = vadd.f32 %v3497, 1.0
        %v3626 = vadd.f32 %v3498, 1.0
        %v3627 = vadd.f32 %v3499, 1.0
        %v3628 = vadd.f32 %v3500, 1.0
        %v3629 = vadd.f32 %v3501, 1.0
        %v3630 = vadd.f32 %v3502, 1.0
        %v3631 = vadd.f32 %v3503, 1.0
        %v3632 = vadd.f32 %v3504, 1.0
        %v3633 = vadd.f32 %v3505, 1.0
        %v3634 = vadd.f32 %v3506, 1.0
        %v3635 = vadd.f32 %v3507, 1.0
        %v3636 = vadd.f32 %v3508, 1.0
        %v3637 = vadd.f32 %v3509, 1.0
        %v3638 = vadd.f32 %v3510, 1.0
        %v3639 = vadd.f32 %v3511, 1.0
        %v3640 = vadd.f32 %v3512, 1.0
        %v3641 = vadd.f32 %v3513, 1.0
        %v3642 = vadd.f32 %v3514, 1.0
        %v3643 = vadd.f32 %v3515, 1.0
        %v3644 = vadd.f32 %v3516, 1.0
        %v3645 = vadd.f32 %v3517, 1.0
        %v3646 = vadd.f32 %v3518, 1.0
        %v3647 = vadd.f32 %v3519, 1.0
        %v3648 = vadd.f32 %v3520, 1.0
        %v3649 = vadd.f32 %v3521, 1.0
        %v3650 = vadd.f32 %v3522, 1.0
        %v3651 = vadd.f32 %v3523, 1.0
        %v3652 = vadd.f32 %v3524, 1.0
        %v3653 = vadd.f32 %v3525, 1.0
        %v3654 = vadd.f32 %v3526, 1.0
        %v3655 = vadd.f32 %v3527, 1.0
        %v3656 = vadd.f32 %v3528, 1.0
        %v3657 = vadd.f32 %v3529, 1.0
        %v3658 = vadd.f32 %v3530, 1.0
        %v3659 = vadd.f32 %v3531, 1.0
        %v3660 = vadd.f32 %v3532, 1.0
        %v3661 = vadd.f32 %v3533, 1.0
        %v3662 = vadd.f32 %v3534, 1.0
        %v3663 = vadd.f32 %v3535, 1.0
        %v3664 = vadd.f32 %v3536, 1.0
        %v3665 = vadd.f32 %v3537, 1.0
        %v3666 = vadd.f32 %v3538, 1.0
        %v3667 = vadd.f32 %v3539, 1.0
        %v3668 = vadd.f32 %v3540, 1.0
        %v3669 = vadd.f32 %v3541, 1.0
        %v3670 = vadd.f32 %v3542, 1.0
        %v3671 = vadd.f32 %v3543, 1.0
        %v3672 = vadd.f32 %v3544, 1.0
        %v3673 = vadd.f32 %v3545, 1.0
        %v3674 = vadd.f32 %v3546, 1.0
        %v3675 = vadd.f32 %v3547, 1.0
        %v3676 = vadd.f32 %v3548, 1.0
        %v3677 = vadd.f32 %v3549, 1.0
        %v3678 = vadd.f32 %v3550, 1.0
        %v3679 = vadd.f32 %v3551, 1.0
        %v3680 = vadd.f32 %v3552, 1.0
        %v3681 = vadd.f32 %v3553, 1.0
        %v3682 = vadd.f32 %v3554, 1.0
        %v3683 = vadd.f32 %v3555, 1.0
        %v3684 = vadd.f32 %v3556, 1.0
        %v3685 = vadd.f32 %v3557, 1.0
        %v3686 = vadd.f32 %v3558, 1.0
        %v3687 = vadd.f32 %v3559, 1.0
        %v3688 = vadd.f32 %v3560, 1.0
        %v3689 = vadd.f32 %v3561, 1.0
        %v3690 = vadd.f32 %v3562, 1.0
        %v3691 = vadd.f32 %v3563, 1.0
        %v3692 = vadd.f32 %v3564, 1.0
        %v3693 = vadd.f32 %v3565, 1.0
        %v3694 = vadd.f32 %v3566, 1.0
        %v3695 = vadd.f32 %v3567, 1.0
        %v3696 = vadd.f32 %v3568, 1.0
        %v3697 = vadd.f32 %v3569, 1.0
        %v3698 = vadd.f32 %v3570, 1.0
        %v3699 = vadd.f32 %v3571, 1.0
        %v3700 = vadd.f32 %v3572, 1.0
        %v3701 = vadd.f32 %v3573, 1.0
        %v3702 = vadd.f32 %v3574, 1.0
        %v3703 = vadd.f32 %v3575, 1.0
        %v3704 = vadd.f32 %v3576, 1.0
        %v3705 = vadd.f32 %v3577, 1.0
        %v3706 = vadd.f32 %v3578, 1.0
        %v3707 = vadd.f32 %v3579, 1.0
        %v3708 = vadd.f32 %v3580, 1.0
        %v3709 = vadd.f32 %v3581, 1.0
        %v3710 = vadd.f32 %v3582, 1.0
        %v3711 = vadd.f32 %v3583, 1.0
        %v3712 = vadd.f32 %v3584, 1.0
        %v3713 = vadd.f32 %v3585, 1.0
        %v3714 = vadd.f32 %v3586, 1.0
        %v3715 = vadd.f32 %v3587, 1.0
        %v3716 = vadd.f32 %v3588, 1.0
        %v3717 = vadd.f32 %v3589, 1.0
        %v3718 = vadd.f32 %v3590, 1.0
        %v3719 = vadd.f32 %v3591, 1.0
        %v3720 = vadd.f32 %v3592, 1.0
        %v3721 = vadd.f32 %v3593, 1.0
        %v3722 = vadd.f32 %v3594, 1.0
        %v3723 = vadd.f32 %v3595, 1.0
        %v3724 = vadd.f32 %v3596, 1.0
        %v3725 = vadd.f32 %v3597, 1.0
        %v3726 = vadd.f32 %v3598, 1.0
        %v3727 = vadd.f32 %v3599, 1.0
        %v3728 = vadd.f32 %v3600, 1.0
        %v3729 = vadd.f32 %v3601, 1.0
        %v3730 = vadd.f32 %v3602, 1.0
        %v3731 = vadd.f32 %v3603, 1.0
        %v3732 = vadd.f32 %v3604, 1.0
        %v3733 = vadd.f32 %v3605, 1.0
        %v3734 = vadd.f32 %v3606, 1.0
        %v3735 = vadd.f32 %v3607, 1.0
        %v3736 = vadd.f32 %v3608, 1.0
        %v3737 = vadd.f32 %v3609, 1.0
        %v3738 = vadd.f32 %v3610, 1.0
        %v3739 = vadd.f32 %v3611, 1.0
        %v3740 = vadd.f32 %v3612, 1.0
        %v3741 = vadd.f32 %v3613, 1.0
        %v3742 = vadd.f32 %v3614, 1.0
        %v3743 = vadd.f32 %v3615, 1.0
        %v3744 = vadd.f32 %v3616, 1.0
        %v3745 = vadd.f32 %v3617, 1.0
        %v3746 = vadd.f32 %v3618, 1.0
        %v3747 = vadd.f32 %v3619, 1.0
        %v3748 = vadd.f32 %v3620, 1.0
        %v3749 = vmul.f32 %v2725, %v3621
        %v3750 = vmul.f32 %v2726, %v3622
        %v3751 = vmul.f32 %v2727, %v3623
        %v3752 = vmul.f32 %v2728, %v3624
        %v3753 = vmul.f32 %v2729, %v3625
        %v3754 = vmul.f32 %v2730, %v3626
        %v3755 = vmul.f32 %v2731, %v3627
        %v3756 = vmul.f32 %v2732, %v3628
        %v3757 = vmul.f32 %v2733, %v3629
        %v3758 = vmul.f32 %v2734, %v3630
        %v3759 = vmul.f32 %v2735, %v3631
        %v3760 = vmul.f32 %v2736, %v3632
        %v3761 = vmul.f32 %v2737, %v3633
        %v3762 = vmul.f32 %v2738, %v3634
        %v3763 = vmul.f32 %v2739, %v3635
        %v3764 = vmul.f32 %v2740, %v3636
        %v3765 = vmul.f32 %v2741, %v3637
        %v3766 = vmul.f32 %v2742, %v3638
        %v3767 = vmul.f32 %v2743, %v3639
        %v3768 = vmul.f32 %v2744, %v3640
        %v3769 = vmul.f32 %v2745, %v3641
        %v3770 = vmul.f32 %v2746, %v3642
        %v3771 = vmul.f32 %v2747, %v3643
        %v3772 = vmul.f32 %v2748, %v3644
        %v3773 = vmul.f32 %v2749, %v3645
        %v3774 = vmul.f32 %v2750, %v3646
        %v3775 = vmul.f32 %v2751, %v3647
        %v3776 = vmul.f32 %v2752, %v3648
        %v3777 = vmul.f32 %v2753, %v3649
        %v3778 = vmul.f32 %v2754, %v3650
        %v3779 = vmul.f32 %v2755, %v3651
        %v3780 = vmul.f32 %v2756, %v3652
        %v3781 = vmul.f32 %v2757, %v3653
        %v3782 = vmul.f32 %v2758, %v3654
        %v3783 = vmul.f32 %v2759, %v3655
        %v3784 = vmul.f32 %v2760, %v3656
        %v3785 = vmul.f32 %v2761, %v3657
        %v3786 = vmul.f32 %v2762, %v3658
        %v3787 = vmul.f32 %v2763, %v3659
        %v3788 = vmul.f32 %v2764, %v3660
        %v3789 = vmul.f32 %v2765, %v3661
        %v3790 = vmul.f32 %v2766, %v3662
        %v3791 = vmul.f32 %v2767, %v3663
        %v3792 = vmul.f32 %v2768, %v3664
        %v3793 = vmul.f32 %v2769, %v3665
        %v3794 = vmul.f32 %v2770, %v3666
        %v3795 = vmul.f32 %v2771, %v3667
        %v3796 = vmul.f32 %v2772, %v3668
        %v3797 = vmul.f32 %v2773, %v3669
        %v3798 = vmul.f32 %v2774, %v3670
        %v3799 = vmul.f32 %v2775, %v3671
        %v3800 = vmul.f32 %v2776, %v3672
        %v3801 = vmul.f32 %v2777, %v3673
        %v3802 = vmul.f32 %v2778, %v3674
        %v3803 = vmul.f32 %v2779, %v3675
        %v3804 = vmul.f32 %v2780, %v3676
        %v3805 = vmul.f32 %v2781, %v3677
        %v3806 = vmul.f32 %v2782, %v3678
        %v3807 = vmul.f32 %v2783, %v3679
        %v3808 = vmul.f32 %v2784, %v3680
        %v3809 = vmul.f32 %v2785, %v3681
        %v3810 = vmul.f32 %v2786, %v3682
        %v3811 = vmul.f32 %v2787, %v3683
        %v3812 = vmul.f32 %v2788, %v3684
        %v3813 = vmul.f32 %v2789, %v3685
        %v3814 = vmul.f32 %v2790, %v3686
        %v3815 = vmul.f32 %v2791, %v3687
        %v3816 = vmul.f32 %v2792, %v3688
        %v3817 = vmul.f32 %v2793, %v3689
        %v3818 = vmul.f32 %v2794, %v3690
        %v3819 = vmul.f32 %v2795, %v3691
        %v3820 = vmul.f32 %v2796, %v3692
        %v3821 = vmul.f32 %v2797, %v3693
        %v3822 = vmul.f32 %v2798, %v3694
        %v3823 = vmul.f32 %v2799, %v3695
        %v3824 = vmul.f32 %v2800, %v3696
        %v3825 = vmul.f32 %v2801, %v3697
        %v3826 = vmul.f32 %v2802, %v3698
        %v3827 = vmul.f32 %v2803, %v3699
        %v3828 = vmul.f32 %v2804, %v3700
        %v3829 = vmul.f32 %v2805, %v3701
        %v3830 = vmul.f32 %v2806, %v3702
        %v3831 = vmul.f32 %v2807, %v3703
        %v3832 = vmul.f32 %v2808, %v3704
        %v3833 = vmul.f32 %v2809, %v3705
        %v3834 = vmul.f32 %v2810, %v3706
        %v3835 = vmul.f32 %v2811, %v3707
        %v3836 = vmul.f32 %v2812, %v3708
        %v3837 = vmul.f32 %v2813, %v3709
        %v3838 = vmul.f32 %v2814, %v3710
        %v3839 = vmul.f32 %v2815, %v3711
        %v3840 = vmul.f32 %v2816, %v3712
        %v3841 = vmul.f32 %v2817, %v3713
        %v3842 = vmul.f32 %v2818, %v3714
        %v3843 = vmul.f32 %v2819, %v3715
        %v3844 = vmul.f32 %v2820, %v3716
        %v3845 = vmul.f32 %v2821, %v3717
        %v3846 = vmul.f32 %v2822, %v3718
        %v3847 = vmul.f32 %v2823, %v3719
        %v3848 = vmul.f32 %v2824, %v3720
        %v3849 = vmul.f32 %v2825, %v3721
        %v3850 = vmul.f32 %v2826, %v3722
        %v3851 = vmul.f32 %v2827, %v3723
        %v3852 = vmul.f32 %v2828, %v3724
        %v3853 = vmul.f32 %v2829, %v3725
        %v3854 = vmul.f32 %v2830, %v3726
        %v3855 = vmul.f32 %v2831, %v3727
        %v3856 = vmul.f32 %v2832, %v3728
        %v3857 = vmul.f32 %v2833, %v3729
        %v3858 = vmul.f32 %v2834, %v3730
        %v3859 = vmul.f32 %v2835, %v3731
        %v3860 = vmul.f32 %v2836, %v3732
        %v3861 = vmul.f32 %v2837, %v3733
        %v3862 = vmul.f32 %v2838, %v3734
        %v3863 = vmul.f32 %v2839, %v3735
        %v3864 = vmul.f32 %v2840, %v3736
        %v3865 = vmul.f32 %v2841, %v3737
        %v3866 = vmul.f32 %v2842, %v3738
        %v3867 = vmul.f32 %v2843, %v3739
        %v3868 = vmul.f32 %v2844, %v3740
        %v3869 = vmul.f32 %v2845, %v3741
        %v3870 = vmul.f32 %v2846, %v3742
        %v3871 = vmul.f32 %v2847, %v3743
        %v3872 = vmul.f32 %v2848, %v3744
        %v3873 = vmul.f32 %v2849, %v3745
        %v3874 = vmul.f32 %v2850, %v3746
        %v3875 = vmul.f32 %v2851, %v3747
        %v3876 = vmul.f32 %v2852, %v3748
        %3877 = vset.pattern.permute.xlu0 1
        %3878 = vperm.xlu0 %3877, %v1987
        %v3879 = vpop.permute.xlu0 %3878
        %3881 = vset.pattern.permute.xlu0 1
        %3882 = vperm.xlu0 %3881, %v1988
        %v3883 = vpop.permute.xlu0 %3882
        %3885 = vset.pattern.permute.xlu0 1
        %3886 = vperm.xlu0 %3885, %v1989
        %v3887 = vpop.permute.xlu0 %3886
        %3889 = vset.pattern.permute.xlu0 1
        %3890 = vperm.xlu0 %3889, %v1990
        %v3891 = vpop.permute.xlu0 %3890
        %3893 = vset.pattern.permute.xlu0 1
        %3894 = vperm.xlu0 %3893, %v1991
        %v3895 = vpop.permute.xlu0 %3894
        %3897 = vset.pattern.permute.xlu0 1
        %3898 = vperm.xlu0 %3897, %v1992
        %v3899 = vpop.permute.xlu0 %3898
        %3901 = vset.pattern.permute.xlu0 1
        %3902 = vperm.xlu0 %3901, %v1993
        %v3903 = vpop.permute.xlu0 %3902
        %3905 = vset.pattern.permute.xlu0 1
        %3906 = vperm.xlu0 %3905, %v1994
        %v3907 = vpop.permute.xlu0 %3906
        %3909 = vset.pattern.permute.xlu0 1
        %3910 = vperm.xlu0 %3909, %v1995
        %v3911 = vpop.permute.xlu0 %3910
        %3913 = vset.pattern.permute.xlu0 1
        %3914 = vperm.xlu0 %3913, %v1996
        %v3915 = vpop.permute.xlu0 %3914
        %3917 = vset.pattern.permute.xlu0 1
        %3918 = vperm.xlu0 %3917, %v1997
        %v3919 = vpop.permute.xlu0 %3918
        %3921 = vset.pattern.permute.xlu0 1
        %3922 = vperm.xlu0 %3921, %v1998
        %v3923 = vpop.permute.xlu0 %3922
        %3925 = vset.pattern.permute.xlu0 1
        %3926 = vperm.xlu0 %3925, %v1999
        %v3927 = vpop.permute.xlu0 %3926
        %3929 = vset.pattern.permute.xlu0 1
        %3930 = vperm.xlu0 %3929, %v2000
        %v3931 = vpop.permute.xlu0 %3930
        %3933 = vset.pattern.permute.xlu0 1
        %3934 = vperm.xlu0 %3933, %v2001
        %v3935 = vpop.permute.xlu0 %3934
        %3937 = vset.pattern.permute.xlu0 1
        %3938 = vperm.xlu0 %3937, %v2002
        %v3939 = vpop.permute.xlu0 %3938
        %3941 = vset.pattern.permute.xlu0 1
        %3942 = vperm.xlu0 %3941, %v2003
        %v3943 = vpop.permute.xlu0 %3942
        %3945 = vset.pattern.permute.xlu0 1
        %3946 = vperm.xlu0 %3945, %v2004
        %v3947 = vpop.permute.xlu0 %3946
        %3949 = vset.pattern.permute.xlu0 1
        %3950 = vperm.xlu0 %3949, %v2005
        %v3951 = vpop.permute.xlu0 %3950
        %3953 = vset.pattern.permute.xlu0 1
        %3954 = vperm.xlu0 %3953, %v2006
        %v3955 = vpop.permute.xlu0 %3954
        %3957 = vset.pattern.permute.xlu0 1
        %3958 = vperm.xlu0 %3957, %v2007
        %v3959 = vpop.permute.xlu0 %3958
        %3961 = vset.pattern.permute.xlu0 1
        %3962 = vperm.xlu0 %3961, %v2008
        %v3963 = vpop.permute.xlu0 %3962
        %3965 = vset.pattern.permute.xlu0 1
        %3966 = vperm.xlu0 %3965, %v2009
        %v3967 = vpop.permute.xlu0 %3966
        %3969 = vset.pattern.permute.xlu0 1
        %3970 = vperm.xlu0 %3969, %v2010
        %v3971 = vpop.permute.xlu0 %3970
        %3973 = vset.pattern.permute.xlu0 1
        %3974 = vperm.xlu0 %3973, %v2011
        %v3975 = vpop.permute.xlu0 %3974
        %3977 = vset.pattern.permute.xlu0 1
        %3978 = vperm.xlu0 %3977, %v2012
        %v3979 = vpop.permute.xlu0 %3978
        %3981 = vset.pattern.permute.xlu0 1
        %3982 = vperm.xlu0 %3981, %v2013
        %v3983 = vpop.permute.xlu0 %3982
        %3985 = vset.pattern.permute.xlu0 1
        %3986 = vperm.xlu0 %3985, %v2014
        %v3987 = vpop.permute.xlu0 %3986
        %3989 = vset.pattern.permute.xlu0 1
        %3990 = vperm.xlu0 %3989, %v2015
        %v3991 = vpop.permute.xlu0 %3990
        %3993 = vset.pattern.permute.xlu0 1
        %3994 = vperm.xlu0 %3993, %v2016
        %v3995 = vpop.permute.xlu0 %3994
        %3997 = vset.pattern.permute.xlu0 1
        %3998 = vperm.xlu0 %3997, %v2017
        %v3999 = vpop.permute.xlu0 %3998
        %4001 = vset.pattern.permute.xlu0 1
        %4002 = vperm.xlu0 %4001, %v2018
        %v4003 = vpop.permute.xlu0 %4002
        %v4005 = vmul.f32 %v3749, %v3879
        %v4006 = vmul.f32 %v3750, %v3879
        %v4007 = vmul.f32 %v3751, %v3879
        %v4008 = vmul.f32 %v3752, %v3879
        %v4009 = vmul.f32 %v3753, %v3883
        %v4010 = vmul.f32 %v3754, %v3883
        %v4011 = vmul.f32 %v3755, %v3883
        %v4012 = vmul.f32 %v3756, %v3883
        %v4013 = vmul.f32 %v3757, %v3887
        %v4014 = vmul.f32 %v3758, %v3887
        %v4015 = vmul.f32 %v3759, %v3887
        %v4016 = vmul.f32 %v3760, %v3887
        %v4017 = vmul.f32 %v3761, %v3891
        %v4018 = vmul.f32 %v3762, %v3891
        %v4019 = vmul.f32 %v3763, %v3891
        %v4020 = vmul.f32 %v3764, %v3891
        %v4021 = vmul.f32 %v3765, %v3895
        %v4022 = vmul.f32 %v3766, %v3895
        %v4023 = vmul.f32 %v3767, %v3895
        %v4024 = vmul.f32 %v3768, %v3895
        %v4025 = vmul.f32 %v3769, %v3899
        %v4026 = vmul.f32 %v3770, %v3899
        %v4027 = vmul.f32 %v3771, %v3899
        %v4028 = vmul.f32 %v3772, %v3899
        %v4029 = vmul.f32 %v3773, %v3903
        %v4030 = vmul.f32 %v3774, %v3903
        %v4031 = vmul.f32 %v3775, %v3903
        %v4032 = vmul.f32 %v3776, %v3903
        %v4033 = vmul.f32 %v3777, %v3907
        %v4034 = vmul.f32 %v3778, %v3907
        %v4035 = vmul.f32 %v3779, %v3907
        %v4036 = vmul.f32 %v3780, %v3907
        %v4037 = vmul.f32 %v3781, %v3911
        %v4038 = vmul.f32 %v3782, %v3911
        %v4039 = vmul.f32 %v3783, %v3911
        %v4040 = vmul.f32 %v3784, %v3911
        %v4041 = vmul.f32 %v3785, %v3915
        %v4042 = vmul.f32 %v3786, %v3915
        %v4043 = vmul.f32 %v3787, %v3915
        %v4044 = vmul.f32 %v3788, %v3915
        %v4045 = vmul.f32 %v3789, %v3919
        %v4046 = vmul.f32 %v3790, %v3919
        %v4047 = vmul.f32 %v3791, %v3919
        %v4048 = vmul.f32 %v3792, %v3919
        %v4049 = vmul.f32 %v3793, %v3923
        %v4050 = vmul.f32 %v3794, %v3923
        %v4051 = vmul.f32 %v3795, %v3923
        %v4052 = vmul.f32 %v3796, %v3923
        %v4053 = vmul.f32 %v3797, %v3927
        %v4054 = vmul.f32 %v3798, %v3927
        %v4055 = vmul.f32 %v3799, %v3927
        %v4056 = vmul.f32 %v3800, %v3927
        %v4057 = vmul.f32 %v3801, %v3931
        %v4058 = vmul.f32 %v3802, %v3931
        %v4059 = vmul.f32 %v3803, %v3931
        %v4060 = vmul.f32 %v3804, %v3931
        %v4061 = vmul.f32 %v3805, %v3935
        %v4062 = vmul.f32 %v3806, %v3935
        %v4063 = vmul.f32 %v3807, %v3935
        %v4064 = vmul.f32 %v3808, %v3935
        %v4065 = vmul.f32 %v3809, %v3939
        %v4066 = vmul.f32 %v3810, %v3939
        %v4067 = vmul.f32 %v3811, %v3939
        %v4068 = vmul.f32 %v3812, %v3939
        %v4069 = vmul.f32 %v3813, %v3943
        %v4070 = vmul.f32 %v3814, %v3943
        %v4071 = vmul.f32 %v3815, %v3943
        %v4072 = vmul.f32 %v3816, %v3943
        %v4073 = vmul.f32 %v3817, %v3947
        %v4074 = vmul.f32 %v3818, %v3947
        %v4075 = vmul.f32 %v3819, %v3947
        %v4076 = vmul.f32 %v3820, %v3947
        %v4077 = vmul.f32 %v3821, %v3951
        %v4078 = vmul.f32 %v3822, %v3951
        %v4079 = vmul.f32 %v3823, %v3951
        %v4080 = vmul.f32 %v3824, %v3951
        %v4081 = vmul.f32 %v3825, %v3955
        %v4082 = vmul.f32 %v3826, %v3955
        %v4083 = vmul.f32 %v3827, %v3955
        %v4084 = vmul.f32 %v3828, %v3955
        %v4085 = vmul.f32 %v3829, %v3959
        %v4086 = vmul.f32 %v3830, %v3959
        %v4087 = vmul.f32 %v3831, %v3959
        %v4088 = vmul.f32 %v3832, %v3959
        %v4089 = vmul.f32 %v3833, %v3963
        %v4090 = vmul.f32 %v3834, %v3963
        %v4091 = vmul.f32 %v3835, %v3963
        %v4092 = vmul.f32 %v3836, %v3963
        %v4093 = vmul.f32 %v3837, %v3967
        %v4094 = vmul.f32 %v3838, %v3967
        %v4095 = vmul.f32 %v3839, %v3967
        %v4096 = vmul.f32 %v3840, %v3967
        %v4097 = vmul.f32 %v3841, %v3971
        %v4098 = vmul.f32 %v3842, %v3971
        %v4099 = vmul.f32 %v3843, %v3971
        %v4100 = vmul.f32 %v3844, %v3971
        %v4101 = vmul.f32 %v3845, %v3975
        %v4102 = vmul.f32 %v3846, %v3975
        %v4103 = vmul.f32 %v3847, %v3975
        %v4104 = vmul.f32 %v3848, %v3975
        %v4105 = vmul.f32 %v3849, %v3979
        %v4106 = vmul.f32 %v3850, %v3979
        %v4107 = vmul.f32 %v3851, %v3979
        %v4108 = vmul.f32 %v3852, %v3979
        %v4109 = vmul.f32 %v3853, %v3983
        %v4110 = vmul.f32 %v3854, %v3983
        %v4111 = vmul.f32 %v3855, %v3983
        %v4112 = vmul.f32 %v3856, %v3983
        %v4113 = vmul.f32 %v3857, %v3987
        %v4114 = vmul.f32 %v3858, %v3987
        %v4115 = vmul.f32 %v3859, %v3987
        %v4116 = vmul.f32 %v3860, %v3987
        %v4117 = vmul.f32 %v3861, %v3991
        %v4118 = vmul.f32 %v3862, %v3991
        %v4119 = vmul.f32 %v3863, %v3991
        %v4120 = vmul.f32 %v3864, %v3991
        %v4121 = vmul.f32 %v3865, %v3995
        %v4122 = vmul.f32 %v3866, %v3995
        %v4123 = vmul.f32 %v3867, %v3995
        %v4124 = vmul.f32 %v3868, %v3995
        %v4125 = vmul.f32 %v3869, %v3999
        %v4126 = vmul.f32 %v3870, %v3999
        %v4127 = vmul.f32 %v3871, %v3999
        %v4128 = vmul.f32 %v3872, %v3999
        %v4129 = vmul.f32 %v3873, %v4003
        %v4130 = vmul.f32 %v3874, %v4003
        %v4131 = vmul.f32 %v3875, %v4003
        %v4132 = vmul.f32 %v3876, %v4003
        %v4133 = vadd.f32 %v4005, %v4009
        %v4134 = vadd.f32 %v4133, %v4013
        %v4135 = vadd.f32 %v4134, %v4017
        %v4136 = vadd.f32 %v4135, %v4021
        %v4137 = vadd.f32 %v4136, %v4025
        %v4138 = vadd.f32 %v4137, %v4029
        %v4139 = vadd.f32 %v4138, %v4033
        %v4140 = vadd.f32 %v4139, %v4037
        %v4141 = vadd.f32 %v4140, %v4041
        %v4142 = vadd.f32 %v4141, %v4045
        %v4143 = vadd.f32 %v4142, %v4049
        %v4144 = vadd.f32 %v4143, %v4053
        %v4145 = vadd.f32 %v4144, %v4057
        %v4146 = vadd.f32 %v4145, %v4061
        %v4147 = vadd.f32 %v4146, %v4065
        %v4148 = vadd.f32 %v4147, %v4069
        %v4149 = vadd.f32 %v4148, %v4073
        %v4150 = vadd.f32 %v4149, %v4077
        %v4151 = vadd.f32 %v4150, %v4081
        %v4152 = vadd.f32 %v4151, %v4085
        %v4153 = vadd.f32 %v4152, %v4089
        %v4154 = vadd.f32 %v4153, %v4093
        %v4155 = vadd.f32 %v4154, %v4097
        %v4156 = vadd.f32 %v4155, %v4101
        %v4157 = vadd.f32 %v4156, %v4105
        %v4158 = vadd.f32 %v4157, %v4109
        %v4159 = vadd.f32 %v4158, %v4113
        %v4160 = vadd.f32 %v4159, %v4117
        %v4161 = vadd.f32 %v4160, %v4121
        %v4162 = vadd.f32 %v4161, %v4125
        %v4163 = vadd.f32 %v4162, %v4129
        %v4164 = vrot.slane %v4163, 4
        %v4165 = vadd.f32 %v4163, %v4164
        %v4166 = vrot.slane %v4165, 2
        %v4167 = vadd.f32 %v4165, %v4166
        %v4168 = vrot.slane %v4167, 1
        %v4169 = vadd.f32 %v4167, %v4168
        %v4170 = vadd.f32 %v4006, %v4010
        %v4171 = vadd.f32 %v4170, %v4014
        %v4172 = vadd.f32 %v4171, %v4018
        %v4173 = vadd.f32 %v4172, %v4022
        %v4174 = vadd.f32 %v4173, %v4026
        %v4175 = vadd.f32 %v4174, %v4030
        %v4176 = vadd.f32 %v4175, %v4034
        %v4177 = vadd.f32 %v4176, %v4038
        %v4178 = vadd.f32 %v4177, %v4042
        %v4179 = vadd.f32 %v4178, %v4046
        %v4180 = vadd.f32 %v4179, %v4050
        %v4181 = vadd.f32 %v4180, %v4054
        %v4182 = vadd.f32 %v4181, %v4058
        %v4183 = vadd.f32 %v4182, %v4062
        %v4184 = vadd.f32 %v4183, %v4066
        %v4185 = vadd.f32 %v4184, %v4070
        %v4186 = vadd.f32 %v4185, %v4074
        %v4187 = vadd.f32 %v4186, %v4078
        %v4188 = vadd.f32 %v4187, %v4082
        %v4189 = vadd.f32 %v4188, %v4086
        %v4190 = vadd.f32 %v4189, %v4090
        %v4191 = vadd.f32 %v4190, %v4094
        %v4192 = vadd.f32 %v4191, %v4098
        %v4193 = vadd.f32 %v4192, %v4102
        %v4194 = vadd.f32 %v4193, %v4106
        %v4195 = vadd.f32 %v4194, %v4110
        %v4196 = vadd.f32 %v4195, %v4114
        %v4197 = vadd.f32 %v4196, %v4118
        %v4198 = vadd.f32 %v4197, %v4122
        %v4199 = vadd.f32 %v4198, %v4126
        %v4200 = vadd.f32 %v4199, %v4130
        %v4201 = vrot.slane %v4200, 4
        %v4202 = vadd.f32 %v4200, %v4201
        %v4203 = vrot.slane %v4202, 2
        %v4204 = vadd.f32 %v4202, %v4203
        %v4205 = vrot.slane %v4204, 1
        %v4206 = vadd.f32 %v4204, %v4205
        %v4207 = vadd.f32 %v4007, %v4011
        %v4208 = vadd.f32 %v4207, %v4015
        %v4209 = vadd.f32 %v4208, %v4019
        %v4210 = vadd.f32 %v4209, %v4023
        %v4211 = vadd.f32 %v4210, %v4027
        %v4212 = vadd.f32 %v4211, %v4031
        %v4213 = vadd.f32 %v4212, %v4035
        %v4214 = vadd.f32 %v4213, %v4039
        %v4215 = vadd.f32 %v4214, %v4043
        %v4216 = vadd.f32 %v4215, %v4047
        %v4217 = vadd.f32 %v4216, %v4051
        %v4218 = vadd.f32 %v4217, %v4055
        %v4219 = vadd.f32 %v4218, %v4059
        %v4220 = vadd.f32 %v4219, %v4063
        %v4221 = vadd.f32 %v4220, %v4067
        %v4222 = vadd.f32 %v4221, %v4071
        %v4223 = vadd.f32 %v4222, %v4075
        %v4224 = vadd.f32 %v4223, %v4079
        %v4225 = vadd.f32 %v4224, %v4083
        %v4226 = vadd.f32 %v4225, %v4087
        %v4227 = vadd.f32 %v4226, %v4091
        %v4228 = vadd.f32 %v4227, %v4095
        %v4229 = vadd.f32 %v4228, %v4099
        %v4230 = vadd.f32 %v4229, %v4103
        %v4231 = vadd.f32 %v4230, %v4107
        %v4232 = vadd.f32 %v4231, %v4111
        %v4233 = vadd.f32 %v4232, %v4115
        %v4234 = vadd.f32 %v4233, %v4119
        %v4235 = vadd.f32 %v4234, %v4123
        %v4236 = vadd.f32 %v4235, %v4127
        %v4237 = vadd.f32 %v4236, %v4131
        %v4238 = vrot.slane %v4237, 4
        %v4239 = vadd.f32 %v4237, %v4238
        %v4240 = vrot.slane %v4239, 2
        %v4241 = vadd.f32 %v4239, %v4240
        %v4242 = vrot.slane %v4241, 1
        %v4243 = vadd.f32 %v4241, %v4242
        %v4244 = vadd.f32 %v4008, %v4012
        %v4245 = vadd.f32 %v4244, %v4016
        %v4246 = vadd.f32 %v4245, %v4020
        %v4247 = vadd.f32 %v4246, %v4024
        %v4248 = vadd.f32 %v4247, %v4028
        %v4249 = vadd.f32 %v4248, %v4032
        %v4250 = vadd.f32 %v4249, %v4036
        %v4251 = vadd.f32 %v4250, %v4040
        %v4252 = vadd.f32 %v4251, %v4044
        %v4253 = vadd.f32 %v4252, %v4048
        %v4254 = vadd.f32 %v4253, %v4052
        %v4255 = vadd.f32 %v4254, %v4056
        %v4256 = vadd.f32 %v4255, %v4060
        %v4257 = vadd.f32 %v4256, %v4064
        %v4258 = vadd.f32 %v4257, %v4068
        %v4259 = vadd.f32 %v4258, %v4072
        %v4260 = vadd.f32 %v4259, %v4076
        %v4261 = vadd.f32 %v4260, %v4080
        %v4262 = vadd.f32 %v4261, %v4084
        %v4263 = vadd.f32 %v4262, %v4088
        %v4264 = vadd.f32 %v4263, %v4092
        %v4265 = vadd.f32 %v4264, %v4096
        %v4266 = vadd.f32 %v4265, %v4100
        %v4267 = vadd.f32 %v4266, %v4104
        %v4268 = vadd.f32 %v4267, %v4108
        %v4269 = vadd.f32 %v4268, %v4112
        %v4270 = vadd.f32 %v4269, %v4116
        %v4271 = vadd.f32 %v4270, %v4120
        %v4272 = vadd.f32 %v4271, %v4124
        %v4273 = vadd.f32 %v4272, %v4128
        %v4274 = vadd.f32 %v4273, %v4132
        %v4275 = vrot.slane %v4274, 4
        %v4276 = vadd.f32 %v4274, %v4275
        %v4277 = vrot.slane %v4276, 2
        %v4278 = vadd.f32 %v4276, %v4277
        %v4279 = vrot.slane %v4278, 1
        %v4280 = vadd.f32 %v4278, %v4279
        %v4281 = vld [vmem:[%s3] sm:$0x1]
        %4283 = vset.pattern.permute.xlu0 2
        %4284 = vperm.xlu0 %4283, %v4281
        %v4285 = vpop.permute.xlu0 %4284
        %v4287 = vadd.f32 %v4169, %v4285
        %v4288 = vadd.f32 %v4206, %v4285
        %v4289 = vadd.f32 %v4243, %v4285
        %v4290 = vadd.f32 %v4280, %v4285
        %v4291 = vxor.u32 %v4287, 2147483648
        %v4292 = vxor.u32 %v4288, 2147483648
        %v4293 = vxor.u32 %v4289, 2147483648
        %v4294 = vxor.u32 %v4290, 2147483648
        %v4295 = vmul.f32 %v4291, 1.442695
        %v4296 = vpow.pop %v4295
        %v4297 = vmul.f32 %v4292, 1.442695
        %v4298 = vpow.pop %v4297
        %v4299 = vmul.f32 %v4293, 1.442695
        %v4300 = vpow.pop %v4299
        %v4301 = vmul.f32 %v4294, 1.442695
        %v4302 = vpow.pop %v4301
        %v4303 = vadd.f32 %v4296, 1.0
        %v4304 = vadd.f32 %v4298, 1.0
        %v4305 = vadd.f32 %v4300, 1.0
        %v4306 = vadd.f32 %v4302, 1.0
        %v4307 = vrcp.pop %v4303
        %v4308 = vmul.f32 1.0, %v4307
        %v4309 = vrcp.pop %v4304
        %v4310 = vmul.f32 1.0, %v4309
        %v4311 = vrcp.pop %v4305
        %v4312 = vmul.f32 1.0, %v4311
        %v4313 = vrcp.pop %v4306
        %v4314 = vmul.f32 1.0, %v4313
        %v4319 = vcombine.low %v4308, %v4310
        %v4320 = vcombine.low %v4312, %v4314
        %v4322 = vunpack.c.l.s4 1966171168
        %v4323 = vunpack.c.0.s8 %v4322
        %v4324 = vlaneseq
        %v4325 = vshrl.u32 %v4324, 7
        %v4326 = vsub.s32 %v4323, %v4325
        %v4327 = vrot.slane %v4319, %v4326
        %v4329 = vunpack.c.l.s4 1966171168
        %v4330 = vunpack.c.0.s8 %v4329
        %v4331 = vlaneseq
        %v4332 = vshrl.u32 %v4331, 7
        %v4333 = vsub.s32 %v4330, %v4332
        %v4334 = vrot.slane %v4320, %v4333
        %v4335 = vcombine.low %v4327, %v4334
        %v4337 = vunpack.c.l.s4 1966171168
        %v4338 = vunpack.c.0.s8 %v4337
        %v4339 = vlaneseq
        %v4340 = vshrl.u32 %v4339, 7
        %v4341 = vsub.s32 %v4338, %v4340
        %v4342 = vrot.slane %v4335, %v4341
        %v4344 = vlaneseq
        %vm4345 = vcmp.ge.s32.totalorder %v4344, 0
        %vm4346 = vcmp.lt.s32.totalorder %v4344, 512
        %vm4347 = vmand %vm4345, %vm4346
        %4348 = vst.msk [vmem:[%s230] sm:$0xf] %vm4347, %v4342
        %s4349 = sand.u32 %s136, 1
        %s4350 = scalar_lea.sflag [#allocation3], %s4349
        %s4351 = sand.u32 %s136, 1
        %s4352 = smul.addr %s4351, 4
        %s4353 = scalar_lea.vmem [#allocation2], %s4352
        // Predicated region
        $region37: #{query_ranking_forward.1} parent=35 // pred_check
          %p4354 = pneg %p146
        $region38: #{query_ranking_forward.1} parent=35 // pred_check_branch
          %4356 = sbr.rel (%p4354) target = $region40
        $region39: #{query_ranking_forward.1} parent=35 // pred_region
          %s4357 = smul.u32 4, %s23
          %s4359 = ssub.s32 64, 64
          %4360 = vsyncadd %s4350, %s4359
          %s4361 = smul.addr %s22, 8
          %s4362 = sadd.s32 %s4357, %s4361
          %s4363 = smul.addr %s4362, 16
          %s4364 = scalar_lea.hbm %s4, %s4363
          %s4366 = sshll.u32 %s4353, 4
          %s4367 = int_to_ptr.vmem [resolvable:$true] %s4366
          %4369 = dma.vmem_to_hbm [thread:$0]  %s4367, 64, %s4364, %s4350
        $region40: #{query_ranking_forward.1} parent=35 // pred_fallthru
          _
      $region36: #{query_ranking_forward.1} parent=5 // pred_fallthru
        _
      %p4370 = scmp.le.s32.totalorder 2, %s13
      // Predicated region
      $region41: #{query_ranking_forward.1} parent=5 // pred_check
        %p4371 = pneg %p4370
      $region42: #{query_ranking_forward.1} parent=5 // pred_check_branch
        %4373 = sbr.rel (%p4371) target = $region44
      $region43: #{query_ranking_forward.1} parent=5 // pred_region
        %s4374 = ssub.s32 %s13, 2
        // Predicated region
        $region45: #{query_ranking_forward.1} parent=43 // pred_check
          %p4375 = pneg %p152
        $region46: #{query_ranking_forward.1} parent=43 // pred_check_branch
          %4377 = sbr.rel (%p4375) target = $region48
        $region47: #{query_ranking_forward.1} parent=43 // pred_region
          %s4378 = sand.u32 %s137, 1
          %s4379 = scalar_lea.sflag [#allocation3], %s4378
          %s4380 = sand.u32 %s137, 1
          %s4381 = smul.addr %s4380, 4
          %s4382 = scalar_lea.vmem [#allocation2], %s4381
          %4383 = dma.done %s4379, 64
        $region48: #{query_ranking_forward.1} parent=43 // pred_fallthru
          _
      $region44: #{query_ranking_forward.1} parent=5 // pred_fallthru
        _
    $region6: #{query_ranking_forward.1} parent=1 // loop_footer
      %s17 = sadd.s32 1, %s13
    $region7: #{query_ranking_forward.1} parent=1 // loop_footer_branch
      %12 = sbr.rel target = $region3
    $region8: #{query_ranking_forward.1} parent=1 // loop_exit
      _
    %4384 = vsyncpa [#allocation3], 1
    %s4385 = scalar_lea.sflag [#allocation3], 1
    %4386 = vsyncpa %s4385, 1

</llo_original>
